<compile_context>
chip_gen: v7x
topology: tpu7x:2x2x1
jax: 0.10.0
libtpu: 0.0.40
codegen_flags: <defaults>
</compile_context>

<pallas_src>
import functools

import jax
import jax.numpy as jnp
from jax.experimental import pallas as pl
from jax.experimental.pallas import tpu as pltpu


# ----------------------------------------------------------------------------
# In-kernel helpers (all shapes static, everything stays in vregs/VMEM)
# ----------------------------------------------------------------------------
def _im2col_in_kernel(act, kernel_size, padding, l_out):
    """stride == kernel_size -> non-overlapping windows: pad + regroup via static
    row-slices and lane-concats (no reshape/gather, Mosaic-friendly)."""
    c = act.shape[1]
    zeros = jnp.zeros((padding, c), act.dtype)
    xp = jnp.concatenate([zeros, act, zeros], axis=0)          # (L_in + 2p, C)
    rows = []
    for l in range(l_out):
        window = [xp[l * kernel_size + k:l * kernel_size + k + 1, :]
                  for k in range(kernel_size)]
        rows.append(jnp.concatenate(window, axis=1))           # (1, K*C)
    return jnp.concatenate(rows, axis=0)                        # (L_out, K*C)


def _layer_compute(patches, conv_ref, attn_ref, w1_ref, w2_ref, consts_ref,
                   *, L, C, H, ln_eps):
    """Conv1d(im2col matmul) + folded BN + ReLU -> EncoderSimple layer (folded multi-head
    self-attention + FFN, residual + LayerNorm) -> folded BN + ReLU.  Returns (L, C) f32."""
    f32, bf16 = jnp.float32, jnp.bfloat16

    consts = consts_ref[...]                                    # (11, d_inner) f32
    bn1_s, bn1_b = consts[0:1, :C], consts[1:2, :C]             # conv BatchNorm (folded)
    bo = consts[2:3, :C]                                        # attention output-proj bias
    ln1_g, ln1_b = consts[3:4, :C], consts[4:5, :C]             # LayerNorm 1
    b2 = consts[5:6, :C]                                        # FFN second bias
    ln2_g, ln2_b = consts[6:7, :C], consts[7:8, :C]             # LayerNorm 2
    bn2_s, bn2_b = consts[8:9, :C], consts[9:10, :C]            # final BatchNorm (folded)
    b1 = consts[10:11, :]                                       # FFN first bias (1, d_inner)

    # --- Conv1d (bias=False) as one im2col matmul + folded eval-mode BN + ReLU
    y = jnp.dot(patches, conv_ref[...], preferred_element_type=f32)          # (L, C)
    x = jnp.maximum(y * bn1_s + bn1_b, 0.0)                                  # f32
    x16 = x.astype(bf16)

    # --- multi-head self-attention with folded (C x C) projections:
    #     xw = x @ [M_0..M_{H-1} | Wvo_0..Wvo_{H-1}]   (one wide matmul)
    xw = jnp.dot(x16, attn_ref[...], preferred_element_type=f32)             # (L, 2*H*C)
    acc = jnp.zeros((L, C), f32)
    for h in range(H):
        xm = xw[:, h * C:(h + 1) * C].astype(bf16)               # x @ (Wq_h Wk_h^T / temp)
        xvo = xw[:, (H + h) * C:(H + h + 1) * C].astype(bf16)    # x @ (Wv_h Wo_h)
        s = jax.lax.dot_general(xm, x16, (((1,), (1,)), ((), ())),
                                preferred_element_type=f32)                  # (L, L) scores
        s = s - jnp.max(s, axis=-1, keepdims=True)
        e = jnp.exp(s)
        p = e * pl.reciprocal(jnp.sum(e, axis=-1, keepdims=True), approx=True)
        acc = acc + jnp.dot(p.astype(bf16), xvo, preferred_element_type=f32)
    attn = acc + bo

    # --- residual + LayerNorm 1
    h1 = attn + x
    mu = jnp.mean(h1, axis=-1, keepdims=True)
    var = jnp.mean(jnp.square(h1 - mu), axis=-1, keepdims=True)
    h1 = (h1 - mu) * jax.lax.rsqrt(var + ln_eps) * ln1_g + ln1_b

    # --- position-wise feed forward (1x1 conv == linear)
    f = jnp.dot(h1.astype(bf16), w1_ref[...], preferred_element_type=f32) + b1
    f = jnp.maximum(f, 0.0)
    f = jnp.dot(f.astype(bf16), w2_ref[...], preferred_element_type=f32) + b2

    # --- residual + LayerNorm 2
    g = f + h1
    mu2 = jnp.mean(g, axis=-1, keepdims=True)
    var2 = jnp.mean(jnp.square(g - mu2), axis=-1, keepdims=True)
    g = (g - mu2) * jax.lax.rsqrt(var2 + ln_eps) * ln2_g + ln2_b

    # --- TransformerLayer.final: folded BatchNorm1d(eval) + ReLU
    return jnp.maximum(g * bn2_s + bn2_b, 0.0)                               # (L, C) f32


def _make_kernel(layer_dims, *, H, kernel_size, padding, ln_eps):
    """Whole-network kernel for one batch element (one grid step).
    layer_dims: tuple of (L_out, C_out) per layer (static)."""
    n_layers = len(layer_dims)

    def kernel(*refs):
        x_ref = refs[0]                         # (1, L1, K*C_in) bf16 patches for this batch
        o_ref = refs[-1]                        # (1, 1, n_classes) f32
        wrefs = refs[1:-1]
        bf16, f32 = jnp.bfloat16, jnp.float32

        patches = x_ref[0]                      # (L1, K*C_in) bf16
        act = None
        for li, (L, C) in enumerate(layer_dims):
            conv_ref, attn_ref, w1_ref, w2_ref, consts_ref = wrefs[5 * li:5 * li + 5]
            if li > 0:
                # layer-(li) im2col on the previous VMEM-resident activation
                patches = _im2col_in_kernel(act, kernel_size, padding, L).astype(bf16)
            act = _layer_compute(patches, conv_ref, attn_ref, w1_ref, w2_ref, consts_ref,
                                 L=L, C=C, H=H, ln_eps=ln_eps)

        head_w_ref, head_b_ref = wrefs[5 * n_layers], wrefs[5 * n_layers + 1]
        # AdaptiveAvgPool1d(1) over the sequence + squeeze + classifier Linear
        pooled = jnp.mean(act, axis=0, keepdims=True)                         # (1, C_final)
        logits = jnp.dot(pooled.astype(bf16), head_w_ref[...],
                         preferred_element_type=f32) + head_b_ref[...]        # (1, n_classes)
        o_ref[0] = logits.astype(o_ref.dtype)

    return kernel


# ----------------------------------------------------------------------------
# Wrapper: ONE pallas_call for the whole network, grid over batch
# ----------------------------------------------------------------------------
def _const_spec(arr):
    zeros = (0,) * arr.ndim
    return pl.BlockSpec(arr.shape, lambda b, _z=zeros: _z)


def transformer_classifier_forward(x, params, *, n_heads, kernel_size=5, stride=5,
                                   padding=2, ln_eps=1e-5):
    """x: (B, L, C_in) float32  (PyTorch layout would be (B, C_in, L)) -> (B, n_classes)."""
    assert stride == kernel_size, "im2col pad+regroup trick requires stride == kernel_size"
    layers = params["layers"]
    head = params["head"]
    B, L, c_in = x.shape
    K = kernel_size

    # Layer-1 im2col (stride == kernel -> pad + reshape; tiny XLA glue inside the same jit).
    L1 = (L + 2 * padding - K) // stride + 1
    xp = jnp.pad(x, ((0, 0), (padding, padding), (0, 0)))[:, :L1 * K, :]
    patches1 = xp.reshape(B, L1, K * c_in).astype(jnp.bfloat16)

    # Static (L_out, C_out) per layer.
    layer_dims = []
    lc = L1
    for i, lp in enumerate(layers):
        if i > 0:
            lc = (lc + 2 * padding - K) // stride + 1
        layer_dims.append((lc, lp["conv_w"].shape[1]))

    n_cls = head["out_w"].shape[1]
    kern = _make_kernel(tuple(layer_dims), H=n_heads, kernel_size=K, padding=padding,
                        ln_eps=ln_eps)

    args = [patches1]
    in_specs = [pl.BlockSpec((1, L1, K * c_in), lambda b: (b, 0, 0))]
    for lp in layers:
        for name in ("conv_w", "w_attn", "w1", "w2", "consts"):
            args.append(lp[name])
            in_specs.append(_const_spec(lp[name]))
    for name in ("out_w", "out_b"):
        args.append(head[name])
        in_specs.append(_const_spec(head[name]))

    out = pl.pallas_call(
        kern,
        grid=(B,),
        out_shape=jax.ShapeDtypeStruct((B, 1, n_cls), jnp.float32),
        in_specs=in_specs,
        out_specs=pl.BlockSpec((1, 1, n_cls), lambda b: (b, 0, 0)),
        compiler_params=pltpu.CompilerParams(dimension_semantics=("parallel",)),
    )(*args)
    return out[:, 0, :]                                           # (B, n_classes)


# ----------------------------------------------------------------------------
# Deterministic synthetic parameters (shapes match the PyTorch __init__);
# attention projections are pre-folded into per-head (C, C) matrices.
# ----------------------------------------------------------------------------
def init_params(key, ch_in, n_classes, growth_rate, n_layers, n_heads,
                d_k=128, d_v=128, d_inner=512, kernel_size=5):
    keys = iter(jax.random.split(key, 18 * n_layers + 4))
    f32 = jnp.float32

    def nrm(shape, scale=1.0):
        return jax.random.normal(next(keys), shape, f32) * scale

    def bn_fold(c):  # BatchNorm1d eval-mode running stats folded to scale/shift
        gamma = 1.0 + 0.1 * nrm((c,))
        beta = 0.1 * nrm((c,))
        mean = 0.1 * nrm((c,))
        var = jnp.abs(nrm((c,))) + 1.0
        scale = gamma / jnp.sqrt(var + 1e-5)
        shift = beta - mean * scale
        return scale, shift

    layers = []
    cin = ch_in
    for i in range(n_layers):
        C = growth_rate * (i + 1)
        # Conv1d weight (Cout, Cin, K), bias=False -> im2col matrix (K*Cin, Cout), k-major rows
        conv_w = nrm((C, cin, kernel_size), (1.0 / (cin * kernel_size)) ** 0.5)
        conv_mat = conv_w.transpose(2, 1, 0).reshape(kernel_size * cin, C)

        # Per-head projections, then low-rank fold (exact up to f32 reassociation):
        #   scores_h = (x Wq_h)(x Wk_h)^T / temp = x (Wq_h Wk_h^T / temp) x^T
        #   ctx_h Wo_h = softmax(scores_h) (x Wv_h) Wo_h = softmax(scores_h) x (Wv_h Wo_h)
        wq = nrm((n_heads, C, d_k), (1.0 / C) ** 0.5)
        wk = nrm((n_heads, C, d_k), (1.0 / C) ** 0.5)
        wv = nrm((n_heads, C, d_v), (1.0 / C) ** 0.5)
        wo = nrm((n_heads * d_v, C), (1.0 / (n_heads * d_v)) ** 0.5)
        inv_temp = 1.0 / float(C) ** 0.5      # TODO(synk): sqrt(d_model) temperature, see header
        m_heads = [wq[h] @ wk[h].T * inv_temp for h in range(n_heads)]
        vo_heads = [wv[h] @ wo[h * d_v:(h + 1) * d_v] for h in range(n_heads)]
        w_attn = jnp.concatenate(m_heads + vo_heads, axis=1)                  # (C, 2*H*C)

        bn1_s, bn1_b = bn_fold(C)
        bn2_s, bn2_b = bn_fold(C)
        bo = 0.01 * nrm((C,))
        b2 = 0.01 * nrm((C,))
        w1 = nrm((C, d_inner), (1.0 / C) ** 0.5)
        b1 = 0.01 * nrm((d_inner,))
        w2 = nrm((d_inner, C), (1.0 / d_inner) ** 0.5)
        ln1_g = jnp.ones((C,), f32)
        ln1_b = jnp.zeros((C,), f32)
        ln2_g = jnp.ones((C,), f32)
        ln2_b = jnp.zeros((C,), f32)

        def pad_row(v):
            return jnp.pad(v, (0, d_inner - v.shape[0]))

        # Single packed constants slab (one DMA descriptor): rows 0-9 are per-channel vectors
        # in lanes [:C], row 10 is the FFN b1 bias (full d_inner lanes).
        consts = jnp.stack([pad_row(bn1_s), pad_row(bn1_b), pad_row(bo),
                            pad_row(ln1_g), pad_row(ln1_b), pad_row(b2),
                            pad_row(ln2_g), pad_row(ln2_b),
                            pad_row(bn2_s), pad_row(bn2_b), b1], axis=0)      # (11, d_inner)

        layers.append(dict(
            conv_w=conv_mat.astype(jnp.bfloat16),
            w_attn=w_attn.astype(jnp.bfloat16),
            w1=w1.astype(jnp.bfloat16),
            w2=w2.astype(jnp.bfloat16),
            consts=consts.astype(f32),
        ))
        cin = C

    c_final = growth_rate * n_layers
    head = dict(
        out_w=nrm((c_final, n_classes), (1.0 / c_final) ** 0.5).astype(jnp.bfloat16),
        out_b=(0.01 * nrm((1, n_classes))).astype(f32),
    )
    return dict(layers=layers, head=head)


if __name__ == "__main__":
    key = jax.random.PRNGKey(0)
    k_param, k_x = jax.random.split(key)

    B, L, CH_IN = 2, 50, 4          # PyTorch input would be (B, CH_IN, L) = (2, 4, 50)
    GROWTH, N_LAYERS, N_HEADS = 16, 2, 4
    N_CLASSES = 10

    params = init_params(k_param, CH_IN, N_CLASSES, GROWTH, N_LAYERS, N_HEADS)
    x = jax.random.normal(k_x, (B, L, CH_IN), jnp.float32)   # layout (B, L, C)

    fwd = jax.jit(functools.partial(transformer_classifier_forward, n_heads=N_HEADS))
    out = jax.block_until_ready(fwd(x, params))              # (B, N_CLASSES)
    assert out.shape == (B, N_CLASSES)
    assert bool(jnp.all(jnp.isfinite(out)))
    print("KERNEL_OK")
</pallas_src>

<mosaic_0001>
module attributes {stable_mosaic.version = 11 : i64} {
  func.func @kernel(%arg0: i32, %arg1: memref<1x10x20xbf16, #tpu.memory_space<vmem>>, %arg2: memref<20x16xbf16, #tpu.memory_space<vmem>>, %arg3: memref<16x128xbf16, #tpu.memory_space<vmem>>, %arg4: memref<16x512xbf16, #tpu.memory_space<vmem>>, %arg5: memref<512x16xbf16, #tpu.memory_space<vmem>>, %arg6: memref<11x512xf32, #tpu.memory_space<vmem>>, %arg7: memref<80x32xbf16, #tpu.memory_space<vmem>>, %arg8: memref<32x256xbf16, #tpu.memory_space<vmem>>, %arg9: memref<32x512xbf16, #tpu.memory_space<vmem>>, %arg10: memref<512x32xbf16, #tpu.memory_space<vmem>>, %arg11: memref<11x512xf32, #tpu.memory_space<vmem>>, %arg12: memref<32x10xbf16, #tpu.memory_space<vmem>>, %arg13: memref<1x10xf32, #tpu.memory_space<vmem>>, %arg14: memref<1x1x10xf32, #tpu.memory_space<vmem>>) attributes {dimension_semantics = [#tpu.dimension_semantics<parallel>], iteration_bounds = array<i64: 2>, scalar_prefetch = 0 : i64, scratch_operands = 0 : i64, tpu.core_type = #tpu.core_type<tc>, window_params = [{transform_indices = @transform_0, window_bounds = array<i64: 1, 10, 20>}, {pipeline_mode = #tpu.pipeline_mode<synchronous>, transform_indices = @transform_1, window_bounds = array<i64: 20, 16>}, {pipeline_mode = #tpu.pipeline_mode<synchronous>, transform_indices = @transform_2, window_bounds = array<i64: 16, 128>}, {pipeline_mode = #tpu.pipeline_mode<synchronous>, transform_indices = @transform_3, window_bounds = array<i64: 16, 512>}, {pipeline_mode = #tpu.pipeline_mode<synchronous>, transform_indices = @transform_4, window_bounds = array<i64: 512, 16>}, {pipeline_mode = #tpu.pipeline_mode<synchronous>, transform_indices = @transform_5, window_bounds = array<i64: 11, 512>}, {pipeline_mode = #tpu.pipeline_mode<synchronous>, transform_indices = @transform_6, window_bounds = array<i64: 80, 32>}, {pipeline_mode = #tpu.pipeline_mode<synchronous>, transform_indices = @transform_7, window_bounds = array<i64: 32, 256>}, {pipeline_mode = #tpu.pipeline_mode<synchronous>, transform_indices = @transform_8, window_bounds = array<i64: 32, 512>}, {pipeline_mode = #tpu.pipeline_mode<synchronous>, transform_indices = @transform_9, window_bounds = array<i64: 512, 32>}, {pipeline_mode = #tpu.pipeline_mode<synchronous>, transform_indices = @transform_10, window_bounds = array<i64: 11, 512>}, {pipeline_mode = #tpu.pipeline_mode<synchronous>, transform_indices = @transform_11, window_bounds = array<i64: 32, 10>}, {pipeline_mode = #tpu.pipeline_mode<synchronous>, transform_indices = @transform_12, window_bounds = array<i64: 1, 10>}, {transform_indices = @transform_13, window_bounds = array<i64: 1, 1, 10>}]} {
    %c0 = arith.constant 0 : index
    %c0_0 = arith.constant 0 : index
    %c0_1 = arith.constant 0 : index
    %0 = vector.load %arg1[%c0, %c0_0, %c0_1] : memref<1x10x20xbf16, #tpu.memory_space<vmem>>, vector<1x10x20xbf16>
    %1 = vector.shape_cast %0 : vector<1x10x20xbf16> to vector<10x20xbf16>
    %c0_2 = arith.constant 0 : index
    %c0_3 = arith.constant 0 : index
    %2 = vector.load %arg6[%c0_2, %c0_3] : memref<11x512xf32, #tpu.memory_space<vmem>>, vector<11x512xf32>
    %3 = vector.extract_strided_slice %2 {offsets = [0, 0], sizes = [1, 16], strides = [1, 1]} : vector<11x512xf32> to vector<1x16xf32>
    %4 = vector.extract_strided_slice %2 {offsets = [1, 0], sizes = [1, 16], strides = [1, 1]} : vector<11x512xf32> to vector<1x16xf32>
    %5 = vector.extract_strided_slice %2 {offsets = [2, 0], sizes = [1, 16], strides = [1, 1]} : vector<11x512xf32> to vector<1x16xf32>
    %6 = vector.extract_strided_slice %2 {offsets = [3, 0], sizes = [1, 16], strides = [1, 1]} : vector<11x512xf32> to vector<1x16xf32>
    %7 = vector.extract_strided_slice %2 {offsets = [4, 0], sizes = [1, 16], strides = [1, 1]} : vector<11x512xf32> to vector<1x16xf32>
    %8 = vector.extract_strided_slice %2 {offsets = [5, 0], sizes = [1, 16], strides = [1, 1]} : vector<11x512xf32> to vector<1x16xf32>
    %9 = vector.extract_strided_slice %2 {offsets = [6, 0], sizes = [1, 16], strides = [1, 1]} : vector<11x512xf32> to vector<1x16xf32>
    %10 = vector.extract_strided_slice %2 {offsets = [7, 0], sizes = [1, 16], strides = [1, 1]} : vector<11x512xf32> to vector<1x16xf32>
    %11 = vector.extract_strided_slice %2 {offsets = [8, 0], sizes = [1, 16], strides = [1, 1]} : vector<11x512xf32> to vector<1x16xf32>
    %12 = vector.extract_strided_slice %2 {offsets = [9, 0], sizes = [1, 16], strides = [1, 1]} : vector<11x512xf32> to vector<1x16xf32>
    %13 = vector.extract_strided_slice %2 {offsets = [10, 0], sizes = [1, 512], strides = [1, 1]} : vector<11x512xf32> to vector<1x512xf32>
    %c0_4 = arith.constant 0 : index
    %c0_5 = arith.constant 0 : index
    %14 = vector.load %arg2[%c0_4, %c0_5] : memref<20x16xbf16, #tpu.memory_space<vmem>>, vector<20x16xbf16>
    %cst = arith.constant dense<0.000000e+00> : vector<10x16xf32>
    %15 = tpu.matmul %1, %14, %cst {dimension_numbers = #tpu.dot_dimension_numbers<[1], [0], [0], [1], [0, 0, 1, 1], [], []>} : vector<10x20xbf16>, vector<20x16xbf16>, vector<10x16xf32> -> vector<10x16xf32>
    %16 = vector.broadcast %3 : vector<1x16xf32> to vector<10x16xf32>
    %17 = arith.mulf %15, %16 : vector<10x16xf32>
    %18 = vector.broadcast %4 : vector<1x16xf32> to vector<10x16xf32>
    %19 = arith.addf %17, %18 : vector<10x16xf32>
    %cst_6 = arith.constant 0.000000e+00 : f32
    %20 = vector.broadcast %cst_6 : f32 to vector<10x16xf32>
    %21 = arith.maximumf %19, %20 : vector<10x16xf32>
    %22 = arith.truncf %21 : vector<10x16xf32> to vector<10x16xbf16>
    %c0_7 = arith.constant 0 : index
    %c0_8 = arith.constant 0 : index
    %23 = vector.load %arg3[%c0_7, %c0_8] : memref<16x128xbf16, #tpu.memory_space<vmem>>, vector<16x128xbf16>
    %cst_9 = arith.constant dense<0.000000e+00> : vector<10x128xf32>
    %24 = tpu.matmul %22, %23, %cst_9 {dimension_numbers = #tpu.dot_dimension_numbers<[1], [0], [0], [1], [0, 0, 1, 1], [], []>} : vector<10x16xbf16>, vector<16x128xbf16>, vector<10x128xf32> -> vector<10x128xf32>
    %cst_10 = arith.constant 0.000000e+00 : f32
    %25 = vector.broadcast %cst_10 : f32 to vector<10x16xf32>
    %26 = vector.extract_strided_slice %24 {offsets = [0, 0], sizes = [10, 16], strides = [1, 1]} : vector<10x128xf32> to vector<10x16xf32>
    %27 = arith.truncf %26 : vector<10x16xf32> to vector<10x16xbf16>
    %28 = vector.extract_strided_slice %24 {offsets = [0, 64], sizes = [10, 16], strides = [1, 1]} : vector<10x128xf32> to vector<10x16xf32>
    %29 = arith.truncf %28 : vector<10x16xf32> to vector<10x16xbf16>
    %cst_11 = arith.constant dense<0.000000e+00> : vector<10x10xf32>
    %30 = tpu.matmul %27, %22, %cst_11 {dimension_numbers = #tpu.dot_dimension_numbers<[1], [1], [0], [0], [0, 0, 1, 0], [], []>} : vector<10x16xbf16>, vector<10x16xbf16>, vector<10x10xf32> -> vector<10x10xf32>
    %cst_12 = arith.constant dense<0xFF800000> : vector<10xf32>
    %31 = vector.multi_reduction <maximumf>, %30, %cst_12 [1] : vector<10x10xf32> to vector<10xf32>
    %32 = vector.shape_cast %31 : vector<10xf32> to vector<10x1xf32>
    %33 = vector.broadcast %32 : vector<10x1xf32> to vector<10x10xf32>
    %34 = arith.subf %30, %33 : vector<10x10xf32>
    %35 = math.exp %34 : vector<10x10xf32>
    %cst_13 = arith.constant dense<0.000000e+00> : vector<10xf32>
    %36 = vector.multi_reduction <add>, %35, %cst_13 [1] : vector<10x10xf32> to vector<10xf32>
    %37 = vector.shape_cast %36 : vector<10xf32> to vector<10x1xf32>
    %38 = tpu.reciprocal %37 {approx = true} : vector<10x1xf32> -> vector<10x1xf32>
    %39 = vector.broadcast %38 : vector<10x1xf32> to vector<10x10xf32>
    %40 = arith.mulf %35, %39 : vector<10x10xf32>
    %41 = arith.truncf %40 : vector<10x10xf32> to vector<10x10xbf16>
    %cst_14 = arith.constant dense<0.000000e+00> : vector<10x16xf32>
    %42 = tpu.matmul %41, %29, %cst_14 {dimension_numbers = #tpu.dot_dimension_numbers<[1], [0], [0], [1], [0, 0, 1, 1], [], []>} : vector<10x10xbf16>, vector<10x16xbf16>, vector<10x16xf32> -> vector<10x16xf32>
    %43 = arith.addf %25, %42 : vector<10x16xf32>
    %44 = vector.extract_strided_slice %24 {offsets = [0, 16], sizes = [10, 16], strides = [1, 1]} : vector<10x128xf32> to vector<10x16xf32>
    %45 = arith.truncf %44 : vector<10x16xf32> to vector<10x16xbf16>
    %46 = vector.extract_strided_slice %24 {offsets = [0, 80], sizes = [10, 16], strides = [1, 1]} : vector<10x128xf32> to vector<10x16xf32>
    %47 = arith.truncf %46 : vector<10x16xf32> to vector<10x16xbf16>
    %cst_15 = arith.constant dense<0.000000e+00> : vector<10x10xf32>
    %48 = tpu.matmul %45, %22, %cst_15 {dimension_numbers = #tpu.dot_dimension_numbers<[1], [1], [0], [0], [0, 0, 1, 0], [], []>} : vector<10x16xbf16>, vector<10x16xbf16>, vector<10x10xf32> -> vector<10x10xf32>
    %cst_16 = arith.constant dense<0xFF800000> : vector<10xf32>
    %49 = vector.multi_reduction <maximumf>, %48, %cst_16 [1] : vector<10x10xf32> to vector<10xf32>
    %50 = vector.shape_cast %49 : vector<10xf32> to vector<10x1xf32>
    %51 = vector.broadcast %50 : vector<10x1xf32> to vector<10x10xf32>
    %52 = arith.subf %48, %51 : vector<10x10xf32>
    %53 = math.exp %52 : vector<10x10xf32>
    %cst_17 = arith.constant dense<0.000000e+00> : vector<10xf32>
    %54 = vector.multi_reduction <add>, %53, %cst_17 [1] : vector<10x10xf32> to vector<10xf32>
    %55 = vector.shape_cast %54 : vector<10xf32> to vector<10x1xf32>
    %56 = tpu.reciprocal %55 {approx = true} : vector<10x1xf32> -> vector<10x1xf32>
    %57 = vector.broadcast %56 : vector<10x1xf32> to vector<10x10xf32>
    %58 = arith.mulf %53, %57 : vector<10x10xf32>
    %59 = arith.truncf %58 : vector<10x10xf32> to vector<10x10xbf16>
    %cst_18 = arith.constant dense<0.000000e+00> : vector<10x16xf32>
    %60 = tpu.matmul %59, %47, %cst_18 {dimension_numbers = #tpu.dot_dimension_numbers<[1], [0], [0], [1], [0, 0, 1, 1], [], []>} : vector<10x10xbf16>, vector<10x16xbf16>, vector<10x16xf32> -> vector<10x16xf32>
    %61 = arith.addf %43, %60 : vector<10x16xf32>
    %62 = vector.extract_strided_slice %24 {offsets = [0, 32], sizes = [10, 16], strides = [1, 1]} : vector<10x128xf32> to vector<10x16xf32>
    %63 = arith.truncf %62 : vector<10x16xf32> to vector<10x16xbf16>
    %64 = vector.extract_strided_slice %24 {offsets = [0, 96], sizes = [10, 16], strides = [1, 1]} : vector<10x128xf32> to vector<10x16xf32>
    %65 = arith.truncf %64 : vector<10x16xf32> to vector<10x16xbf16>
    %cst_19 = arith.constant dense<0.000000e+00> : vector<10x10xf32>
    %66 = tpu.matmul %63, %22, %cst_19 {dimension_numbers = #tpu.dot_dimension_numbers<[1], [1], [0], [0], [0, 0, 1, 0], [], []>} : vector<10x16xbf16>, vector<10x16xbf16>, vector<10x10xf32> -> vector<10x10xf32>
    %cst_20 = arith.constant dense<0xFF800000> : vector<10xf32>
    %67 = vector.multi_reduction <maximumf>, %66, %cst_20 [1] : vector<10x10xf32> to vector<10xf32>
    %68 = vector.shape_cast %67 : vector<10xf32> to vector<10x1xf32>
    %69 = vector.broadcast %68 : vector<10x1xf32> to vector<10x10xf32>
    %70 = arith.subf %66, %69 : vector<10x10xf32>
    %71 = math.exp %70 : vector<10x10xf32>
    %cst_21 = arith.constant dense<0.000000e+00> : vector<10xf32>
    %72 = vector.multi_reduction <add>, %71, %cst_21 [1] : vector<10x10xf32> to vector<10xf32>
    %73 = vector.shape_cast %72 : vector<10xf32> to vector<10x1xf32>
    %74 = tpu.reciprocal %73 {approx = true} : vector<10x1xf32> -> vector<10x1xf32>
    %75 = vector.broadcast %74 : vector<10x1xf32> to vector<10x10xf32>
    %76 = arith.mulf %71, %75 : vector<10x10xf32>
    %77 = arith.truncf %76 : vector<10x10xf32> to vector<10x10xbf16>
    %cst_22 = arith.constant dense<0.000000e+00> : vector<10x16xf32>
    %78 = tpu.matmul %77, %65, %cst_22 {dimension_numbers = #tpu.dot_dimension_numbers<[1], [0], [0], [1], [0, 0, 1, 1], [], []>} : vector<10x10xbf16>, vector<10x16xbf16>, vector<10x16xf32> -> vector<10x16xf32>
    %79 = arith.addf %61, %78 : vector<10x16xf32>
    %80 = vector.extract_strided_slice %24 {offsets = [0, 48], sizes = [10, 16], strides = [1, 1]} : vector<10x128xf32> to vector<10x16xf32>
    %81 = arith.truncf %80 : vector<10x16xf32> to vector<10x16xbf16>
    %82 = vector.extract_strided_slice %24 {offsets = [0, 112], sizes = [10, 16], strides = [1, 1]} : vector<10x128xf32> to vector<10x16xf32>
    %83 = arith.truncf %82 : vector<10x16xf32> to vector<10x16xbf16>
    %cst_23 = arith.constant dense<0.000000e+00> : vector<10x10xf32>
    %84 = tpu.matmul %81, %22, %cst_23 {dimension_numbers = #tpu.dot_dimension_numbers<[1], [1], [0], [0], [0, 0, 1, 0], [], []>} : vector<10x16xbf16>, vector<10x16xbf16>, vector<10x10xf32> -> vector<10x10xf32>
    %cst_24 = arith.constant dense<0xFF800000> : vector<10xf32>
    %85 = vector.multi_reduction <maximumf>, %84, %cst_24 [1] : vector<10x10xf32> to vector<10xf32>
    %86 = vector.shape_cast %85 : vector<10xf32> to vector<10x1xf32>
    %87 = vector.broadcast %86 : vector<10x1xf32> to vector<10x10xf32>
    %88 = arith.subf %84, %87 : vector<10x10xf32>
    %89 = math.exp %88 : vector<10x10xf32>
    %cst_25 = arith.constant dense<0.000000e+00> : vector<10xf32>
    %90 = vector.multi_reduction <add>, %89, %cst_25 [1] : vector<10x10xf32> to vector<10xf32>
    %91 = vector.shape_cast %90 : vector<10xf32> to vector<10x1xf32>
    %92 = tpu.reciprocal %91 {approx = true} : vector<10x1xf32> -> vector<10x1xf32>
    %93 = vector.broadcast %92 : vector<10x1xf32> to vector<10x10xf32>
    %94 = arith.mulf %89, %93 : vector<10x10xf32>
    %95 = arith.truncf %94 : vector<10x10xf32> to vector<10x10xbf16>
    %cst_26 = arith.constant dense<0.000000e+00> : vector<10x16xf32>
    %96 = tpu.matmul %95, %83, %cst_26 {dimension_numbers = #tpu.dot_dimension_numbers<[1], [0], [0], [1], [0, 0, 1, 1], [], []>} : vector<10x10xbf16>, vector<10x16xbf16>, vector<10x16xf32> -> vector<10x16xf32>
    %97 = arith.addf %79, %96 : vector<10x16xf32>
    %98 = vector.broadcast %5 : vector<1x16xf32> to vector<10x16xf32>
    %99 = arith.addf %97, %98 : vector<10x16xf32>
    %100 = arith.addf %99, %21 : vector<10x16xf32>
    %cst_27 = arith.constant dense<0.000000e+00> : vector<10xf32>
    %101 = vector.multi_reduction <add>, %100, %cst_27 [1] : vector<10x16xf32> to vector<10xf32>
    %102 = vector.shape_cast %101 : vector<10xf32> to vector<10x1xf32>
    %cst_28 = arith.constant 1.600000e+01 : f32
    %103 = vector.broadcast %cst_28 : f32 to vector<10x1xf32>
    %104 = arith.divf %102, %103 : vector<10x1xf32>
    %105 = vector.broadcast %104 : vector<10x1xf32> to vector<10x16xf32>
    %106 = arith.subf %100, %105 : vector<10x16xf32>
    %107 = arith.mulf %106, %106 : vector<10x16xf32>
    %cst_29 = arith.constant dense<0.000000e+00> : vector<10xf32>
    %108 = vector.multi_reduction <add>, %107, %cst_29 [1] : vector<10x16xf32> to vector<10xf32>
    %109 = vector.shape_cast %108 : vector<10xf32> to vector<10x1xf32>
    %cst_30 = arith.constant 1.600000e+01 : f32
    %110 = vector.broadcast %cst_30 : f32 to vector<10x1xf32>
    %111 = arith.divf %109, %110 : vector<10x1xf32>
    %112 = vector.broadcast %104 : vector<10x1xf32> to vector<10x16xf32>
    %113 = arith.subf %100, %112 : vector<10x16xf32>
    %cst_31 = arith.constant 9.99999974E-6 : f32
    %114 = vector.broadcast %cst_31 : f32 to vector<10x1xf32>
    %115 = arith.addf %111, %114 : vector<10x1xf32>
    %116 = math.rsqrt %115 : vector<10x1xf32>
    %117 = vector.broadcast %116 : vector<10x1xf32> to vector<10x16xf32>
    %118 = arith.mulf %113, %117 : vector<10x16xf32>
    %119 = vector.broadcast %6 : vector<1x16xf32> to vector<10x16xf32>
    %120 = arith.mulf %118, %119 : vector<10x16xf32>
    %121 = vector.broadcast %7 : vector<1x16xf32> to vector<10x16xf32>
    %122 = arith.addf %120, %121 : vector<10x16xf32>
    %123 = arith.truncf %122 : vector<10x16xf32> to vector<10x16xbf16>
    %c0_32 = arith.constant 0 : index
    %c0_33 = arith.constant 0 : index
    %124 = vector.load %arg4[%c0_32, %c0_33] : memref<16x512xbf16, #tpu.memory_space<vmem>>, vector<16x512xbf16>
    %cst_34 = arith.constant dense<0.000000e+00> : vector<10x512xf32>
    %125 = tpu.matmul %123, %124, %cst_34 {dimension_numbers = #tpu.dot_dimension_numbers<[1], [0], [0], [1], [0, 0, 1, 1], [], []>} : vector<10x16xbf16>, vector<16x512xbf16>, vector<10x512xf32> -> vector<10x512xf32>
    %126 = vector.broadcast %13 : vector<1x512xf32> to vector<10x512xf32>
    %127 = arith.addf %125, %126 : vector<10x512xf32>
    %cst_35 = arith.constant 0.000000e+00 : f32
    %128 = vector.broadcast %cst_35 : f32 to vector<10x512xf32>
    %129 = arith.maximumf %127, %128 : vector<10x512xf32>
    %130 = arith.truncf %129 : vector<10x512xf32> to vector<10x512xbf16>
    %c0_36 = arith.constant 0 : index
    %c0_37 = arith.constant 0 : index
    %131 = vector.load %arg5[%c0_36, %c0_37] : memref<512x16xbf16, #tpu.memory_space<vmem>>, vector<512x16xbf16>
    %cst_38 = arith.constant dense<0.000000e+00> : vector<10x16xf32>
    %132 = tpu.matmul %130, %131, %cst_38 {dimension_numbers = #tpu.dot_dimension_numbers<[1], [0], [0], [1], [0, 0, 1, 1], [], []>} : vector<10x512xbf16>, vector<512x16xbf16>, vector<10x16xf32> -> vector<10x16xf32>
    %133 = vector.broadcast %8 : vector<1x16xf32> to vector<10x16xf32>
    %134 = arith.addf %132, %133 : vector<10x16xf32>
    %135 = arith.addf %134, %122 : vector<10x16xf32>
    %cst_39 = arith.constant dense<0.000000e+00> : vector<10xf32>
    %136 = vector.multi_reduction <add>, %135, %cst_39 [1] : vector<10x16xf32> to vector<10xf32>
    %137 = vector.shape_cast %136 : vector<10xf32> to vector<10x1xf32>
    %cst_40 = arith.constant 1.600000e+01 : f32
    %138 = vector.broadcast %cst_40 : f32 to vector<10x1xf32>
    %139 = arith.divf %137, %138 : vector<10x1xf32>
    %140 = vector.broadcast %139 : vector<10x1xf32> to vector<10x16xf32>
    %141 = arith.subf %135, %140 : vector<10x16xf32>
    %142 = arith.mulf %141, %141 : vector<10x16xf32>
    %cst_41 = arith.constant dense<0.000000e+00> : vector<10xf32>
    %143 = vector.multi_reduction <add>, %142, %cst_41 [1] : vector<10x16xf32> to vector<10xf32>
    %144 = vector.shape_cast %143 : vector<10xf32> to vector<10x1xf32>
    %cst_42 = arith.constant 1.600000e+01 : f32
    %145 = vector.broadcast %cst_42 : f32 to vector<10x1xf32>
    %146 = arith.divf %144, %145 : vector<10x1xf32>
    %147 = vector.broadcast %139 : vector<10x1xf32> to vector<10x16xf32>
    %148 = arith.subf %135, %147 : vector<10x16xf32>
    %cst_43 = arith.constant 9.99999974E-6 : f32
    %149 = vector.broadcast %cst_43 : f32 to vector<10x1xf32>
    %150 = arith.addf %146, %149 : vector<10x1xf32>
    %151 = math.rsqrt %150 : vector<10x1xf32>
    %152 = vector.broadcast %151 : vector<10x1xf32> to vector<10x16xf32>
    %153 = arith.mulf %148, %152 : vector<10x16xf32>
    %154 = vector.broadcast %9 : vector<1x16xf32> to vector<10x16xf32>
    %155 = arith.mulf %153, %154 : vector<10x16xf32>
    %156 = vector.broadcast %10 : vector<1x16xf32> to vector<10x16xf32>
    %157 = arith.addf %155, %156 : vector<10x16xf32>
    %158 = vector.broadcast %11 : vector<1x16xf32> to vector<10x16xf32>
    %159 = arith.mulf %157, %158 : vector<10x16xf32>
    %160 = vector.broadcast %12 : vector<1x16xf32> to vector<10x16xf32>
    %161 = arith.addf %159, %160 : vector<10x16xf32>
    %cst_44 = arith.constant 0.000000e+00 : f32
    %162 = vector.broadcast %cst_44 : f32 to vector<10x16xf32>
    %163 = arith.maximumf %161, %162 : vector<10x16xf32>
    %cst_45 = arith.constant 0.000000e+00 : f32
    %164 = vector.broadcast %cst_45 : f32 to vector<2x16xf32>
    %165 = tpu.concatenate %164, %163, %164 in 0 : vector<2x16xf32>, vector<10x16xf32>, vector<2x16xf32> -> vector<14x16xf32>
    %166 = vector.extract_strided_slice %165 {offsets = [0, 0], sizes = [1, 16], strides = [1, 1]} : vector<14x16xf32> to vector<1x16xf32>
    %167 = vector.extract_strided_slice %165 {offsets = [1, 0], sizes = [1, 16], strides = [1, 1]} : vector<14x16xf32> to vector<1x16xf32>
    %168 = vector.extract_strided_slice %165 {offsets = [2, 0], sizes = [1, 16], strides = [1, 1]} : vector<14x16xf32> to vector<1x16xf32>
    %169 = vector.extract_strided_slice %165 {offsets = [3, 0], sizes = [1, 16], strides = [1, 1]} : vector<14x16xf32> to vector<1x16xf32>
    %170 = vector.extract_strided_slice %165 {offsets = [4, 0], sizes = [1, 16], strides = [1, 1]} : vector<14x16xf32> to vector<1x16xf32>
    %171 = tpu.concatenate %166, %167, %168, %169, %170 in 1 : vector<1x16xf32>, vector<1x16xf32>, vector<1x16xf32>, vector<1x16xf32>, vector<1x16xf32> -> vector<1x80xf32>
    %172 = vector.extract_strided_slice %165 {offsets = [5, 0], sizes = [1, 16], strides = [1, 1]} : vector<14x16xf32> to vector<1x16xf32>
    %173 = vector.extract_strided_slice %165 {offsets = [6, 0], sizes = [1, 16], strides = [1, 1]} : vector<14x16xf32> to vector<1x16xf32>
    %174 = vector.extract_strided_slice %165 {offsets = [7, 0], sizes = [1, 16], strides = [1, 1]} : vector<14x16xf32> to vector<1x16xf32>
    %175 = vector.extract_strided_slice %165 {offsets = [8, 0], sizes = [1, 16], strides = [1, 1]} : vector<14x16xf32> to vector<1x16xf32>
    %176 = vector.extract_strided_slice %165 {offsets = [9, 0], sizes = [1, 16], strides = [1, 1]} : vector<14x16xf32> to vector<1x16xf32>
    %177 = tpu.concatenate %172, %173, %174, %175, %176 in 1 : vector<1x16xf32>, vector<1x16xf32>, vector<1x16xf32>, vector<1x16xf32>, vector<1x16xf32> -> vector<1x80xf32>
    %178 = tpu.concatenate %171, %177 in 0 : vector<1x80xf32>, vector<1x80xf32> -> vector<2x80xf32>
    %179 = arith.truncf %178 : vector<2x80xf32> to vector<2x80xbf16>
    %c0_46 = arith.constant 0 : index
    %c0_47 = arith.constant 0 : index
    %180 = vector.load %arg11[%c0_46, %c0_47] : memref<11x512xf32, #tpu.memory_space<vmem>>, vector<11x512xf32>
    %181 = vector.extract_strided_slice %180 {offsets = [0, 0], sizes = [1, 32], strides = [1, 1]} : vector<11x512xf32> to vector<1x32xf32>
    %182 = vector.extract_strided_slice %180 {offsets = [1, 0], sizes = [1, 32], strides = [1, 1]} : vector<11x512xf32> to vector<1x32xf32>
    %183 = vector.extract_strided_slice %180 {offsets = [2, 0], sizes = [1, 32], strides = [1, 1]} : vector<11x512xf32> to vector<1x32xf32>
    %184 = vector.extract_strided_slice %180 {offsets = [3, 0], sizes = [1, 32], strides = [1, 1]} : vector<11x512xf32> to vector<1x32xf32>
    %185 = vector.extract_strided_slice %180 {offsets = [4, 0], sizes = [1, 32], strides = [1, 1]} : vector<11x512xf32> to vector<1x32xf32>
    %186 = vector.extract_strided_slice %180 {offsets = [5, 0], sizes = [1, 32], strides = [1, 1]} : vector<11x512xf32> to vector<1x32xf32>
    %187 = vector.extract_strided_slice %180 {offsets = [6, 0], sizes = [1, 32], strides = [1, 1]} : vector<11x512xf32> to vector<1x32xf32>
    %188 = vector.extract_strided_slice %180 {offsets = [7, 0], sizes = [1, 32], strides = [1, 1]} : vector<11x512xf32> to vector<1x32xf32>
    %189 = vector.extract_strided_slice %180 {offsets = [8, 0], sizes = [1, 32], strides = [1, 1]} : vector<11x512xf32> to vector<1x32xf32>
    %190 = vector.extract_strided_slice %180 {offsets = [9, 0], sizes = [1, 32], strides = [1, 1]} : vector<11x512xf32> to vector<1x32xf32>
    %191 = vector.extract_strided_slice %180 {offsets = [10, 0], sizes = [1, 512], strides = [1, 1]} : vector<11x512xf32> to vector<1x512xf32>
    %c0_48 = arith.constant 0 : index
    %c0_49 = arith.constant 0 : index
    %192 = vector.load %arg7[%c0_48, %c0_49] : memref<80x32xbf16, #tpu.memory_space<vmem>>, vector<80x32xbf16>
    %cst_50 = arith.constant dense<0.000000e+00> : vector<2x32xf32>
    %193 = tpu.matmul %179, %192, %cst_50 {dimension_numbers = #tpu.dot_dimension_numbers<[1], [0], [0], [1], [0, 0, 1, 1], [], []>} : vector<2x80xbf16>, vector<80x32xbf16>, vector<2x32xf32> -> vector<2x32xf32>
    %194 = vector.broadcast %181 : vector<1x32xf32> to vector<2x32xf32>
    %195 = arith.mulf %193, %194 : vector<2x32xf32>
    %196 = vector.broadcast %182 : vector<1x32xf32> to vector<2x32xf32>
    %197 = arith.addf %195, %196 : vector<2x32xf32>
    %cst_51 = arith.constant 0.000000e+00 : f32
    %198 = vector.broadcast %cst_51 : f32 to vector<2x32xf32>
    %199 = arith.maximumf %197, %198 : vector<2x32xf32>
    %200 = arith.truncf %199 : vector<2x32xf32> to vector<2x32xbf16>
    %c0_52 = arith.constant 0 : index
    %c0_53 = arith.constant 0 : index
    %201 = vector.load %arg8[%c0_52, %c0_53] : memref<32x256xbf16, #tpu.memory_space<vmem>>, vector<32x256xbf16>
    %cst_54 = arith.constant dense<0.000000e+00> : vector<2x256xf32>
    %202 = tpu.matmul %200, %201, %cst_54 {dimension_numbers = #tpu.dot_dimension_numbers<[1], [0], [0], [1], [0, 0, 1, 1], [], []>} : vector<2x32xbf16>, vector<32x256xbf16>, vector<2x256xf32> -> vector<2x256xf32>
    %cst_55 = arith.constant 0.000000e+00 : f32
    %203 = vector.broadcast %cst_55 : f32 to vector<2x32xf32>
    %204 = vector.extract_strided_slice %202 {offsets = [0, 0], sizes = [2, 32], strides = [1, 1]} : vector<2x256xf32> to vector<2x32xf32>
    %205 = arith.truncf %204 : vector<2x32xf32> to vector<2x32xbf16>
    %206 = vector.extract_strided_slice %202 {offsets = [0, 128], sizes = [2, 32], strides = [1, 1]} : vector<2x256xf32> to vector<2x32xf32>
    %207 = arith.truncf %206 : vector<2x32xf32> to vector<2x32xbf16>
    %cst_56 = arith.constant dense<0.000000e+00> : vector<2x2xf32>
    %208 = tpu.matmul %205, %200, %cst_56 {dimension_numbers = #tpu.dot_dimension_numbers<[1], [1], [0], [0], [0, 0, 1, 0], [], []>} : vector<2x32xbf16>, vector<2x32xbf16>, vector<2x2xf32> -> vector<2x2xf32>
    %cst_57 = arith.constant dense<0xFF800000> : vector<2xf32>
    %209 = vector.multi_reduction <maximumf>, %208, %cst_57 [1] : vector<2x2xf32> to vector<2xf32>
    %210 = vector.shape_cast %209 : vector<2xf32> to vector<2x1xf32>
    %211 = vector.broadcast %210 : vector<2x1xf32> to vector<2x2xf32>
    %212 = arith.subf %208, %211 : vector<2x2xf32>
    %213 = math.exp %212 : vector<2x2xf32>
    %cst_58 = arith.constant dense<0.000000e+00> : vector<2xf32>
    %214 = vector.multi_reduction <add>, %213, %cst_58 [1] : vector<2x2xf32> to vector<2xf32>
    %215 = vector.shape_cast %214 : vector<2xf32> to vector<2x1xf32>
    %216 = tpu.reciprocal %215 {approx = true} : vector<2x1xf32> -> vector<2x1xf32>
    %217 = vector.broadcast %216 : vector<2x1xf32> to vector<2x2xf32>
    %218 = arith.mulf %213, %217 : vector<2x2xf32>
    %219 = arith.truncf %218 : vector<2x2xf32> to vector<2x2xbf16>
    %cst_59 = arith.constant dense<0.000000e+00> : vector<2x32xf32>
    %220 = tpu.matmul %219, %207, %cst_59 {dimension_numbers = #tpu.dot_dimension_numbers<[1], [0], [0], [1], [0, 0, 1, 1], [], []>} : vector<2x2xbf16>, vector<2x32xbf16>, vector<2x32xf32> -> vector<2x32xf32>
    %221 = arith.addf %203, %220 : vector<2x32xf32>
    %222 = vector.extract_strided_slice %202 {offsets = [0, 32], sizes = [2, 32], strides = [1, 1]} : vector<2x256xf32> to vector<2x32xf32>
    %223 = arith.truncf %222 : vector<2x32xf32> to vector<2x32xbf16>
    %224 = vector.extract_strided_slice %202 {offsets = [0, 160], sizes = [2, 32], strides = [1, 1]} : vector<2x256xf32> to vector<2x32xf32>
    %225 = arith.truncf %224 : vector<2x32xf32> to vector<2x32xbf16>
    %cst_60 = arith.constant dense<0.000000e+00> : vector<2x2xf32>
    %226 = tpu.matmul %223, %200, %cst_60 {dimension_numbers = #tpu.dot_dimension_numbers<[1], [1], [0], [0], [0, 0, 1, 0], [], []>} : vector<2x32xbf16>, vector<2x32xbf16>, vector<2x2xf32> -> vector<2x2xf32>
    %cst_61 = arith.constant dense<0xFF800000> : vector<2xf32>
    %227 = vector.multi_reduction <maximumf>, %226, %cst_61 [1] : vector<2x2xf32> to vector<2xf32>
    %228 = vector.shape_cast %227 : vector<2xf32> to vector<2x1xf32>
    %229 = vector.broadcast %228 : vector<2x1xf32> to vector<2x2xf32>
    %230 = arith.subf %226, %229 : vector<2x2xf32>
    %231 = math.exp %230 : vector<2x2xf32>
    %cst_62 = arith.constant dense<0.000000e+00> : vector<2xf32>
    %232 = vector.multi_reduction <add>, %231, %cst_62 [1] : vector<2x2xf32> to vector<2xf32>
    %233 = vector.shape_cast %232 : vector<2xf32> to vector<2x1xf32>
    %234 = tpu.reciprocal %233 {approx = true} : vector<2x1xf32> -> vector<2x1xf32>
    %235 = vector.broadcast %234 : vector<2x1xf32> to vector<2x2xf32>
    %236 = arith.mulf %231, %235 : vector<2x2xf32>
    %237 = arith.truncf %236 : vector<2x2xf32> to vector<2x2xbf16>
    %cst_63 = arith.constant dense<0.000000e+00> : vector<2x32xf32>
    %238 = tpu.matmul %237, %225, %cst_63 {dimension_numbers = #tpu.dot_dimension_numbers<[1], [0], [0], [1], [0, 0, 1, 1], [], []>} : vector<2x2xbf16>, vector<2x32xbf16>, vector<2x32xf32> -> vector<2x32xf32>
    %239 = arith.addf %221, %238 : vector<2x32xf32>
    %240 = vector.extract_strided_slice %202 {offsets = [0, 64], sizes = [2, 32], strides = [1, 1]} : vector<2x256xf32> to vector<2x32xf32>
    %241 = arith.truncf %240 : vector<2x32xf32> to vector<2x32xbf16>
    %242 = vector.extract_strided_slice %202 {offsets = [0, 192], sizes = [2, 32], strides = [1, 1]} : vector<2x256xf32> to vector<2x32xf32>
    %243 = arith.truncf %242 : vector<2x32xf32> to vector<2x32xbf16>
    %cst_64 = arith.constant dense<0.000000e+00> : vector<2x2xf32>
    %244 = tpu.matmul %241, %200, %cst_64 {dimension_numbers = #tpu.dot_dimension_numbers<[1], [1], [0], [0], [0, 0, 1, 0], [], []>} : vector<2x32xbf16>, vector<2x32xbf16>, vector<2x2xf32> -> vector<2x2xf32>
    %cst_65 = arith.constant dense<0xFF800000> : vector<2xf32>
    %245 = vector.multi_reduction <maximumf>, %244, %cst_65 [1] : vector<2x2xf32> to vector<2xf32>
    %246 = vector.shape_cast %245 : vector<2xf32> to vector<2x1xf32>
    %247 = vector.broadcast %246 : vector<2x1xf32> to vector<2x2xf32>
    %248 = arith.subf %244, %247 : vector<2x2xf32>
    %249 = math.exp %248 : vector<2x2xf32>
    %cst_66 = arith.constant dense<0.000000e+00> : vector<2xf32>
    %250 = vector.multi_reduction <add>, %249, %cst_66 [1] : vector<2x2xf32> to vector<2xf32>
    %251 = vector.shape_cast %250 : vector<2xf32> to vector<2x1xf32>
    %252 = tpu.reciprocal %251 {approx = true} : vector<2x1xf32> -> vector<2x1xf32>
    %253 = vector.broadcast %252 : vector<2x1xf32> to vector<2x2xf32>
    %254 = arith.mulf %249, %253 : vector<2x2xf32>
    %255 = arith.truncf %254 : vector<2x2xf32> to vector<2x2xbf16>
    %cst_67 = arith.constant dense<0.000000e+00> : vector<2x32xf32>
    %256 = tpu.matmul %255, %243, %cst_67 {dimension_numbers = #tpu.dot_dimension_numbers<[1], [0], [0], [1], [0, 0, 1, 1], [], []>} : vector<2x2xbf16>, vector<2x32xbf16>, vector<2x32xf32> -> vector<2x32xf32>
    %257 = arith.addf %239, %256 : vector<2x32xf32>
    %258 = vector.extract_strided_slice %202 {offsets = [0, 96], sizes = [2, 32], strides = [1, 1]} : vector<2x256xf32> to vector<2x32xf32>
    %259 = arith.truncf %258 : vector<2x32xf32> to vector<2x32xbf16>
    %260 = vector.extract_strided_slice %202 {offsets = [0, 224], sizes = [2, 32], strides = [1, 1]} : vector<2x256xf32> to vector<2x32xf32>
    %261 = arith.truncf %260 : vector<2x32xf32> to vector<2x32xbf16>
    %cst_68 = arith.constant dense<0.000000e+00> : vector<2x2xf32>
    %262 = tpu.matmul %259, %200, %cst_68 {dimension_numbers = #tpu.dot_dimension_numbers<[1], [1], [0], [0], [0, 0, 1, 0], [], []>} : vector<2x32xbf16>, vector<2x32xbf16>, vector<2x2xf32> -> vector<2x2xf32>
    %cst_69 = arith.constant dense<0xFF800000> : vector<2xf32>
    %263 = vector.multi_reduction <maximumf>, %262, %cst_69 [1] : vector<2x2xf32> to vector<2xf32>
    %264 = vector.shape_cast %263 : vector<2xf32> to vector<2x1xf32>
    %265 = vector.broadcast %264 : vector<2x1xf32> to vector<2x2xf32>
    %266 = arith.subf %262, %265 : vector<2x2xf32>
    %267 = math.exp %266 : vector<2x2xf32>
    %cst_70 = arith.constant dense<0.000000e+00> : vector<2xf32>
    %268 = vector.multi_reduction <add>, %267, %cst_70 [1] : vector<2x2xf32> to vector<2xf32>
    %269 = vector.shape_cast %268 : vector<2xf32> to vector<2x1xf32>
    %270 = tpu.reciprocal %269 {approx = true} : vector<2x1xf32> -> vector<2x1xf32>
    %271 = vector.broadcast %270 : vector<2x1xf32> to vector<2x2xf32>
    %272 = arith.mulf %267, %271 : vector<2x2xf32>
    %273 = arith.truncf %272 : vector<2x2xf32> to vector<2x2xbf16>
    %cst_71 = arith.constant dense<0.000000e+00> : vector<2x32xf32>
    %274 = tpu.matmul %273, %261, %cst_71 {dimension_numbers = #tpu.dot_dimension_numbers<[1], [0], [0], [1], [0, 0, 1, 1], [], []>} : vector<2x2xbf16>, vector<2x32xbf16>, vector<2x32xf32> -> vector<2x32xf32>
    %275 = arith.addf %257, %274 : vector<2x32xf32>
    %276 = vector.broadcast %183 : vector<1x32xf32> to vector<2x32xf32>
    %277 = arith.addf %275, %276 : vector<2x32xf32>
    %278 = arith.addf %277, %199 : vector<2x32xf32>
    %cst_72 = arith.constant dense<0.000000e+00> : vector<2xf32>
    %279 = vector.multi_reduction <add>, %278, %cst_72 [1] : vector<2x32xf32> to vector<2xf32>
    %280 = vector.shape_cast %279 : vector<2xf32> to vector<2x1xf32>
    %cst_73 = arith.constant 3.200000e+01 : f32
    %281 = vector.broadcast %cst_73 : f32 to vector<2x1xf32>
    %282 = arith.divf %280, %281 : vector<2x1xf32>
    %283 = vector.broadcast %282 : vector<2x1xf32> to vector<2x32xf32>
    %284 = arith.subf %278, %283 : vector<2x32xf32>
    %285 = arith.mulf %284, %284 : vector<2x32xf32>
    %cst_74 = arith.constant dense<0.000000e+00> : vector<2xf32>
    %286 = vector.multi_reduction <add>, %285, %cst_74 [1] : vector<2x32xf32> to vector<2xf32>
    %287 = vector.shape_cast %286 : vector<2xf32> to vector<2x1xf32>
    %cst_75 = arith.constant 3.200000e+01 : f32
    %288 = vector.broadcast %cst_75 : f32 to vector<2x1xf32>
    %289 = arith.divf %287, %288 : vector<2x1xf32>
    %290 = vector.broadcast %282 : vector<2x1xf32> to vector<2x32xf32>
    %291 = arith.subf %278, %290 : vector<2x32xf32>
    %cst_76 = arith.constant 9.99999974E-6 : f32
    %292 = vector.broadcast %cst_76 : f32 to vector<2x1xf32>
    %293 = arith.addf %289, %292 : vector<2x1xf32>
    %294 = math.rsqrt %293 : vector<2x1xf32>
    %295 = vector.broadcast %294 : vector<2x1xf32> to vector<2x32xf32>
    %296 = arith.mulf %291, %295 : vector<2x32xf32>
    %297 = vector.broadcast %184 : vector<1x32xf32> to vector<2x32xf32>
    %298 = arith.mulf %296, %297 : vector<2x32xf32>
    %299 = vector.broadcast %185 : vector<1x32xf32> to vector<2x32xf32>
    %300 = arith.addf %298, %299 : vector<2x32xf32>
    %301 = arith.truncf %300 : vector<2x32xf32> to vector<2x32xbf16>
    %c0_77 = arith.constant 0 : index
    %c0_78 = arith.constant 0 : index
    %302 = vector.load %arg9[%c0_77, %c0_78] : memref<32x512xbf16, #tpu.memory_space<vmem>>, vector<32x512xbf16>
    %cst_79 = arith.constant dense<0.000000e+00> : vector<2x512xf32>
    %303 = tpu.matmul %301, %302, %cst_79 {dimension_numbers = #tpu.dot_dimension_numbers<[1], [0], [0], [1], [0, 0, 1, 1], [], []>} : vector<2x32xbf16>, vector<32x512xbf16>, vector<2x512xf32> -> vector<2x512xf32>
    %304 = vector.broadcast %191 : vector<1x512xf32> to vector<2x512xf32>
    %305 = arith.addf %303, %304 : vector<2x512xf32>
    %cst_80 = arith.constant 0.000000e+00 : f32
    %306 = vector.broadcast %cst_80 : f32 to vector<2x512xf32>
    %307 = arith.maximumf %305, %306 : vector<2x512xf32>
    %308 = arith.truncf %307 : vector<2x512xf32> to vector<2x512xbf16>
    %c0_81 = arith.constant 0 : index
    %c0_82 = arith.constant 0 : index
    %309 = vector.load %arg10[%c0_81, %c0_82] : memref<512x32xbf16, #tpu.memory_space<vmem>>, vector<512x32xbf16>
    %cst_83 = arith.constant dense<0.000000e+00> : vector<2x32xf32>
    %310 = tpu.matmul %308, %309, %cst_83 {dimension_numbers = #tpu.dot_dimension_numbers<[1], [0], [0], [1], [0, 0, 1, 1], [], []>} : vector<2x512xbf16>, vector<512x32xbf16>, vector<2x32xf32> -> vector<2x32xf32>
    %311 = vector.broadcast %186 : vector<1x32xf32> to vector<2x32xf32>
    %312 = arith.addf %310, %311 : vector<2x32xf32>
    %313 = arith.addf %312, %300 : vector<2x32xf32>
    %cst_84 = arith.constant dense<0.000000e+00> : vector<2xf32>
    %314 = vector.multi_reduction <add>, %313, %cst_84 [1] : vector<2x32xf32> to vector<2xf32>
    %315 = vector.shape_cast %314 : vector<2xf32> to vector<2x1xf32>
    %cst_85 = arith.constant 3.200000e+01 : f32
    %316 = vector.broadcast %cst_85 : f32 to vector<2x1xf32>
    %317 = arith.divf %315, %316 : vector<2x1xf32>
    %318 = vector.broadcast %317 : vector<2x1xf32> to vector<2x32xf32>
    %319 = arith.subf %313, %318 : vector<2x32xf32>
    %320 = arith.mulf %319, %319 : vector<2x32xf32>
    %cst_86 = arith.constant dense<0.000000e+00> : vector<2xf32>
    %321 = vector.multi_reduction <add>, %320, %cst_86 [1] : vector<2x32xf32> to vector<2xf32>
    %322 = vector.shape_cast %321 : vector<2xf32> to vector<2x1xf32>
    %cst_87 = arith.constant 3.200000e+01 : f32
    %323 = vector.broadcast %cst_87 : f32 to vector<2x1xf32>
    %324 = arith.divf %322, %323 : vector<2x1xf32>
    %325 = vector.broadcast %317 : vector<2x1xf32> to vector<2x32xf32>
    %326 = arith.subf %313, %325 : vector<2x32xf32>
    %cst_88 = arith.constant 9.99999974E-6 : f32
    %327 = vector.broadcast %cst_88 : f32 to vector<2x1xf32>
    %328 = arith.addf %324, %327 : vector<2x1xf32>
    %329 = math.rsqrt %328 : vector<2x1xf32>
    %330 = vector.broadcast %329 : vector<2x1xf32> to vector<2x32xf32>
    %331 = arith.mulf %326, %330 : vector<2x32xf32>
    %332 = vector.broadcast %187 : vector<1x32xf32> to vector<2x32xf32>
    %333 = arith.mulf %331, %332 : vector<2x32xf32>
    %334 = vector.broadcast %188 : vector<1x32xf32> to vector<2x32xf32>
    %335 = arith.addf %333, %334 : vector<2x32xf32>
    %336 = vector.broadcast %189 : vector<1x32xf32> to vector<2x32xf32>
    %337 = arith.mulf %335, %336 : vector<2x32xf32>
    %338 = vector.broadcast %190 : vector<1x32xf32> to vector<2x32xf32>
    %339 = arith.addf %337, %338 : vector<2x32xf32>
    %cst_89 = arith.constant 0.000000e+00 : f32
    %340 = vector.broadcast %cst_89 : f32 to vector<2x32xf32>
    %341 = arith.maximumf %339, %340 : vector<2x32xf32>
    %cst_90 = arith.constant dense<0.000000e+00> : vector<32xf32>
    %342 = vector.multi_reduction <add>, %341, %cst_90 [0] : vector<2x32xf32> to vector<32xf32>
    %343 = vector.shape_cast %342 : vector<32xf32> to vector<1x32xf32>
    %cst_91 = arith.constant 2.000000e+00 : f32
    %344 = vector.broadcast %cst_91 : f32 to vector<1x32xf32>
    %345 = arith.divf %343, %344 : vector<1x32xf32>
    %346 = arith.truncf %345 : vector<1x32xf32> to vector<1x32xbf16>
    %c0_92 = arith.constant 0 : index
    %c0_93 = arith.constant 0 : index
    %347 = vector.load %arg12[%c0_92, %c0_93] : memref<32x10xbf16, #tpu.memory_space<vmem>>, vector<32x10xbf16>
    %cst_94 = arith.constant dense<0.000000e+00> : vector<1x10xf32>
    %348 = tpu.matmul %346, %347, %cst_94 {dimension_numbers = #tpu.dot_dimension_numbers<[1], [0], [0], [1], [0, 0, 1, 1], [], []>} : vector<1x32xbf16>, vector<32x10xbf16>, vector<1x10xf32> -> vector<1x10xf32>
    %c0_95 = arith.constant 0 : index
    %c0_96 = arith.constant 0 : index
    %349 = vector.load %arg13[%c0_95, %c0_96] : memref<1x10xf32, #tpu.memory_space<vmem>>, vector<1x10xf32>
    %350 = arith.addf %348, %349 : vector<1x10xf32>
    %c0_97 = arith.constant 0 : index
    %c0_98 = arith.constant 0 : index
    %c0_99 = arith.constant 0 : index
    %351 = vector.load %arg14[%c0_97, %c0_98, %c0_99] : memref<1x1x10xf32, #tpu.memory_space<vmem>>, vector<1x1x10xf32>
    %352 = vector.shape_cast %351 : vector<1x1x10xf32> to vector<1x10xf32>
    %353 = vector.shape_cast %350 : vector<1x10xf32> to vector<1x1x10xf32>
    tpu.vector_store %arg14[%c0_97, %c0_98, %c0_99], %353 {strides = array<i32>} : memref<1x1x10xf32, #tpu.memory_space<vmem>>, vector<1x1x10xf32>,
    return
  }
  func.func @transform_0(%arg0: i32) -> (i32, i32, i32) {
    %c0_i32 = arith.constant 0 : i32
    %c0_i32_0 = arith.constant 0 : i32
    %c0_i32_1 = arith.constant 0 : i32
    return %arg0, %c0_i32, %c0_i32_0 : i32, i32, i32
  }
  func.func @transform_1(%arg0: i32) -> (i32, i32) {
    %c0_i32 = arith.constant 0 : i32
    %c0_i32_0 = arith.constant 0 : i32
    %c0_i32_1 = arith.constant 0 : i32
    return %c0_i32, %c0_i32_0 : i32, i32
  }
  func.func @transform_2(%arg0: i32) -> (i32, i32) {
    %c0_i32 = arith.constant 0 : i32
    %c0_i32_0 = arith.constant 0 : i32
    %c0_i32_1 = arith.constant 0 : i32
    return %c0_i32, %c0_i32_0 : i32, i32
  }
  func.func @transform_3(%arg0: i32) -> (i32, i32) {
    %c0_i32 = arith.constant 0 : i32
    %c0_i32_0 = arith.constant 0 : i32
    %c0_i32_1 = arith.constant 0 : i32
    return %c0_i32, %c0_i32_0 : i32, i32
  }
  func.func @transform_4(%arg0: i32) -> (i32, i32) {
    %c0_i32 = arith.constant 0 : i32
    %c0_i32_0 = arith.constant 0 : i32
    %c0_i32_1 = arith.constant 0 : i32
    return %c0_i32, %c0_i32_0 : i32, i32
  }
  func.func @transform_5(%arg0: i32) -> (i32, i32) {
    %c0_i32 = arith.constant 0 : i32
    %c0_i32_0 = arith.constant 0 : i32
    %c0_i32_1 = arith.constant 0 : i32
    return %c0_i32, %c0_i32_0 : i32, i32
  }
  func.func @transform_6(%arg0: i32) -> (i32, i32) {
    %c0_i32 = arith.constant 0 : i32
    %c0_i32_0 = arith.constant 0 : i32
    %c0_i32_1 = arith.constant 0 : i32
    return %c0_i32, %c0_i32_0 : i32, i32
  }
  func.func @transform_7(%arg0: i32) -> (i32, i32) {
    %c0_i32 = arith.constant 0 : i32
    %c0_i32_0 = arith.constant 0 : i32
    %c0_i32_1 = arith.constant 0 : i32
    return %c0_i32, %c0_i32_0 : i32, i32
  }
  func.func @transform_8(%arg0: i32) -> (i32, i32) {
    %c0_i32 = arith.constant 0 : i32
    %c0_i32_0 = arith.constant 0 : i32
    %c0_i32_1 = arith.constant 0 : i32
    return %c0_i32, %c0_i32_0 : i32, i32
  }
  func.func @transform_9(%arg0: i32) -> (i32, i32) {
    %c0_i32 = arith.constant 0 : i32
    %c0_i32_0 = arith.constant 0 : i32
    %c0_i32_1 = arith.constant 0 : i32
    return %c0_i32, %c0_i32_0 : i32, i32
  }
  func.func @transform_10(%arg0: i32) -> (i32, i32) {
    %c0_i32 = arith.constant 0 : i32
    %c0_i32_0 = arith.constant 0 : i32
    %c0_i32_1 = arith.constant 0 : i32
    return %c0_i32, %c0_i32_0 : i32, i32
  }
  func.func @transform_11(%arg0: i32) -> (i32, i32) {
    %c0_i32 = arith.constant 0 : i32
    %c0_i32_0 = arith.constant 0 : i32
    %c0_i32_1 = arith.constant 0 : i32
    return %c0_i32, %c0_i32_0 : i32, i32
  }
  func.func @transform_12(%arg0: i32) -> (i32, i32) {
    %c0_i32 = arith.constant 0 : i32
    %c0_i32_0 = arith.constant 0 : i32
    %c0_i32_1 = arith.constant 0 : i32
    return %c0_i32, %c0_i32_0 : i32, i32
  }
  func.func @transform_13(%arg0: i32) -> (i32, i32, i32) {
    %c0_i32 = arith.constant 0 : i32
    %c0_i32_0 = arith.constant 0 : i32
    %c0_i32_1 = arith.constant 0 : i32
    return %arg0, %c0_i32, %c0_i32_0 : i32, i32, i32
  }
}

</mosaic_0001>

<llo_original>
// kernel: transformer_classifier_forward.1
$region0: #{transformer_classifier_forward.1}
  #allocation0 [shape = 'u32[]', space=smem, size = 0x4, offset = 0x4, fixed_abs, tag = 'smem constant byte address 0x4 - core index']
  #allocation1 [shape = 'u32[144,128]{1,0:T(1,128)}', space=vmem, size = 0x12000, scoped, tag = 'internal scratch']
  %s0 = inlined_call_operand.vmem [shape: bf16[2,10,20], index: 0, kind: input, shape index: {}]
  %s1 = inlined_call_operand.vmem [shape: bf16[20,16], index: 1, kind: input, shape index: {}]
  %s2 = inlined_call_operand.vmem [shape: bf16[16,128], index: 2, kind: input, shape index: {}]
  %s3 = inlined_call_operand.vmem [shape: bf16[16,512], index: 3, kind: input, shape index: {}]
  %s4 = inlined_call_operand.vmem [shape: bf16[512,16], index: 4, kind: input, shape index: {}]
  %s5 = inlined_call_operand.vmem [shape: f32[11,512], index: 5, kind: input, shape index: {}]
  %s6 = inlined_call_operand.vmem [shape: bf16[80,32], index: 6, kind: input, shape index: {}]
  %s7 = inlined_call_operand.vmem [shape: bf16[32,256], index: 7, kind: input, shape index: {}]
  %s8 = inlined_call_operand.vmem [shape: bf16[32,512], index: 8, kind: input, shape index: {}]
  %s9 = inlined_call_operand.vmem [shape: bf16[512,32], index: 9, kind: input, shape index: {}]
  %s10 = inlined_call_operand.vmem [shape: f32[11,512], index: 10, kind: input, shape index: {}]
  %s11 = inlined_call_operand.vmem [shape: bf16[32,10], index: 11, kind: input, shape index: {}]
  %s12 = inlined_call_operand.vmem [shape: f32[1,10], index: 12, kind: input, shape index: {}]
  %s13 = inlined_call_operand.hbm [shape: f32[2,1,10], index: 13, kind: output, shape index: {}]
  %s14 = sld [smem:[#allocation0]]
  $region85: #{transformer_classifier_forward.1} parent=0
    _
  %s16 = ssub.s32 1, %s14
  %s17 = scalar_select 0, %s16, %s14
  $region1: #{transformer_classifier_forward.1} parent=0
    #allocation2 [shape = 'u8[1024]{0}', space=vmem, size = 0x400, scoped, tag = 'output window, operand 0']
    #allocation3 [shape = 's32[2]{0}', space=sflag, size = 0x8, scoped, tag = 'scoped memory for transformer_classifier_forward.1']
    %18 = vsyncpa [#allocation3], 0
    %s19 = scalar_lea.sflag [#allocation3], 1
    %20 = vsyncpa %s19, 0
    loop: start=0, step=1, limit=4
    $region2: #{transformer_classifier_forward.1} parent=1 // loop_pre_header
      _
    $region3: #{transformer_classifier_forward.1} parent=1 // loop_header
      %s22 = sphi 0, %s26
      %p23 = scmp.ge.s32.totalorder %s22, 4
      %s32 = sphi 0, %s34
      %s35 = sphi 0, %s32
      %s36 = sphi 0, %s35
      %s52 = sphi 0, %s36
      %s56 = sphi 0, %s56
      %s58 = sphi 0, %s56
      %s59 = sphi 0, %s58
      %s73 = sphi 0, %s59
      %s77 = sphi 0, %s77
      %s79 = sphi 0, %s77
      %s80 = sphi 0, %s79
      %s94 = sphi 0, %s80
      %s98 = sphi 0, %s98
      %s100 = sphi 0, %s98
      %s101 = sphi 0, %s100
      %s115 = sphi 0, %s101
      %s119 = sphi 0, %s119
      %s121 = sphi 0, %s119
      %s122 = sphi 0, %s121
      %s136 = sphi 0, %s122
      %s140 = sphi 0, %s140
      %s142 = sphi 0, %s140
      %s143 = sphi 0, %s142
      %s157 = sphi 0, %s143
      %s161 = sphi 0, %s161
      %s163 = sphi 0, %s161
      %s164 = sphi 0, %s163
      %s178 = sphi 0, %s164
      %s182 = sphi 0, %s182
      %s184 = sphi 0, %s182
      %s185 = sphi 0, %s184
      %s199 = sphi 0, %s185
      %s203 = sphi 0, %s203
      %s205 = sphi 0, %s203
      %s206 = sphi 0, %s205
      %s220 = sphi 0, %s206
      %s224 = sphi 0, %s224
      %s226 = sphi 0, %s224
      %s227 = sphi 0, %s226
      %s241 = sphi 0, %s227
      %s245 = sphi 0, %s245
      %s247 = sphi 0, %s245
      %s248 = sphi 0, %s247
      %s262 = sphi 0, %s248
      %s266 = sphi 0, %s266
      %s268 = sphi 0, %s266
      %s269 = sphi 0, %s268
      %s283 = sphi 0, %s269
      %s287 = sphi 0, %s287
      %s289 = sphi 0, %s287
      %s290 = sphi 0, %s289
      %s304 = sphi 0, %s290
      %s310 = sphi 0, %s312
      %s313 = sphi 0, %s310
      %s314 = sphi 0, %s313
      %s330 = sphi 0, %s314
    $region4: #{transformer_classifier_forward.1} parent=1 // loop_header_branch
      %25 = sbr.rel (%p23) target = $region8
    $region5: #{transformer_classifier_forward.1} parent=1 // loop_body
      %s27 = ssub.s32 %s22, 1
      %s28 = ssub.s32 %s22, 2
      %s29 = sadd.s32 %s22, 1
      %s30 = ssub.s32 %s22, %s29
      %p31 = scmp.eq.s32.totalorder %s30, 0
      %s33 = sadd.s32 %s32, 1
      %s34 = scalar_select %p31, %s32, %s33
      %p37 = pneg %p31
      %p38 = scmp.eq.s32.totalorder %s22, 1
      %p39 = por %p37, %p38
      %p40 = scmp.ne.s32.totalorder %s32, %s35
      %p41 = scmp.eq.s32.totalorder %s22, 0
      %p42 = por %p40, %p41
      %p43 = scmp.ne.s32.totalorder %s32, %s35
      %p44 = scmp.eq.s32.totalorder %s27, 1
      %p45 = por %p43, %p44
      %p46 = scmp.ne.s32.totalorder %s35, %s36
      %p47 = scmp.eq.s32.totalorder %s27, 0
      %p48 = por %p46, %p47
      %p49 = scmp.ne.s32.totalorder %s35, %s36
      %p50 = scmp.eq.s32.totalorder %s28, 1
      %p51 = por %p49, %p50
      %p53 = scmp.ne.s32.totalorder %s36, %s52
      %p54 = scmp.eq.s32.totalorder %s28, 0
      %p55 = por %p53, %p54
      %s57 = sadd.s32 %s56, 1
      %p60 = scmp.eq.s32.totalorder %s22, 1
      %p61 = scmp.ne.s32.totalorder %s56, %s58
      %p62 = scmp.eq.s32.totalorder %s22, 0
      %p63 = por %p61, %p62
      %p64 = scmp.ne.s32.totalorder %s56, %s58
      %p65 = scmp.eq.s32.totalorder %s27, 1
      %p66 = por %p64, %p65
      %p67 = scmp.ne.s32.totalorder %s58, %s59
      %p68 = scmp.eq.s32.totalorder %s27, 0
      %p69 = por %p67, %p68
      %p70 = scmp.ne.s32.totalorder %s58, %s59
      %p71 = scmp.eq.s32.totalorder %s28, 1
      %p72 = por %p70, %p71
      %p74 = scmp.ne.s32.totalorder %s59, %s73
      %p75 = scmp.eq.s32.totalorder %s28, 0
      %p76 = por %p74, %p75
      %s78 = sadd.s32 %s77, 1
      %p81 = scmp.eq.s32.totalorder %s22, 1
      %p82 = scmp.ne.s32.totalorder %s77, %s79
      %p83 = scmp.eq.s32.totalorder %s22, 0
      %p84 = por %p82, %p83
      %p85 = scmp.ne.s32.totalorder %s77, %s79
      %p86 = scmp.eq.s32.totalorder %s27, 1
      %p87 = por %p85, %p86
      %p88 = scmp.ne.s32.totalorder %s79, %s80
      %p89 = scmp.eq.s32.totalorder %s27, 0
      %p90 = por %p88, %p89
      %p91 = scmp.ne.s32.totalorder %s79, %s80
      %p92 = scmp.eq.s32.totalorder %s28, 1
      %p93 = por %p91, %p92
      %p95 = scmp.ne.s32.totalorder %s80, %s94
      %p96 = scmp.eq.s32.totalorder %s28, 0
      %p97 = por %p95, %p96
      %s99 = sadd.s32 %s98, 1
      %p102 = scmp.eq.s32.totalorder %s22, 1
      %p103 = scmp.ne.s32.totalorder %s98, %s100
      %p104 = scmp.eq.s32.totalorder %s22, 0
      %p105 = por %p103, %p104
      %p106 = scmp.ne.s32.totalorder %s98, %s100
      %p107 = scmp.eq.s32.totalorder %s27, 1
      %p108 = por %p106, %p107
      %p109 = scmp.ne.s32.totalorder %s100, %s101
      %p110 = scmp.eq.s32.totalorder %s27, 0
      %p111 = por %p109, %p110
      %p112 = scmp.ne.s32.totalorder %s100, %s101
      %p113 = scmp.eq.s32.totalorder %s28, 1
      %p114 = por %p112, %p113
      %p116 = scmp.ne.s32.totalorder %s101, %s115
      %p117 = scmp.eq.s32.totalorder %s28, 0
      %p118 = por %p116, %p117
      %s120 = sadd.s32 %s119, 1
      %p123 = scmp.eq.s32.totalorder %s22, 1
      %p124 = scmp.ne.s32.totalorder %s119, %s121
      %p125 = scmp.eq.s32.totalorder %s22, 0
      %p126 = por %p124, %p125
      %p127 = scmp.ne.s32.totalorder %s119, %s121
      %p128 = scmp.eq.s32.totalorder %s27, 1
      %p129 = por %p127, %p128
      %p130 = scmp.ne.s32.totalorder %s121, %s122
      %p131 = scmp.eq.s32.totalorder %s27, 0
      %p132 = por %p130, %p131
      %p133 = scmp.ne.s32.totalorder %s121, %s122
      %p134 = scmp.eq.s32.totalorder %s28, 1
      %p135 = por %p133, %p134
      %p137 = scmp.ne.s32.totalorder %s122, %s136
      %p138 = scmp.eq.s32.totalorder %s28, 0
      %p139 = por %p137, %p138
      %s141 = sadd.s32 %s140, 1
      %p144 = scmp.eq.s32.totalorder %s22, 1
      %p145 = scmp.ne.s32.totalorder %s140, %s142
      %p146 = scmp.eq.s32.totalorder %s22, 0
      %p147 = por %p145, %p146
      %p148 = scmp.ne.s32.totalorder %s140, %s142
      %p149 = scmp.eq.s32.totalorder %s27, 1
      %p150 = por %p148, %p149
      %p151 = scmp.ne.s32.totalorder %s142, %s143
      %p152 = scmp.eq.s32.totalorder %s27, 0
      %p153 = por %p151, %p152
      %p154 = scmp.ne.s32.totalorder %s142, %s143
      %p155 = scmp.eq.s32.totalorder %s28, 1
      %p156 = por %p154, %p155
      %p158 = scmp.ne.s32.totalorder %s143, %s157
      %p159 = scmp.eq.s32.totalorder %s28, 0
      %p160 = por %p158, %p159
      %s162 = sadd.s32 %s161, 1
      %p165 = scmp.eq.s32.totalorder %s22, 1
      %p166 = scmp.ne.s32.totalorder %s161, %s163
      %p167 = scmp.eq.s32.totalorder %s22, 0
      %p168 = por %p166, %p167
      %p169 = scmp.ne.s32.totalorder %s161, %s163
      %p170 = scmp.eq.s32.totalorder %s27, 1
      %p171 = por %p169, %p170
      %p172 = scmp.ne.s32.totalorder %s163, %s164
      %p173 = scmp.eq.s32.totalorder %s27, 0
      %p174 = por %p172, %p173
      %p175 = scmp.ne.s32.totalorder %s163, %s164
      %p176 = scmp.eq.s32.totalorder %s28, 1
      %p177 = por %p175, %p176
      %p179 = scmp.ne.s32.totalorder %s164, %s178
      %p180 = scmp.eq.s32.totalorder %s28, 0
      %p181 = por %p179, %p180
      %s183 = sadd.s32 %s182, 1
      %p186 = scmp.eq.s32.totalorder %s22, 1
      %p187 = scmp.ne.s32.totalorder %s182, %s184
      %p188 = scmp.eq.s32.totalorder %s22, 0
      %p189 = por %p187, %p188
      %p190 = scmp.ne.s32.totalorder %s182, %s184
      %p191 = scmp.eq.s32.totalorder %s27, 1
      %p192 = por %p190, %p191
      %p193 = scmp.ne.s32.totalorder %s184, %s185
      %p194 = scmp.eq.s32.totalorder %s27, 0
      %p195 = por %p193, %p194
      %p196 = scmp.ne.s32.totalorder %s184, %s185
      %p197 = scmp.eq.s32.totalorder %s28, 1
      %p198 = por %p196, %p197
      %p200 = scmp.ne.s32.totalorder %s185, %s199
      %p201 = scmp.eq.s32.totalorder %s28, 0
      %p202 = por %p200, %p201
      %s204 = sadd.s32 %s203, 1
      %p207 = scmp.eq.s32.totalorder %s22, 1
      %p208 = scmp.ne.s32.totalorder %s203, %s205
      %p209 = scmp.eq.s32.totalorder %s22, 0
      %p210 = por %p208, %p209
      %p211 = scmp.ne.s32.totalorder %s203, %s205
      %p212 = scmp.eq.s32.totalorder %s27, 1
      %p213 = por %p211, %p212
      %p214 = scmp.ne.s32.totalorder %s205, %s206
      %p215 = scmp.eq.s32.totalorder %s27, 0
      %p216 = por %p214, %p215
      %p217 = scmp.ne.s32.totalorder %s205, %s206
      %p218 = scmp.eq.s32.totalorder %s28, 1
      %p219 = por %p217, %p218
      %p221 = scmp.ne.s32.totalorder %s206, %s220
      %p222 = scmp.eq.s32.totalorder %s28, 0
      %p223 = por %p221, %p222
      %s225 = sadd.s32 %s224, 1
      %p228 = scmp.eq.s32.totalorder %s22, 1
      %p229 = scmp.ne.s32.totalorder %s224, %s226
      %p230 = scmp.eq.s32.totalorder %s22, 0
      %p231 = por %p229, %p230
      %p232 = scmp.ne.s32.totalorder %s224, %s226
      %p233 = scmp.eq.s32.totalorder %s27, 1
      %p234 = por %p232, %p233
      %p235 = scmp.ne.s32.totalorder %s226, %s227
      %p236 = scmp.eq.s32.totalorder %s27, 0
      %p237 = por %p235, %p236
      %p238 = scmp.ne.s32.totalorder %s226, %s227
      %p239 = scmp.eq.s32.totalorder %s28, 1
      %p240 = por %p238, %p239
      %p242 = scmp.ne.s32.totalorder %s227, %s241
      %p243 = scmp.eq.s32.totalorder %s28, 0
      %p244 = por %p242, %p243
      %s246 = sadd.s32 %s245, 1
      %p249 = scmp.eq.s32.totalorder %s22, 1
      %p250 = scmp.ne.s32.totalorder %s245, %s247
      %p251 = scmp.eq.s32.totalorder %s22, 0
      %p252 = por %p250, %p251
      %p253 = scmp.ne.s32.totalorder %s245, %s247
      %p254 = scmp.eq.s32.totalorder %s27, 1
      %p255 = por %p253, %p254
      %p256 = scmp.ne.s32.totalorder %s247, %s248
      %p257 = scmp.eq.s32.totalorder %s27, 0
      %p258 = por %p256, %p257
      %p259 = scmp.ne.s32.totalorder %s247, %s248
      %p260 = scmp.eq.s32.totalorder %s28, 1
      %p261 = por %p259, %p260
      %p263 = scmp.ne.s32.totalorder %s248, %s262
      %p264 = scmp.eq.s32.totalorder %s28, 0
      %p265 = por %p263, %p264
      %s267 = sadd.s32 %s266, 1
      %p270 = scmp.eq.s32.totalorder %s22, 1
      %p271 = scmp.ne.s32.totalorder %s266, %s268
      %p272 = scmp.eq.s32.totalorder %s22, 0
      %p273 = por %p271, %p272
      %p274 = scmp.ne.s32.totalorder %s266, %s268
      %p275 = scmp.eq.s32.totalorder %s27, 1
      %p276 = por %p274, %p275
      %p277 = scmp.ne.s32.totalorder %s268, %s269
      %p278 = scmp.eq.s32.totalorder %s27, 0
      %p279 = por %p277, %p278
      %p280 = scmp.ne.s32.totalorder %s268, %s269
      %p281 = scmp.eq.s32.totalorder %s28, 1
      %p282 = por %p280, %p281
      %p284 = scmp.ne.s32.totalorder %s269, %s283
      %p285 = scmp.eq.s32.totalorder %s28, 0
      %p286 = por %p284, %p285
      %s288 = sadd.s32 %s287, 1
      %p291 = scmp.eq.s32.totalorder %s22, 1
      %p292 = scmp.ne.s32.totalorder %s287, %s289
      %p293 = scmp.eq.s32.totalorder %s22, 0
      %p294 = por %p292, %p293
      %p295 = scmp.ne.s32.totalorder %s287, %s289
      %p296 = scmp.eq.s32.totalorder %s27, 1
      %p297 = por %p295, %p296
      %p298 = scmp.ne.s32.totalorder %s289, %s290
      %p299 = scmp.eq.s32.totalorder %s27, 0
      %p300 = por %p298, %p299
      %p301 = scmp.ne.s32.totalorder %s289, %s290
      %p302 = scmp.eq.s32.totalorder %s28, 1
      %p303 = por %p301, %p302
      %p305 = scmp.ne.s32.totalorder %s290, %s304
      %p306 = scmp.eq.s32.totalorder %s28, 0
      %p307 = por %p305, %p306
      %s308 = ssub.s32 %s22, %s29
      %p309 = scmp.eq.s32.totalorder %s308, 0
      %s311 = sadd.s32 %s310, 1
      %s312 = scalar_select %p309, %s310, %s311
      %p315 = pneg %p309
      %p316 = scmp.eq.s32.totalorder %s22, 1
      %p317 = por %p315, %p316
      %p318 = scmp.ne.s32.totalorder %s310, %s313
      %p319 = scmp.eq.s32.totalorder %s22, 0
      %p320 = por %p318, %p319
      %p321 = scmp.ne.s32.totalorder %s310, %s313
      %p322 = scmp.eq.s32.totalorder %s27, 1
      %p323 = por %p321, %p322
      %p324 = scmp.ne.s32.totalorder %s313, %s314
      %p325 = scmp.eq.s32.totalorder %s27, 0
      %p326 = por %p324, %p325
      %p327 = scmp.ne.s32.totalorder %s313, %s314
      %p328 = scmp.eq.s32.totalorder %s28, 1
      %p329 = por %p327, %p328
      %p331 = scmp.ne.s32.totalorder %s314, %s330
      %p332 = scmp.eq.s32.totalorder %s28, 0
      %p333 = por %p331, %p332
      %p334 = scmp.le.s32.totalorder 1, %s22
      %p335 = scmp.lt.s32.totalorder %s22, 3
      %p336 = pnand %p334, %p335
      %p337 = pneg %p336
      // Predicated region
      $region9: #{transformer_classifier_forward.1} parent=5 // pred_check
        _
      $region10: #{transformer_classifier_forward.1} parent=5 // pred_check_branch
        %339 = sbr.rel (%p336) target = $region12
      $region11: #{transformer_classifier_forward.1} parent=5 // pred_region
        %s340 = ssub.s32 %s22, 1
        // Predicated region
        $region13: #{transformer_classifier_forward.1} parent=11 // pred_check
          %p341 = pneg %p69
        $region14: #{transformer_classifier_forward.1} parent=11 // pred_check_branch
          %343 = sbr.rel (%p341) target = $region16
        $region15: #{transformer_classifier_forward.1} parent=11 // pred_region
          _
        $region16: #{transformer_classifier_forward.1} parent=11 // pred_fallthru
          _
        // Predicated region
        $region17: #{transformer_classifier_forward.1} parent=11 // pred_check
          %p344 = pneg %p90
        $region18: #{transformer_classifier_forward.1} parent=11 // pred_check_branch
          %346 = sbr.rel (%p344) target = $region20
        $region19: #{transformer_classifier_forward.1} parent=11 // pred_region
          _
        $region20: #{transformer_classifier_forward.1} parent=11 // pred_fallthru
          _
        // Predicated region
        $region21: #{transformer_classifier_forward.1} parent=11 // pred_check
          %p347 = pneg %p111
        $region22: #{transformer_classifier_forward.1} parent=11 // pred_check_branch
          %349 = sbr.rel (%p347) target = $region24
        $region23: #{transformer_classifier_forward.1} parent=11 // pred_region
          _
        $region24: #{transformer_classifier_forward.1} parent=11 // pred_fallthru
          _
        // Predicated region
        $region25: #{transformer_classifier_forward.1} parent=11 // pred_check
          %p350 = pneg %p132
        $region26: #{transformer_classifier_forward.1} parent=11 // pred_check_branch
          %352 = sbr.rel (%p350) target = $region28
        $region27: #{transformer_classifier_forward.1} parent=11 // pred_region
          _
        $region28: #{transformer_classifier_forward.1} parent=11 // pred_fallthru
          _
        // Predicated region
        $region29: #{transformer_classifier_forward.1} parent=11 // pred_check
          %p353 = pneg %p153
        $region30: #{transformer_classifier_forward.1} parent=11 // pred_check_branch
          %355 = sbr.rel (%p353) target = $region32
        $region31: #{transformer_classifier_forward.1} parent=11 // pred_region
          _
        $region32: #{transformer_classifier_forward.1} parent=11 // pred_fallthru
          _
        // Predicated region
        $region33: #{transformer_classifier_forward.1} parent=11 // pred_check
          %p356 = pneg %p174
        $region34: #{transformer_classifier_forward.1} parent=11 // pred_check_branch
          %358 = sbr.rel (%p356) target = $region36
        $region35: #{transformer_classifier_forward.1} parent=11 // pred_region
          _
        $region36: #{transformer_classifier_forward.1} parent=11 // pred_fallthru
          _
        // Predicated region
        $region37: #{transformer_classifier_forward.1} parent=11 // pred_check
          %p359 = pneg %p195
        $region38: #{transformer_classifier_forward.1} parent=11 // pred_check_branch
          %361 = sbr.rel (%p359) target = $region40
        $region39: #{transformer_classifier_forward.1} parent=11 // pred_region
          _
        $region40: #{transformer_classifier_forward.1} parent=11 // pred_fallthru
          _
        // Predicated region
        $region41: #{transformer_classifier_forward.1} parent=11 // pred_check
          %p362 = pneg %p216
        $region42: #{transformer_classifier_forward.1} parent=11 // pred_check_branch
          %364 = sbr.rel (%p362) target = $region44
        $region43: #{transformer_classifier_forward.1} parent=11 // pred_region
          _
        $region44: #{transformer_classifier_forward.1} parent=11 // pred_fallthru
          _
        // Predicated region
        $region45: #{transformer_classifier_forward.1} parent=11 // pred_check
          %p365 = pneg %p237
        $region46: #{transformer_classifier_forward.1} parent=11 // pred_check_branch
          %367 = sbr.rel (%p365) target = $region48
        $region47: #{transformer_classifier_forward.1} parent=11 // pred_region
          _
        $region48: #{transformer_classifier_forward.1} parent=11 // pred_fallthru
          _
        // Predicated region
        $region49: #{transformer_classifier_forward.1} parent=11 // pred_check
          %p368 = pneg %p258
        $region50: #{transformer_classifier_forward.1} parent=11 // pred_check_branch
          %370 = sbr.rel (%p368) target = $region52
        $region51: #{transformer_classifier_forward.1} parent=11 // pred_region
          _
        $region52: #{transformer_classifier_forward.1} parent=11 // pred_fallthru
          _
        // Predicated region
        $region53: #{transformer_classifier_forward.1} parent=11 // pred_check
          %p371 = pneg %p279
        $region54: #{transformer_classifier_forward.1} parent=11 // pred_check_branch
          %373 = sbr.rel (%p371) target = $region56
        $region55: #{transformer_classifier_forward.1} parent=11 // pred_region
          _
        $region56: #{transformer_classifier_forward.1} parent=11 // pred_fallthru
          _
        // Predicated region
        $region57: #{transformer_classifier_forward.1} parent=11 // pred_check
          %p374 = pneg %p300
        $region58: #{transformer_classifier_forward.1} parent=11 // pred_check_branch
          %376 = sbr.rel (%p374) target = $region60
        $region59: #{transformer_classifier_forward.1} parent=11 // pred_region
          _
        $region60: #{transformer_classifier_forward.1} parent=11 // pred_fallthru
          _
      $region12: #{transformer_classifier_forward.1} parent=5 // pred_fallthru
        _
      %p377 = scmp.lt.s32.totalorder %s22, 2
      // Predicated region
      $region61: #{transformer_classifier_forward.1} parent=5 // pred_check
        %p378 = pneg %p377
      $region62: #{transformer_classifier_forward.1} parent=5 // pred_check_branch
        %380 = sbr.rel (%p378) target = $region64
      $region63: #{transformer_classifier_forward.1} parent=5 // pred_region
        // Predicated region
        $region65: #{transformer_classifier_forward.1} parent=63 // pred_check
          %p381 = pneg %p42
        $region66: #{transformer_classifier_forward.1} parent=63 // pred_check_branch
          %383 = sbr.rel (%p381) target = $region68
        $region67: #{transformer_classifier_forward.1} parent=63 // pred_region
          %p384 = scmp.lt.s32.totalorder %s22, 1
          %s385 = scalar_select %p384, %s22, 1
          %s386 = smul.addr %s385, 2
          %s387 = smul.addr %s386, 4
          %s388 = scalar_lea.vmem %s0, %s387
        $region68: #{transformer_classifier_forward.1} parent=63 // pred_fallthru
          _
      $region64: #{transformer_classifier_forward.1} parent=5 // pred_fallthru
        _
      %p389 = scmp.le.s32.totalorder 1, %s22
      %p390 = scmp.lt.s32.totalorder %s22, 3
      %p391 = pnand %p389, %p390
      %p392 = pneg %p391
      // Predicated region
      $region69: #{transformer_classifier_forward.1} parent=5 // pred_check
        _
      $region70: #{transformer_classifier_forward.1} parent=5 // pred_check_branch
        %394 = sbr.rel (%p391) target = $region72
      $region71: #{transformer_classifier_forward.1} parent=5 // pred_region
        %s395 = ssub.s32 %s22, 1
        %p396 = scmp.lt.s32.totalorder %s27, 1
        %s397 = scalar_select %p396, %s27, 1
        %s398 = smul.addr %s397, 2
        %s399 = smul.addr %s398, 4
        %s400 = scalar_lea.vmem %s0, %s399
        %p401 = pneg %p48
        %p402 = pneg %p45
        %p403 = pneg %p69
        %p404 = pneg %p66
        %p405 = pneg %p90
        %p406 = pneg %p87
        %p407 = pneg %p111
        %p408 = pneg %p108
        %p409 = pneg %p132
        %p410 = pneg %p129
        %p411 = pneg %p153
        %p412 = pneg %p150
        %p413 = pneg %p174
        %p414 = pneg %p171
        %p415 = pneg %p195
        %p416 = pneg %p192
        %p417 = pneg %p216
        %p418 = pneg %p213
        %p419 = pneg %p237
        %p420 = pneg %p234
        %p421 = pneg %p258
        %p422 = pneg %p255
        %p423 = pneg %p279
        %p424 = pneg %p276
        %p425 = pneg %p300
        %p426 = pneg %p297
        %p427 = pneg %p326
        %p428 = pneg %p323
        %s429 = sand.u32 %s313, 1
        %s430 = scalar_lea.sflag [#allocation3], %s429
        %s431 = sand.u32 %s313, 1
        %s432 = scalar_lea.vmem [#allocation2], %s431
        %p433 = scmp.lt.s32.totalorder %s27, 1
        %s434 = scalar_select %p433, %s27, 1
        %s435 = smul.addr %s434, 2
        %s436 = smul.addr %s435, 4
        %s437 = scalar_lea.vmem %s0, %s436
        %v439 = vld [vmem:[%s437] sm:$0xf]
        %v440 = vld [vmem:[%s437 + $0x4] sm:$0x1]
        %v441 = vld [vmem:[%s5] sm:$0xff]
        %v442 = vld [vmem:[%s5 + $0x20] sm:$0x7]
        %v443 = vld [vmem:[%s5 + $0x28] sm:$0x7]
        %v444 = vld [vmem:[%s5 + $0x30] sm:$0x7]
        %v445 = vld [vmem:[%s5 + $0x38] sm:$0x7]
        %v446 = vld [vmem:[%s1] sm:$0xf]
        %v447 = vld [vmem:[%s1 + $0x4] sm:$0xf]
        %v448 = vld [vmem:[%s1 + $0x8] sm:$0x3]
        %v451 = vunpack.c.l.b16 %v439
        %v452 = vunpack.c.l.b16 %v440
        %v453 = vpack.c.b16 %v452, %v451
        %v457 = vunpack.c.l.b16 %v446
        %v458 = vunpack.c.l.b16 %v447
        %v459 = vunpack.c.l.b16 %v448
        %v460 = vpack.c.b16 %v458, %v457
        %v461 = vpack.c.b16 %v459, %v459
        %vm463 = vcmask 162816
        %v465 = vsel %vm463, %v453, 0
        %vm467 = vcmask 1041408
        %v469 = vsel %vm467, %v461, 0
        %471 = vmatprep.subr.bf16.mxu0 0
        %472 = vmatpush1.bf16.msra.mxu0 %v460
        %473 = vmatprep.subr.bf16.mxu0 0
        %474 = vmatpush1.bf16.msra.mxu0 %v469
        %475 = vmatprep.subr.bf16.mxu0 0
        %476 = vmatpush1.bf16.msra.mxu0 0
        %477 = vmatprep.subr.bf16.mxu0 0
        %478 = vmatpush1.bf16.msra.mxu0 0
        %479 = vmatprep.subr.bf16.mxu0 0
        %480 = vmatpush1.bf16.msra.mxu0 0
        %481 = vmatprep.subr.bf16.mxu0 0
        %482 = vmatpush1.bf16.msra.mxu0 0
        %483 = vmatprep.subr.bf16.mxu0 0
        %484 = vmatpush1.bf16.msra.mxu0 0
        %485 = vmatprep.subr.bf16.mxu0 0
        %486 = vmatpush1.bf16.msra.mxu0 0
        %487 = vmatprep.subr.bf16.mxu0 0
        %488 = vmatpush1.bf16.msra.mxu0 0
        %489 = vmatprep.subr.bf16.mxu0 0
        %490 = vmatpush1.bf16.msra.mxu0 0
        %491 = vmatprep.subr.bf16.mxu0 0
        %492 = vmatpush1.bf16.msra.mxu0 0
        %493 = vmatprep.subr.bf16.mxu0 0
        %494 = vmatpush1.bf16.msra.mxu0 0
        %495 = vmatprep.subr.bf16.mxu0 0
        %496 = vmatpush1.bf16.msra.mxu0 0
        %497 = vmatprep.subr.bf16.mxu0 0
        %498 = vmatpush1.bf16.msra.mxu0 0
        %499 = vmatprep.subr.bf16.mxu0 0
        %500 = vmatpush1.bf16.msra.mxu0 0
        %501 = vmatprep.subr.bf16.mxu0 0
        %502 = vmatpush1.bf16.msra.mxu0 0
        %503 = vmatprep.mubr.bf16.mxu0 0
        %504 = vmatmul.mubr.bf16.gmra.mrb[0].mxu0 %v465
        %v505 = vpop.f32.mrb[0].mxu0
        %v506 = vadd.f32 0.0, %v505
        %v507 = vpop.f32.mrb[0].mxu0
        %v508 = vpop.f32.mrb[0].mxu0
        %v509 = vadd.f32 0.0, %v508
        %v510 = vpop.f32.mrb[0].mxu0
        %511 = vdwg.mxu0
        %v512 = vlaneseq
        %v513 = vshrl.u32 %v512, 7
        %v514 = vsub.s32 0, %v513
        %v515 = vrot.slane %v441, %v514
        %v516 = vmul.f32 %v506, %v515
        %v517 = vmul.f32 %v509, %v515
        %v518 = vlaneseq
        %v519 = vshrl.u32 %v518, 7
        %v520 = vsub.s32 1, %v519
        %v521 = vrot.slane %v441, %v520
        %v522 = vadd.f32 %v516, %v521
        %v523 = vadd.f32 %v517, %v521
        %v524 = vmax.f32 %v522, 0.0
        %v525 = vmax.f32 %v523, 0.0
        %v526 = vpack.c.bf16 %v525, %v524
        %v527 = vld [vmem:[%s2] sm:$0xf]
        %v528 = vld [vmem:[%s2 + $0x4] sm:$0xf]
        %v531 = vunpack.c.l.b16 %v527
        %v532 = vunpack.c.l.b16 %v528
        %v533 = vpack.c.b16 %v532, %v531
        %vm535 = vcmask 130048
        %v537 = vsel %vm535, %v526, 0
        %539 = vmatprep.subr.bf16.mxu0 0
        %540 = vmatpush1.bf16.msra.mxu0 %v533
        %541 = vmatprep.subr.bf16.mxu0 0
        %542 = vmatpush1.bf16.msra.mxu0 0
        %543 = vmatprep.subr.bf16.mxu0 0
        %544 = vmatpush1.bf16.msra.mxu0 0
        %545 = vmatprep.subr.bf16.mxu0 0
        %546 = vmatpush1.bf16.msra.mxu0 0
        %547 = vmatprep.subr.bf16.mxu0 0
        %548 = vmatpush1.bf16.msra.mxu0 0
        %549 = vmatprep.subr.bf16.mxu0 0
        %550 = vmatpush1.bf16.msra.mxu0 0
        %551 = vmatprep.subr.bf16.mxu0 0
        %552 = vmatpush1.bf16.msra.mxu0 0
        %553 = vmatprep.subr.bf16.mxu0 0
        %554 = vmatpush1.bf16.msra.mxu0 0
        %555 = vmatprep.subr.bf16.mxu0 0
        %556 = vmatpush1.bf16.msra.mxu0 0
        %557 = vmatprep.subr.bf16.mxu0 0
        %558 = vmatpush1.bf16.msra.mxu0 0
        %559 = vmatprep.subr.bf16.mxu0 0
        %560 = vmatpush1.bf16.msra.mxu0 0
        %561 = vmatprep.subr.bf16.mxu0 0
        %562 = vmatpush1.bf16.msra.mxu0 0
        %563 = vmatprep.subr.bf16.mxu0 0
        %564 = vmatpush1.bf16.msra.mxu0 0
        %565 = vmatprep.subr.bf16.mxu0 0
        %566 = vmatpush1.bf16.msra.mxu0 0
        %567 = vmatprep.subr.bf16.mxu0 0
        %568 = vmatpush1.bf16.msra.mxu0 0
        %569 = vmatprep.subr.bf16.mxu0 0
        %570 = vmatpush1.bf16.msra.mxu0 0
        %571 = vmatprep.mubr.bf16.mxu0 0
        %572 = vmatmul.mubr.bf16.gmra.mrb[0].mxu0 %v537
        %v573 = vpop.f32.mrb[0].mxu0
        %v574 = vadd.f32 0.0, %v573
        %v575 = vpop.f32.mrb[0].mxu0
        %v576 = vpop.f32.mrb[0].mxu0
        %v577 = vadd.f32 0.0, %v576
        %v578 = vpop.f32.mrb[0].mxu0
        %579 = vdwg.mxu0
        %v580 = vpack.c.bf16 %v577, %v574
        %v582 = vsel %vm535, %v580, 0
        %584 = vmatprep.subr.bf16.mxu0 0
        %585 = vmatpush1.bf16.xpose.msra.mxu0 %v537
        %586 = vmatprep.subr.bf16.mxu0 0
        %587 = vmatpush1.bf16.xpose.msra.mxu0 0
        %588 = vmatprep.subr.bf16.mxu0 0
        %589 = vmatpush1.bf16.xpose.msra.mxu0 0
        %590 = vmatprep.subr.bf16.mxu0 0
        %591 = vmatpush1.bf16.xpose.msra.mxu0 0
        %592 = vmatprep.subr.bf16.mxu0 0
        %593 = vmatpush1.bf16.xpose.msra.mxu0 0
        %594 = vmatprep.subr.bf16.mxu0 0
        %595 = vmatpush1.bf16.xpose.msra.mxu0 0
        %596 = vmatprep.subr.bf16.mxu0 0
        %597 = vmatpush1.bf16.xpose.msra.mxu0 0
        %598 = vmatprep.subr.bf16.mxu0 0
        %599 = vmatpush1.bf16.xpose.msra.mxu0 0
        %600 = vmatprep.subr.bf16.mxu0 0
        %601 = vmatpush1.bf16.xpose.msra.mxu0 0
        %602 = vmatprep.subr.bf16.mxu0 0
        %603 = vmatpush1.bf16.xpose.msra.mxu0 0
        %604 = vmatprep.subr.bf16.mxu0 0
        %605 = vmatpush1.bf16.xpose.msra.mxu0 0
        %606 = vmatprep.subr.bf16.mxu0 0
        %607 = vmatpush1.bf16.xpose.msra.mxu0 0
        %608 = vmatprep.subr.bf16.mxu0 0
        %609 = vmatpush1.bf16.xpose.msra.mxu0 0
        %610 = vmatprep.subr.bf16.mxu0 0
        %611 = vmatpush1.bf16.xpose.msra.mxu0 0
        %612 = vmatprep.subr.bf16.mxu0 0
        %613 = vmatpush1.bf16.xpose.msra.mxu0 0
        %614 = vmatprep.subr.bf16.mxu0 0
        %615 = vmatpush1.bf16.xpose.msra.mxu0 0
        %616 = vmatprep.mubr.bf16.mxu0 0
        %617 = vmatmul.mubr.bf16.gmra.mrb[0].mxu0 %v582
        %v618 = vpop.f32.mrb[0].mxu0
        %v619 = vadd.f32 0.0, %v618
        %v620 = vpop.f32.mrb[0].mxu0
        %v621 = vpop.f32.mrb[0].mxu0
        %v622 = vadd.f32 0.0, %v621
        %v623 = vpop.f32.mrb[0].mxu0
        %624 = vdwg.mxu0
        %vm625 = vcmask 80896
        %v626 = vsel %vm625, %v619, -inf
        %627 = vmax.xlane.f32.xlu0 %v626
        %v628 = vpop.xlane.xlu0 %627
        %vm629 = vcmask 74752
        %v630 = vsel %vm629, %v622, -inf
        %631 = vmax.xlane.f32.xlu0 %v630
        %v632 = vpop.xlane.xlu0 %631
        %v633 = vsub.f32 %v619, %v628
        %v634 = vsub.f32 %v622, %v632
        %v635 = vmul.f32 %v633, 1.442695
        %v636 = vpow.pop %v635
        %v637 = vmul.f32 %v634, 1.442695
        %v638 = vpow.pop %v637
        %v639 = vsel %vm625, %v636, 0.0
        %640 = vadd.xlane.f32.xlu0 %v639
        %v641 = vpop.xlane.xlu0 %640
        %v642 = vsel %vm629, %v638, 0.0
        %643 = vadd.xlane.f32.xlu0 %v642
        %v644 = vpop.xlane.xlu0 %643
        %v645 = vrcp.pop %v641
        %v646 = vrcp.pop %v644
        %v647 = vmul.f32 %v636, %v645
        %v648 = vmul.f32 %v638, %v646
        %v649 = vpack.c.bf16 %v648, %v647
        %651 = vrot.lane.b32.xlu0 %v580, 112
        %v652 = vpop.permute.xlu0 %651
        %v654 = vsel %vm535, %v652, 0
        %656 = vmatprep.subr.bf16.mxu0 0
        %657 = vmatpush1.bf16.xpose.msra.mxu0 %v537
        %658 = vmatprep.subr.bf16.mxu0 0
        %659 = vmatpush1.bf16.xpose.msra.mxu0 0
        %660 = vmatprep.subr.bf16.mxu0 0
        %661 = vmatpush1.bf16.xpose.msra.mxu0 0
        %662 = vmatprep.subr.bf16.mxu0 0
        %663 = vmatpush1.bf16.xpose.msra.mxu0 0
        %664 = vmatprep.subr.bf16.mxu0 0
        %665 = vmatpush1.bf16.xpose.msra.mxu0 0
        %666 = vmatprep.subr.bf16.mxu0 0
        %667 = vmatpush1.bf16.xpose.msra.mxu0 0
        %668 = vmatprep.subr.bf16.mxu0 0
        %669 = vmatpush1.bf16.xpose.msra.mxu0 0
        %670 = vmatprep.subr.bf16.mxu0 0
        %671 = vmatpush1.bf16.xpose.msra.mxu0 0
        %672 = vmatprep.subr.bf16.mxu0 0
        %673 = vmatpush1.bf16.xpose.msra.mxu0 0
        %674 = vmatprep.subr.bf16.mxu0 0
        %675 = vmatpush1.bf16.xpose.msra.mxu0 0
        %676 = vmatprep.subr.bf16.mxu0 0
        %677 = vmatpush1.bf16.xpose.msra.mxu0 0
        %678 = vmatprep.subr.bf16.mxu0 0
        %679 = vmatpush1.bf16.xpose.msra.mxu0 0
        %680 = vmatprep.subr.bf16.mxu0 0
        %681 = vmatpush1.bf16.xpose.msra.mxu0 0
        %682 = vmatprep.subr.bf16.mxu0 0
        %683 = vmatpush1.bf16.xpose.msra.mxu0 0
        %684 = vmatprep.subr.bf16.mxu0 0
        %685 = vmatpush1.bf16.xpose.msra.mxu0 0
        %686 = vmatprep.subr.bf16.mxu0 0
        %687 = vmatpush1.bf16.xpose.msra.mxu0 0
        %688 = vmatprep.mubr.bf16.mxu0 0
        %689 = vmatmul.mubr.bf16.gmra.mrb[0].mxu0 %v654
        %v690 = vpop.f32.mrb[0].mxu0
        %v691 = vadd.f32 0.0, %v690
        %v692 = vpop.f32.mrb[0].mxu0
        %v693 = vpop.f32.mrb[0].mxu0
        %v694 = vadd.f32 0.0, %v693
        %v695 = vpop.f32.mrb[0].mxu0
        %696 = vdwg.mxu0
        %v697 = vsel %vm625, %v691, -inf
        %698 = vmax.xlane.f32.xlu0 %v697
        %v699 = vpop.xlane.xlu0 %698
        %v700 = vsel %vm629, %v694, -inf
        %701 = vmax.xlane.f32.xlu0 %v700
        %v702 = vpop.xlane.xlu0 %701
        %v703 = vsub.f32 %v691, %v699
        %v704 = vsub.f32 %v694, %v702
        %v705 = vmul.f32 %v703, 1.442695
        %v706 = vpow.pop %v705
        %v707 = vmul.f32 %v704, 1.442695
        %v708 = vpow.pop %v707
        %v709 = vsel %vm625, %v706, 0.0
        %710 = vadd.xlane.f32.xlu0 %v709
        %v711 = vpop.xlane.xlu0 %710
        %v712 = vsel %vm629, %v708, 0.0
        %713 = vadd.xlane.f32.xlu0 %v712
        %v714 = vpop.xlane.xlu0 %713
        %v715 = vrcp.pop %v711
        %v716 = vrcp.pop %v714
        %v717 = vmul.f32 %v706, %v715
        %v718 = vmul.f32 %v708, %v716
        %v719 = vpack.c.bf16 %v718, %v717
        %720 = vrot.lane.b32.xlu0 %v580, 48
        %v721 = vpop.permute.xlu0 %720
        %v723 = vsel %vm625, %v719, 0
        %vm725 = vcmask 1044480
        %v727 = vsel %vm725, %v721, 0
        %729 = vmatprep.subr.bf16.mxu0 0
        %730 = vmatpush1.bf16.msra.mxu0 %v727
        %731 = vmatprep.subr.bf16.mxu0 0
        %732 = vmatpush1.bf16.msra.mxu0 0
        %733 = vmatprep.subr.bf16.mxu0 0
        %734 = vmatpush1.bf16.msra.mxu0 0
        %735 = vmatprep.subr.bf16.mxu0 0
        %736 = vmatpush1.bf16.msra.mxu0 0
        %737 = vmatprep.subr.bf16.mxu0 0
        %738 = vmatpush1.bf16.msra.mxu0 0
        %739 = vmatprep.subr.bf16.mxu0 0
        %740 = vmatpush1.bf16.msra.mxu0 0
        %741 = vmatprep.subr.bf16.mxu0 0
        %742 = vmatpush1.bf16.msra.mxu0 0
        %743 = vmatprep.subr.bf16.mxu0 0
        %744 = vmatpush1.bf16.msra.mxu0 0
        %745 = vmatprep.subr.bf16.mxu0 0
        %746 = vmatpush1.bf16.msra.mxu0 0
        %747 = vmatprep.subr.bf16.mxu0 0
        %748 = vmatpush1.bf16.msra.mxu0 0
        %749 = vmatprep.subr.bf16.mxu0 0
        %750 = vmatpush1.bf16.msra.mxu0 0
        %751 = vmatprep.subr.bf16.mxu0 0
        %752 = vmatpush1.bf16.msra.mxu0 0
        %753 = vmatprep.subr.bf16.mxu0 0
        %754 = vmatpush1.bf16.msra.mxu0 0
        %755 = vmatprep.subr.bf16.mxu0 0
        %756 = vmatpush1.bf16.msra.mxu0 0
        %757 = vmatprep.subr.bf16.mxu0 0
        %758 = vmatpush1.bf16.msra.mxu0 0
        %759 = vmatprep.subr.bf16.mxu0 0
        %760 = vmatpush1.bf16.msra.mxu0 0
        %761 = vmatprep.mubr.bf16.mxu0 0
        %762 = vmatmul.mubr.bf16.gmra.mrb[0].mxu0 %v723
        %v763 = vpop.f32.mrb[0].mxu0
        %v764 = vadd.f32 0.0, %v763
        %v765 = vpop.f32.mrb[0].mxu0
        %v766 = vpop.f32.mrb[0].mxu0
        %v767 = vadd.f32 0.0, %v766
        %v768 = vpop.f32.mrb[0].mxu0
        %769 = vdwg.mxu0
        %770 = vrot.lane.b32.xlu0 %v580, 64
        %v771 = vpop.permute.xlu0 %770
        %v773 = vsel %vm625, %v649, 0
        %v776 = vsel %vm725, %v771, 0
        %778 = vmatprep.subr.bf16.mxu0 0
        %779 = vmatpush1.bf16.msra.mxu0 %v776
        %780 = vmatprep.subr.bf16.mxu0 0
        %781 = vmatpush1.bf16.msra.mxu0 0
        %782 = vmatprep.subr.bf16.mxu0 0
        %783 = vmatpush1.bf16.msra.mxu0 0
        %784 = vmatprep.subr.bf16.mxu0 0
        %785 = vmatpush1.bf16.msra.mxu0 0
        %786 = vmatprep.subr.bf16.mxu0 0
        %787 = vmatpush1.bf16.msra.mxu0 0
        %788 = vmatprep.subr.bf16.mxu0 0
        %789 = vmatpush1.bf16.msra.mxu0 0
        %790 = vmatprep.subr.bf16.mxu0 0
        %791 = vmatpush1.bf16.msra.mxu0 0
        %792 = vmatprep.subr.bf16.mxu0 0
        %793 = vmatpush1.bf16.msra.mxu0 0
        %794 = vmatprep.subr.bf16.mxu0 0
        %795 = vmatpush1.bf16.msra.mxu0 0
        %796 = vmatprep.subr.bf16.mxu0 0
        %797 = vmatpush1.bf16.msra.mxu0 0
        %798 = vmatprep.subr.bf16.mxu0 0
        %799 = vmatpush1.bf16.msra.mxu0 0
        %800 = vmatprep.subr.bf16.mxu0 0
        %801 = vmatpush1.bf16.msra.mxu0 0
        %802 = vmatprep.subr.bf16.mxu0 0
        %803 = vmatpush1.bf16.msra.mxu0 0
        %804 = vmatprep.subr.bf16.mxu0 0
        %805 = vmatpush1.bf16.msra.mxu0 0
        %806 = vmatprep.subr.bf16.mxu0 0
        %807 = vmatpush1.bf16.msra.mxu0 0
        %808 = vmatprep.subr.bf16.mxu0 0
        %809 = vmatpush1.bf16.msra.mxu0 0
        %810 = vmatprep.mubr.bf16.mxu0 0
        %811 = vmatmul.mubr.bf16.gmra.mrb[0].mxu0 %v773
        %v812 = vpop.f32.mrb[0].mxu0
        %v813 = vadd.f32 %v764, %v812
        %v814 = vpop.f32.mrb[0].mxu0
        %v815 = vpop.f32.mrb[0].mxu0
        %v816 = vadd.f32 %v767, %v815
        %v817 = vpop.f32.mrb[0].mxu0
        %818 = vdwg.mxu0
        %819 = vrot.lane.b32.xlu0 %v580, 96
        %v820 = vpop.permute.xlu0 %819
        %v822 = vsel %vm535, %v820, 0
        %824 = vmatprep.subr.bf16.mxu0 0
        %825 = vmatpush1.bf16.xpose.msra.mxu0 %v537
        %826 = vmatprep.subr.bf16.mxu0 0
        %827 = vmatpush1.bf16.xpose.msra.mxu0 0
        %828 = vmatprep.subr.bf16.mxu0 0
        %829 = vmatpush1.bf16.xpose.msra.mxu0 0
        %830 = vmatprep.subr.bf16.mxu0 0
        %831 = vmatpush1.bf16.xpose.msra.mxu0 0
        %832 = vmatprep.subr.bf16.mxu0 0
        %833 = vmatpush1.bf16.xpose.msra.mxu0 0
        %834 = vmatprep.subr.bf16.mxu0 0
        %835 = vmatpush1.bf16.xpose.msra.mxu0 0
        %836 = vmatprep.subr.bf16.mxu0 0
        %837 = vmatpush1.bf16.xpose.msra.mxu0 0
        %838 = vmatprep.subr.bf16.mxu0 0
        %839 = vmatpush1.bf16.xpose.msra.mxu0 0
        %840 = vmatprep.subr.bf16.mxu0 0
        %841 = vmatpush1.bf16.xpose.msra.mxu0 0
        %842 = vmatprep.subr.bf16.mxu0 0
        %843 = vmatpush1.bf16.xpose.msra.mxu0 0
        %844 = vmatprep.subr.bf16.mxu0 0
        %845 = vmatpush1.bf16.xpose.msra.mxu0 0
        %846 = vmatprep.subr.bf16.mxu0 0
        %847 = vmatpush1.bf16.xpose.msra.mxu0 0
        %848 = vmatprep.subr.bf16.mxu0 0
        %849 = vmatpush1.bf16.xpose.msra.mxu0 0
        %850 = vmatprep.subr.bf16.mxu0 0
        %851 = vmatpush1.bf16.xpose.msra.mxu0 0
        %852 = vmatprep.subr.bf16.mxu0 0
        %853 = vmatpush1.bf16.xpose.msra.mxu0 0
        %854 = vmatprep.subr.bf16.mxu0 0
        %855 = vmatpush1.bf16.xpose.msra.mxu0 0
        %856 = vmatprep.mubr.bf16.mxu0 0
        %857 = vmatmul.mubr.bf16.gmra.mrb[0].mxu0 %v822
        %v858 = vpop.f32.mrb[0].mxu0
        %v859 = vadd.f32 0.0, %v858
        %v860 = vpop.f32.mrb[0].mxu0
        %v861 = vpop.f32.mrb[0].mxu0
        %v862 = vadd.f32 0.0, %v861
        %v863 = vpop.f32.mrb[0].mxu0
        %864 = vdwg.mxu0
        %v865 = vsel %vm625, %v859, -inf
        %866 = vmax.xlane.f32.xlu0 %v865
        %v867 = vpop.xlane.xlu0 %866
        %v868 = vsel %vm629, %v862, -inf
        %869 = vmax.xlane.f32.xlu0 %v868
        %v870 = vpop.xlane.xlu0 %869
        %v871 = vsub.f32 %v859, %v867
        %v872 = vsub.f32 %v862, %v870
        %v873 = vmul.f32 %v871, 1.442695
        %v874 = vpow.pop %v873
        %v875 = vmul.f32 %v872, 1.442695
        %v876 = vpow.pop %v875
        %v877 = vsel %vm625, %v874, 0.0
        %878 = vadd.xlane.f32.xlu0 %v877
        %v879 = vpop.xlane.xlu0 %878
        %v880 = vsel %vm629, %v876, 0.0
        %881 = vadd.xlane.f32.xlu0 %v880
        %v882 = vpop.xlane.xlu0 %881
        %v883 = vrcp.pop %v879
        %v884 = vrcp.pop %v882
        %v885 = vmul.f32 %v874, %v883
        %v886 = vmul.f32 %v876, %v884
        %v887 = vpack.c.bf16 %v886, %v885
        %888 = vrot.lane.b32.xlu0 %v580, 32
        %v889 = vpop.permute.xlu0 %888
        %v891 = vsel %vm625, %v887, 0
        %v894 = vsel %vm725, %v889, 0
        %896 = vmatprep.subr.bf16.mxu0 0
        %897 = vmatpush1.bf16.msra.mxu0 %v894
        %898 = vmatprep.subr.bf16.mxu0 0
        %899 = vmatpush1.bf16.msra.mxu0 0
        %900 = vmatprep.subr.bf16.mxu0 0
        %901 = vmatpush1.bf16.msra.mxu0 0
        %902 = vmatprep.subr.bf16.mxu0 0
        %903 = vmatpush1.bf16.msra.mxu0 0
        %904 = vmatprep.subr.bf16.mxu0 0
        %905 = vmatpush1.bf16.msra.mxu0 0
        %906 = vmatprep.subr.bf16.mxu0 0
        %907 = vmatpush1.bf16.msra.mxu0 0
        %908 = vmatprep.subr.bf16.mxu0 0
        %909 = vmatpush1.bf16.msra.mxu0 0
        %910 = vmatprep.subr.bf16.mxu0 0
        %911 = vmatpush1.bf16.msra.mxu0 0
        %912 = vmatprep.subr.bf16.mxu0 0
        %913 = vmatpush1.bf16.msra.mxu0 0
        %914 = vmatprep.subr.bf16.mxu0 0
        %915 = vmatpush1.bf16.msra.mxu0 0
        %916 = vmatprep.subr.bf16.mxu0 0
        %917 = vmatpush1.bf16.msra.mxu0 0
        %918 = vmatprep.subr.bf16.mxu0 0
        %919 = vmatpush1.bf16.msra.mxu0 0
        %920 = vmatprep.subr.bf16.mxu0 0
        %921 = vmatpush1.bf16.msra.mxu0 0
        %922 = vmatprep.subr.bf16.mxu0 0
        %923 = vmatpush1.bf16.msra.mxu0 0
        %924 = vmatprep.subr.bf16.mxu0 0
        %925 = vmatpush1.bf16.msra.mxu0 0
        %926 = vmatprep.subr.bf16.mxu0 0
        %927 = vmatpush1.bf16.msra.mxu0 0
        %928 = vmatprep.mubr.bf16.mxu0 0
        %929 = vmatmul.mubr.bf16.gmra.mrb[0].mxu0 %v891
        %v930 = vpop.f32.mrb[0].mxu0
        %v931 = vadd.f32 0.0, %v930
        %v932 = vpop.f32.mrb[0].mxu0
        %v933 = vpop.f32.mrb[0].mxu0
        %v934 = vadd.f32 0.0, %v933
        %v935 = vpop.f32.mrb[0].mxu0
        %936 = vdwg.mxu0
        %v937 = vadd.f32 %v813, %v931
        %v938 = vadd.f32 %v816, %v934
        %939 = vrot.lane.b32.xlu0 %v580, 80
        %v940 = vpop.permute.xlu0 %939
        %v942 = vsel %vm535, %v940, 0
        %944 = vmatprep.subr.bf16.mxu0 0
        %945 = vmatpush1.bf16.xpose.msra.mxu0 %v537
        %946 = vmatprep.subr.bf16.mxu0 0
        %947 = vmatpush1.bf16.xpose.msra.mxu0 0
        %948 = vmatprep.subr.bf16.mxu0 0
        %949 = vmatpush1.bf16.xpose.msra.mxu0 0
        %950 = vmatprep.subr.bf16.mxu0 0
        %951 = vmatpush1.bf16.xpose.msra.mxu0 0
        %952 = vmatprep.subr.bf16.mxu0 0
        %953 = vmatpush1.bf16.xpose.msra.mxu0 0
        %954 = vmatprep.subr.bf16.mxu0 0
        %955 = vmatpush1.bf16.xpose.msra.mxu0 0
        %956 = vmatprep.subr.bf16.mxu0 0
        %957 = vmatpush1.bf16.xpose.msra.mxu0 0
        %958 = vmatprep.subr.bf16.mxu0 0
        %959 = vmatpush1.bf16.xpose.msra.mxu0 0
        %960 = vmatprep.subr.bf16.mxu0 0
        %961 = vmatpush1.bf16.xpose.msra.mxu0 0
        %962 = vmatprep.subr.bf16.mxu0 0
        %963 = vmatpush1.bf16.xpose.msra.mxu0 0
        %964 = vmatprep.subr.bf16.mxu0 0
        %965 = vmatpush1.bf16.xpose.msra.mxu0 0
        %966 = vmatprep.subr.bf16.mxu0 0
        %967 = vmatpush1.bf16.xpose.msra.mxu0 0
        %968 = vmatprep.subr.bf16.mxu0 0
        %969 = vmatpush1.bf16.xpose.msra.mxu0 0
        %970 = vmatprep.subr.bf16.mxu0 0
        %971 = vmatpush1.bf16.xpose.msra.mxu0 0
        %972 = vmatprep.subr.bf16.mxu0 0
        %973 = vmatpush1.bf16.xpose.msra.mxu0 0
        %974 = vmatprep.subr.bf16.mxu0 0
        %975 = vmatpush1.bf16.xpose.msra.mxu0 0
        %976 = vmatprep.mubr.bf16.mxu0 0
        %977 = vmatmul.mubr.bf16.gmra.mrb[0].mxu0 %v942
        %v978 = vpop.f32.mrb[0].mxu0
        %v979 = vadd.f32 0.0, %v978
        %v980 = vpop.f32.mrb[0].mxu0
        %v981 = vpop.f32.mrb[0].mxu0
        %v982 = vadd.f32 0.0, %v981
        %v983 = vpop.f32.mrb[0].mxu0
        %984 = vdwg.mxu0
        %v985 = vsel %vm625, %v979, -inf
        %986 = vmax.xlane.f32.xlu0 %v985
        %v987 = vpop.xlane.xlu0 %986
        %v988 = vsel %vm629, %v982, -inf
        %989 = vmax.xlane.f32.xlu0 %v988
        %v990 = vpop.xlane.xlu0 %989
        %v991 = vsub.f32 %v979, %v987
        %v992 = vsub.f32 %v982, %v990
        %v993 = vmul.f32 %v991, 1.442695
        %v994 = vpow.pop %v993
        %v995 = vmul.f32 %v992, 1.442695
        %v996 = vpow.pop %v995
        %v997 = vsel %vm625, %v994, 0.0
        %998 = vadd.xlane.f32.xlu0 %v997
        %v999 = vpop.xlane.xlu0 %998
        %v1000 = vsel %vm629, %v996, 0.0
        %1001 = vadd.xlane.f32.xlu0 %v1000
        %v1002 = vpop.xlane.xlu0 %1001
        %v1003 = vrcp.pop %v999
        %v1004 = vrcp.pop %v1002
        %v1005 = vmul.f32 %v994, %v1003
        %v1006 = vmul.f32 %v996, %v1004
        %v1007 = vpack.c.bf16 %v1006, %v1005
        %1008 = vrot.lane.b32.xlu0 %v580, 16
        %v1009 = vpop.permute.xlu0 %1008
        %v1011 = vsel %vm625, %v1007, 0
        %v1014 = vsel %vm725, %v1009, 0
        %1016 = vmatprep.subr.bf16.mxu0 0
        %1017 = vmatpush1.bf16.msra.mxu0 %v1014
        %1018 = vmatprep.subr.bf16.mxu0 0
        %1019 = vmatpush1.bf16.msra.mxu0 0
        %1020 = vmatprep.subr.bf16.mxu0 0
        %1021 = vmatpush1.bf16.msra.mxu0 0
        %1022 = vmatprep.subr.bf16.mxu0 0
        %1023 = vmatpush1.bf16.msra.mxu0 0
        %1024 = vmatprep.subr.bf16.mxu0 0
        %1025 = vmatpush1.bf16.msra.mxu0 0
        %1026 = vmatprep.subr.bf16.mxu0 0
        %1027 = vmatpush1.bf16.msra.mxu0 0
        %1028 = vmatprep.subr.bf16.mxu0 0
        %1029 = vmatpush1.bf16.msra.mxu0 0
        %1030 = vmatprep.subr.bf16.mxu0 0
        %1031 = vmatpush1.bf16.msra.mxu0 0
        %1032 = vmatprep.subr.bf16.mxu0 0
        %1033 = vmatpush1.bf16.msra.mxu0 0
        %1034 = vmatprep.subr.bf16.mxu0 0
        %1035 = vmatpush1.bf16.msra.mxu0 0
        %1036 = vmatprep.subr.bf16.mxu0 0
        %1037 = vmatpush1.bf16.msra.mxu0 0
        %1038 = vmatprep.subr.bf16.mxu0 0
        %1039 = vmatpush1.bf16.msra.mxu0 0
        %1040 = vmatprep.subr.bf16.mxu0 0
        %1041 = vmatpush1.bf16.msra.mxu0 0
        %1042 = vmatprep.subr.bf16.mxu0 0
        %1043 = vmatpush1.bf16.msra.mxu0 0
        %1044 = vmatprep.subr.bf16.mxu0 0
        %1045 = vmatpush1.bf16.msra.mxu0 0
        %1046 = vmatprep.subr.bf16.mxu0 0
        %1047 = vmatpush1.bf16.msra.mxu0 0
        %1048 = vmatprep.mubr.bf16.mxu0 0
        %1049 = vmatmul.mubr.bf16.gmra.mrb[0].mxu0 %v1011
        %v1050 = vpop.f32.mrb[0].mxu0
        %v1051 = vadd.f32 0.0, %v1050
        %v1052 = vpop.f32.mrb[0].mxu0
        %v1053 = vpop.f32.mrb[0].mxu0
        %v1054 = vadd.f32 0.0, %v1053
        %v1055 = vpop.f32.mrb[0].mxu0
        %1056 = vdwg.mxu0
        %v1057 = vadd.f32 %v937, %v1051
        %v1058 = vadd.f32 %v938, %v1054
        %v1059 = vlaneseq
        %v1060 = vshrl.u32 %v1059, 7
        %v1061 = vsub.s32 2, %v1060
        %v1062 = vrot.slane %v441, %v1061
        %v1063 = vadd.f32 %v1057, %v1062
        %v1064 = vadd.f32 %v1058, %v1062
        %v1065 = vadd.f32 %v1063, %v524
        %v1066 = vadd.f32 %v1064, %v525
        %v1067 = vsel %vm535, %v1065, 0.0
        %1068 = vadd.xlane.f32.xlu0 %v1067
        %v1069 = vpop.xlane.xlu0 %1068
        %vm1070 = vcmask 123904
        %v1071 = vsel %vm1070, %v1066, 0.0
        %1072 = vadd.xlane.f32.xlu0 %v1071
        %v1073 = vpop.xlane.xlu0 %1072
        %v1074 = vrcp.pop 16.0
        %v1075 = vmul.f32 %v1069, %v1074
        %v1076 = vmul.f32 %v1073, %v1074
        %v1077 = vsub.f32 %v1065, %v1075
        %v1078 = vsub.f32 %v1066, %v1076
        %v1079 = vmul.f32 %v1077, %v1077
        %v1080 = vmul.f32 %v1078, %v1078
        %v1081 = vsel %vm535, %v1079, 0.0
        %1082 = vadd.xlane.f32.xlu0 %v1081
        %v1083 = vpop.xlane.xlu0 %1082
        %v1084 = vsel %vm1070, %v1080, 0.0
        %1085 = vadd.xlane.f32.xlu0 %v1084
        %v1086 = vpop.xlane.xlu0 %1085
        %v1087 = vmul.f32 %v1083, %v1074
        %v1088 = vmul.f32 %v1086, %v1074
        %v1089 = vadd.f32 %v1087, 1e-05
        %v1090 = vadd.f32 %v1088, 1e-05
        %v1091 = vrsqrt.pop %v1089
        %v1092 = vrsqrt.pop %v1090
        %v1093 = vmul.f32 %v1077, %v1091
        %v1094 = vmul.f32 %v1078, %v1092
        %v1095 = vlaneseq
        %v1096 = vshrl.u32 %v1095, 7
        %v1097 = vsub.s32 3, %v1096
        %v1098 = vrot.slane %v441, %v1097
        %v1099 = vmul.f32 %v1093, %v1098
        %v1100 = vmul.f32 %v1094, %v1098
        %v1101 = vlaneseq
        %v1102 = vshrl.u32 %v1101, 7
        %v1103 = vsub.s32 4, %v1102
        %v1104 = vrot.slane %v441, %v1103
        %v1105 = vadd.f32 %v1099, %v1104
        %v1106 = vadd.f32 %v1100, %v1104
        %v1107 = vpack.c.bf16 %v1106, %v1105
        %v1108 = vld [vmem:[%s3] sm:$0xff]
        %v1109 = vld [vmem:[%s3 + $0x8] sm:$0xff]
        %v1110 = vld [vmem:[%s3 + $0x10] sm:$0xff]
        %v1111 = vld [vmem:[%s3 + $0x18] sm:$0xff]
        %v1112 = vlaneseq
        %v1113 = vshrl.u32 %v1112, 7
        %v1114 = vsub.s32 2, %v1113
        %v1115 = vrot.slane %v442, %v1114
        %v1116 = vlaneseq
        %v1117 = vshrl.u32 %v1116, 7
        %v1118 = vsub.s32 2, %v1117
        %v1119 = vrot.slane %v443, %v1118
        %v1120 = vlaneseq
        %v1121 = vshrl.u32 %v1120, 7
        %v1122 = vsub.s32 2, %v1121
        %v1123 = vrot.slane %v444, %v1122
        %v1124 = vlaneseq
        %v1125 = vshrl.u32 %v1124, 7
        %v1126 = vsub.s32 2, %v1125
        %v1127 = vrot.slane %v445, %v1126
        %v1132 = vunpack.c.l.b16 %v1108
        %v1133 = vunpack.c.h.b16 %v1108
        %v1134 = vunpack.c.l.b16 %v1109
        %v1135 = vunpack.c.h.b16 %v1109
        %v1136 = vunpack.c.l.b16 %v1110
        %v1137 = vunpack.c.h.b16 %v1110
        %v1138 = vunpack.c.l.b16 %v1111
        %v1139 = vunpack.c.h.b16 %v1111
        %v1140 = vpack.c.b16 %v1136, %v1132
        %v1141 = vpack.c.b16 %v1137, %v1133
        %v1142 = vpack.c.b16 %v1138, %v1134
        %v1143 = vpack.c.b16 %v1139, %v1135
        %v1149 = vsel %vm535, %v1107, 0
        %1151 = vmatprep.subr.bf16.mxu0 %v1141
        %1152 = vmatpush1.bf16.msra.mxu0 %v1140
        %1153 = vmatprep.subr.bf16.mxu0 0
        %1154 = vmatpush1.bf16.msra.mxu0 0
        %1155 = vmatprep.subr.bf16.mxu0 0
        %1156 = vmatpush1.bf16.msra.mxu0 0
        %1157 = vmatprep.subr.bf16.mxu0 0
        %1158 = vmatpush1.bf16.msra.mxu0 0
        %1159 = vmatprep.subr.bf16.mxu0 0
        %1160 = vmatpush1.bf16.msra.mxu0 0
        %1161 = vmatprep.subr.bf16.mxu0 0
        %1162 = vmatpush1.bf16.msra.mxu0 0
        %1163 = vmatprep.subr.bf16.mxu0 0
        %1164 = vmatpush1.bf16.msra.mxu0 0
        %1165 = vmatprep.subr.bf16.mxu0 0
        %1166 = vmatpush1.bf16.msra.mxu0 0
        %1167 = vmatprep.subr.bf16.mxu0 0
        %1168 = vmatpush1.bf16.msra.mxu0 0
        %1169 = vmatprep.subr.bf16.mxu0 0
        %1170 = vmatpush1.bf16.msra.mxu0 0
        %1171 = vmatprep.subr.bf16.mxu0 0
        %1172 = vmatpush1.bf16.msra.mxu0 0
        %1173 = vmatprep.subr.bf16.mxu0 0
        %1174 = vmatpush1.bf16.msra.mxu0 0
        %1175 = vmatprep.subr.bf16.mxu0 0
        %1176 = vmatpush1.bf16.msra.mxu0 0
        %1177 = vmatprep.subr.bf16.mxu0 0
        %1178 = vmatpush1.bf16.msra.mxu0 0
        %1179 = vmatprep.subr.bf16.mxu0 0
        %1180 = vmatpush1.bf16.msra.mxu0 0
        %1181 = vmatprep.subr.bf16.mxu0 0
        %1182 = vmatpush1.bf16.msra.mxu0 0
        %1183 = vmatprep.mubr.bf16.mxu0 0
        %1184 = vmatmul.mubr.bf16.gmra.mrb[0].mxu0 %v1149
        %v1185 = vpop.f32.mrb[0].mxu0
        %v1186 = vadd.f32 %v1115, %v1185
        %v1187 = vpop.f32.mrb[0].mxu0
        %v1188 = vadd.f32 %v1119, %v1187
        %v1189 = vpop.f32.mrb[0].mxu0
        %v1190 = vadd.f32 %v1115, %v1189
        %v1191 = vpop.f32.mrb[0].mxu0
        %v1192 = vadd.f32 %v1119, %v1191
        %1193 = vdwg.mxu0
        %1194 = vmatprep.subr.bf16.mxu0 %v1143
        %1195 = vmatpush1.bf16.msra.mxu0 %v1142
        %1196 = vmatprep.subr.bf16.mxu0 0
        %1197 = vmatpush1.bf16.msra.mxu0 0
        %1198 = vmatprep.subr.bf16.mxu0 0
        %1199 = vmatpush1.bf16.msra.mxu0 0
        %1200 = vmatprep.subr.bf16.mxu0 0
        %1201 = vmatpush1.bf16.msra.mxu0 0
        %1202 = vmatprep.subr.bf16.mxu0 0
        %1203 = vmatpush1.bf16.msra.mxu0 0
        %1204 = vmatprep.subr.bf16.mxu0 0
        %1205 = vmatpush1.bf16.msra.mxu0 0
        %1206 = vmatprep.subr.bf16.mxu0 0
        %1207 = vmatpush1.bf16.msra.mxu0 0
        %1208 = vmatprep.subr.bf16.mxu0 0
        %1209 = vmatpush1.bf16.msra.mxu0 0
        %1210 = vmatprep.subr.bf16.mxu0 0
        %1211 = vmatpush1.bf16.msra.mxu0 0
        %1212 = vmatprep.subr.bf16.mxu0 0
        %1213 = vmatpush1.bf16.msra.mxu0 0
        %1214 = vmatprep.subr.bf16.mxu0 0
        %1215 = vmatpush1.bf16.msra.mxu0 0
        %1216 = vmatprep.subr.bf16.mxu0 0
        %1217 = vmatpush1.bf16.msra.mxu0 0
        %1218 = vmatprep.subr.bf16.mxu0 0
        %1219 = vmatpush1.bf16.msra.mxu0 0
        %1220 = vmatprep.subr.bf16.mxu0 0
        %1221 = vmatpush1.bf16.msra.mxu0 0
        %1222 = vmatprep.subr.bf16.mxu0 0
        %1223 = vmatpush1.bf16.msra.mxu0 0
        %1224 = vmatprep.subr.bf16.mxu0 0
        %1225 = vmatpush1.bf16.msra.mxu0 0
        %1226 = vmatprep.mubr.bf16.mxu0 0
        %1227 = vmatmul.mubr.bf16.gmra.mrb[0].mxu0 %v1149
        %v1228 = vpop.f32.mrb[0].mxu0
        %v1229 = vadd.f32 %v1123, %v1228
        %v1230 = vpop.f32.mrb[0].mxu0
        %v1231 = vadd.f32 %v1127, %v1230
        %v1232 = vpop.f32.mrb[0].mxu0
        %v1233 = vadd.f32 %v1123, %v1232
        %v1234 = vpop.f32.mrb[0].mxu0
        %v1235 = vadd.f32 %v1127, %v1234
        %1236 = vdwg.mxu0
        %v1237 = vmax.f32 %v1186, 0.0
        %v1238 = vmax.f32 %v1188, 0.0
        %v1239 = vmax.f32 %v1229, 0.0
        %v1240 = vmax.f32 %v1231, 0.0
        %v1241 = vmax.f32 %v1190, 0.0
        %v1242 = vmax.f32 %v1192, 0.0
        %v1243 = vmax.f32 %v1233, 0.0
        %v1244 = vmax.f32 %v1235, 0.0
        %v1245 = vpack.c.bf16 %v1241, %v1237
        %v1246 = vpack.c.bf16 %v1242, %v1238
        %v1247 = vpack.c.bf16 %v1243, %v1239
        %v1248 = vpack.c.bf16 %v1244, %v1240
        %v1249 = vld [vmem:[%s4] sm:$0xf]
        %v1250 = vld [vmem:[%s4 + $0x4] sm:$0xf]
        %v1251 = vld [vmem:[%s4 + $0x8] sm:$0xf]
        %v1252 = vld [vmem:[%s4 + $0xc] sm:$0xf]
        %v1253 = vld [vmem:[%s4 + $0x10] sm:$0xf]
        %v1254 = vld [vmem:[%s4 + $0x14] sm:$0xf]
        %v1255 = vld [vmem:[%s4 + $0x18] sm:$0xf]
        %v1256 = vld [vmem:[%s4 + $0x1c] sm:$0xf]
        %v1257 = vld [vmem:[%s4 + $0x20] sm:$0xf]
        %v1258 = vld [vmem:[%s4 + $0x24] sm:$0xf]
        %v1259 = vld [vmem:[%s4 + $0x28] sm:$0xf]
        %v1260 = vld [vmem:[%s4 + $0x2c] sm:$0xf]
        %v1261 = vld [vmem:[%s4 + $0x30] sm:$0xf]
        %v1262 = vld [vmem:[%s4 + $0x34] sm:$0xf]
        %v1263 = vld [vmem:[%s4 + $0x38] sm:$0xf]
        %v1264 = vld [vmem:[%s4 + $0x3c] sm:$0xf]
        %v1265 = vld [vmem:[%s4 + $0x40] sm:$0xf]
        %v1266 = vld [vmem:[%s4 + $0x44] sm:$0xf]
        %v1267 = vld [vmem:[%s4 + $0x48] sm:$0xf]
        %v1268 = vld [vmem:[%s4 + $0x4c] sm:$0xf]
        %v1269 = vld [vmem:[%s4 + $0x50] sm:$0xf]
        %v1270 = vld [vmem:[%s4 + $0x54] sm:$0xf]
        %v1271 = vld [vmem:[%s4 + $0x58] sm:$0xf]
        %v1272 = vld [vmem:[%s4 + $0x5c] sm:$0xf]
        %v1273 = vld [vmem:[%s4 + $0x60] sm:$0xf]
        %v1274 = vld [vmem:[%s4 + $0x64] sm:$0xf]
        %v1275 = vld [vmem:[%s4 + $0x68] sm:$0xf]
        %v1276 = vld [vmem:[%s4 + $0x6c] sm:$0xf]
        %v1277 = vld [vmem:[%s4 + $0x70] sm:$0xf]
        %v1278 = vld [vmem:[%s4 + $0x74] sm:$0xf]
        %v1279 = vld [vmem:[%s4 + $0x78] sm:$0xf]
        %v1280 = vld [vmem:[%s4 + $0x7c] sm:$0xf]
        %v1281 = vld [vmem:[%s4 + $0x80] sm:$0xf]
        %v1282 = vld [vmem:[%s4 + $0x84] sm:$0xf]
        %v1283 = vld [vmem:[%s4 + $0x88] sm:$0xf]
        %v1284 = vld [vmem:[%s4 + $0x8c] sm:$0xf]
        %v1285 = vld [vmem:[%s4 + $0x90] sm:$0xf]
        %v1286 = vld [vmem:[%s4 + $0x94] sm:$0xf]
        %v1287 = vld [vmem:[%s4 + $0x98] sm:$0xf]
        %v1288 = vld [vmem:[%s4 + $0x9c] sm:$0xf]
        %v1289 = vld [vmem:[%s4 + $0xa0] sm:$0xf]
        %v1290 = vld [vmem:[%s4 + $0xa4] sm:$0xf]
        %v1291 = vld [vmem:[%s4 + $0xa8] sm:$0xf]
        %v1292 = vld [vmem:[%s4 + $0xac] sm:$0xf]
        %v1293 = vld [vmem:[%s4 + $0xb0] sm:$0xf]
        %v1294 = vld [vmem:[%s4 + $0xb4] sm:$0xf]
        %v1295 = vld [vmem:[%s4 + $0xb8] sm:$0xf]
        %v1296 = vld [vmem:[%s4 + $0xbc] sm:$0xf]
        %v1297 = vld [vmem:[%s4 + $0xc0] sm:$0xf]
        %v1298 = vld [vmem:[%s4 + $0xc4] sm:$0xf]
        %v1299 = vld [vmem:[%s4 + $0xc8] sm:$0xf]
        %v1300 = vld [vmem:[%s4 + $0xcc] sm:$0xf]
        %v1301 = vld [vmem:[%s4 + $0xd0] sm:$0xf]
        %v1302 = vld [vmem:[%s4 + $0xd4] sm:$0xf]
        %v1303 = vld [vmem:[%s4 + $0xd8] sm:$0xf]
        %v1304 = vld [vmem:[%s4 + $0xdc] sm:$0xf]
        %v1305 = vld [vmem:[%s4 + $0xe0] sm:$0xf]
        %v1306 = vld [vmem:[%s4 + $0xe4] sm:$0xf]
        %v1307 = vld [vmem:[%s4 + $0xe8] sm:$0xf]
        %v1308 = vld [vmem:[%s4 + $0xec] sm:$0xf]
        %v1309 = vld [vmem:[%s4 + $0xf0] sm:$0xf]
        %v1310 = vld [vmem:[%s4 + $0xf4] sm:$0xf]
        %v1311 = vld [vmem:[%s4 + $0xf8] sm:$0xf]
        %v1312 = vld [vmem:[%s4 + $0xfc] sm:$0xf]
        %v1313 = vlaneseq
        %v1314 = vshrl.u32 %v1313, 7
        %v1315 = vsub.s32 5, %v1314
        %v1316 = vrot.slane %v441, %v1315
        %v1381 = vunpack.c.l.b16 %v1249
        %v1382 = vunpack.c.l.b16 %v1250
        %v1383 = vunpack.c.l.b16 %v1251
        %v1384 = vunpack.c.l.b16 %v1252
        %v1385 = vunpack.c.l.b16 %v1253
        %v1386 = vunpack.c.l.b16 %v1254
        %v1387 = vunpack.c.l.b16 %v1255
        %v1388 = vunpack.c.l.b16 %v1256
        %v1389 = vunpack.c.l.b16 %v1257
        %v1390 = vunpack.c.l.b16 %v1258
        %v1391 = vunpack.c.l.b16 %v1259
        %v1392 = vunpack.c.l.b16 %v1260
        %v1393 = vunpack.c.l.b16 %v1261
        %v1394 = vunpack.c.l.b16 %v1262
        %v1395 = vunpack.c.l.b16 %v1263
        %v1396 = vunpack.c.l.b16 %v1264
        %v1397 = vunpack.c.l.b16 %v1265
        %v1398 = vunpack.c.l.b16 %v1266
        %v1399 = vunpack.c.l.b16 %v1267
        %v1400 = vunpack.c.l.b16 %v1268
        %v1401 = vunpack.c.l.b16 %v1269
        %v1402 = vunpack.c.l.b16 %v1270
        %v1403 = vunpack.c.l.b16 %v1271
        %v1404 = vunpack.c.l.b16 %v1272
        %v1405 = vunpack.c.l.b16 %v1273
        %v1406 = vunpack.c.l.b16 %v1274
        %v1407 = vunpack.c.l.b16 %v1275
        %v1408 = vunpack.c.l.b16 %v1276
        %v1409 = vunpack.c.l.b16 %v1277
        %v1410 = vunpack.c.l.b16 %v1278
        %v1411 = vunpack.c.l.b16 %v1279
        %v1412 = vunpack.c.l.b16 %v1280
        %v1413 = vunpack.c.l.b16 %v1281
        %v1414 = vunpack.c.l.b16 %v1282
        %v1415 = vunpack.c.l.b16 %v1283
        %v1416 = vunpack.c.l.b16 %v1284
        %v1417 = vunpack.c.l.b16 %v1285
        %v1418 = vunpack.c.l.b16 %v1286
        %v1419 = vunpack.c.l.b16 %v1287
        %v1420 = vunpack.c.l.b16 %v1288
        %v1421 = vunpack.c.l.b16 %v1289
        %v1422 = vunpack.c.l.b16 %v1290
        %v1423 = vunpack.c.l.b16 %v1291
        %v1424 = vunpack.c.l.b16 %v1292
        %v1425 = vunpack.c.l.b16 %v1293
        %v1426 = vunpack.c.l.b16 %v1294
        %v1427 = vunpack.c.l.b16 %v1295
        %v1428 = vunpack.c.l.b16 %v1296
        %v1429 = vunpack.c.l.b16 %v1297
        %v1430 = vunpack.c.l.b16 %v1298
        %v1431 = vunpack.c.l.b16 %v1299
        %v1432 = vunpack.c.l.b16 %v1300
        %v1433 = vunpack.c.l.b16 %v1301
        %v1434 = vunpack.c.l.b16 %v1302
        %v1435 = vunpack.c.l.b16 %v1303
        %v1436 = vunpack.c.l.b16 %v1304
        %v1437 = vunpack.c.l.b16 %v1305
        %v1438 = vunpack.c.l.b16 %v1306
        %v1439 = vunpack.c.l.b16 %v1307
        %v1440 = vunpack.c.l.b16 %v1308
        %v1441 = vunpack.c.l.b16 %v1309
        %v1442 = vunpack.c.l.b16 %v1310
        %v1443 = vunpack.c.l.b16 %v1311
        %v1444 = vunpack.c.l.b16 %v1312
        %v1445 = vpack.c.b16 %v1382, %v1381
        %v1446 = vpack.c.b16 %v1384, %v1383
        %v1447 = vpack.c.b16 %v1386, %v1385
        %v1448 = vpack.c.b16 %v1388, %v1387
        %v1449 = vpack.c.b16 %v1390, %v1389
        %v1450 = vpack.c.b16 %v1392, %v1391
        %v1451 = vpack.c.b16 %v1394, %v1393
        %v1452 = vpack.c.b16 %v1396, %v1395
        %v1453 = vpack.c.b16 %v1398, %v1397
        %v1454 = vpack.c.b16 %v1400, %v1399
        %v1455 = vpack.c.b16 %v1402, %v1401
        %v1456 = vpack.c.b16 %v1404, %v1403
        %v1457 = vpack.c.b16 %v1406, %v1405
        %v1458 = vpack.c.b16 %v1408, %v1407
        %v1459 = vpack.c.b16 %v1410, %v1409
        %v1460 = vpack.c.b16 %v1412, %v1411
        %v1461 = vpack.c.b16 %v1414, %v1413
        %v1462 = vpack.c.b16 %v1416, %v1415
        %v1463 = vpack.c.b16 %v1418, %v1417
        %v1464 = vpack.c.b16 %v1420, %v1419
        %v1465 = vpack.c.b16 %v1422, %v1421
        %v1466 = vpack.c.b16 %v1424, %v1423
        %v1467 = vpack.c.b16 %v1426, %v1425
        %v1468 = vpack.c.b16 %v1428, %v1427
        %v1469 = vpack.c.b16 %v1430, %v1429
        %v1470 = vpack.c.b16 %v1432, %v1431
        %v1471 = vpack.c.b16 %v1434, %v1433
        %v1472 = vpack.c.b16 %v1436, %v1435
        %v1473 = vpack.c.b16 %v1438, %v1437
        %v1474 = vpack.c.b16 %v1440, %v1439
        %v1475 = vpack.c.b16 %v1442, %v1441
        %v1476 = vpack.c.b16 %v1444, %v1443
        %1509 = vmatprep.subr.bf16.mxu0 0
        %1510 = vmatpush1.bf16.msra.mxu0 %v1445
        %1511 = vmatprep.subr.bf16.mxu0 0
        %1512 = vmatpush1.bf16.msra.mxu0 %v1446
        %1513 = vmatprep.subr.bf16.mxu0 0
        %1514 = vmatpush1.bf16.msra.mxu0 %v1447
        %1515 = vmatprep.subr.bf16.mxu0 0
        %1516 = vmatpush1.bf16.msra.mxu0 %v1448
        %1517 = vmatprep.subr.bf16.mxu0 0
        %1518 = vmatpush1.bf16.msra.mxu0 %v1449
        %1519 = vmatprep.subr.bf16.mxu0 0
        %1520 = vmatpush1.bf16.msra.mxu0 %v1450
        %1521 = vmatprep.subr.bf16.mxu0 0
        %1522 = vmatpush1.bf16.msra.mxu0 %v1451
        %1523 = vmatprep.subr.bf16.mxu0 0
        %1524 = vmatpush1.bf16.msra.mxu0 %v1452
        %1525 = vmatprep.subr.bf16.mxu0 0
        %1526 = vmatpush1.bf16.msra.mxu0 %v1453
        %1527 = vmatprep.subr.bf16.mxu0 0
        %1528 = vmatpush1.bf16.msra.mxu0 %v1454
        %1529 = vmatprep.subr.bf16.mxu0 0
        %1530 = vmatpush1.bf16.msra.mxu0 %v1455
        %1531 = vmatprep.subr.bf16.mxu0 0
        %1532 = vmatpush1.bf16.msra.mxu0 %v1456
        %1533 = vmatprep.subr.bf16.mxu0 0
        %1534 = vmatpush1.bf16.msra.mxu0 %v1457
        %1535 = vmatprep.subr.bf16.mxu0 0
        %1536 = vmatpush1.bf16.msra.mxu0 %v1458
        %1537 = vmatprep.subr.bf16.mxu0 0
        %1538 = vmatpush1.bf16.msra.mxu0 %v1459
        %1539 = vmatprep.subr.bf16.mxu0 0
        %1540 = vmatpush1.bf16.msra.mxu0 %v1460
        %1541 = vmatprep.mubr.bf16.mxu0 %v1246
        %1542 = vmatmul.mubr.bf16.gmra.mrb[0].mxu0 %v1245
        %v1543 = vpop.f32.mrb[0].mxu0
        %v1544 = vadd.f32 %v1316, %v1543
        %v1545 = vpop.f32.mrb[0].mxu0
        %v1546 = vpop.f32.mrb[0].mxu0
        %v1547 = vadd.f32 %v1316, %v1546
        %v1548 = vpop.f32.mrb[0].mxu0
        %1549 = vdwg.mxu0
        %1550 = vmatprep.subr.bf16.mxu0 0
        %1551 = vmatpush1.bf16.msra.mxu0 %v1461
        %1552 = vmatprep.subr.bf16.mxu0 0
        %1553 = vmatpush1.bf16.msra.mxu0 %v1462
        %1554 = vmatprep.subr.bf16.mxu0 0
        %1555 = vmatpush1.bf16.msra.mxu0 %v1463
        %1556 = vmatprep.subr.bf16.mxu0 0
        %1557 = vmatpush1.bf16.msra.mxu0 %v1464
        %1558 = vmatprep.subr.bf16.mxu0 0
        %1559 = vmatpush1.bf16.msra.mxu0 %v1465
        %1560 = vmatprep.subr.bf16.mxu0 0
        %1561 = vmatpush1.bf16.msra.mxu0 %v1466
        %1562 = vmatprep.subr.bf16.mxu0 0
        %1563 = vmatpush1.bf16.msra.mxu0 %v1467
        %1564 = vmatprep.subr.bf16.mxu0 0
        %1565 = vmatpush1.bf16.msra.mxu0 %v1468
        %1566 = vmatprep.subr.bf16.mxu0 0
        %1567 = vmatpush1.bf16.msra.mxu0 %v1469
        %1568 = vmatprep.subr.bf16.mxu0 0
        %1569 = vmatpush1.bf16.msra.mxu0 %v1470
        %1570 = vmatprep.subr.bf16.mxu0 0
        %1571 = vmatpush1.bf16.msra.mxu0 %v1471
        %1572 = vmatprep.subr.bf16.mxu0 0
        %1573 = vmatpush1.bf16.msra.mxu0 %v1472
        %1574 = vmatprep.subr.bf16.mxu0 0
        %1575 = vmatpush1.bf16.msra.mxu0 %v1473
        %1576 = vmatprep.subr.bf16.mxu0 0
        %1577 = vmatpush1.bf16.msra.mxu0 %v1474
        %1578 = vmatprep.subr.bf16.mxu0 0
        %1579 = vmatpush1.bf16.msra.mxu0 %v1475
        %1580 = vmatprep.subr.bf16.mxu0 0
        %1581 = vmatpush1.bf16.msra.mxu0 %v1476
        %1582 = vmatprep.mubr.bf16.mxu0 %v1248
        %1583 = vmatmul.mubr.bf16.gmra.mrb[0].mxu0 %v1247
        %v1584 = vpop.f32.mrb[0].mxu0
        %v1585 = vadd.f32 %v1544, %v1584
        %v1586 = vpop.f32.mrb[0].mxu0
        %v1587 = vpop.f32.mrb[0].mxu0
        %v1588 = vadd.f32 %v1547, %v1587
        %v1589 = vpop.f32.mrb[0].mxu0
        %1590 = vdwg.mxu0
        %v1591 = vadd.f32 %v1585, %v1105
        %v1592 = vadd.f32 %v1588, %v1106
        %v1593 = vsel %vm535, %v1591, 0.0
        %1594 = vadd.xlane.f32.xlu0 %v1593
        %v1595 = vpop.xlane.xlu0 %1594
        %v1596 = vsel %vm1070, %v1592, 0.0
        %1597 = vadd.xlane.f32.xlu0 %v1596
        %v1598 = vpop.xlane.xlu0 %1597
        %v1599 = vmul.f32 %v1595, %v1074
        %v1600 = vmul.f32 %v1598, %v1074
        %v1601 = vsub.f32 %v1591, %v1599
        %v1602 = vsub.f32 %v1592, %v1600
        %v1603 = vmul.f32 %v1601, %v1601
        %v1604 = vmul.f32 %v1602, %v1602
        %v1605 = vsel %vm535, %v1603, 0.0
        %1606 = vadd.xlane.f32.xlu0 %v1605
        %v1607 = vpop.xlane.xlu0 %1606
        %v1608 = vsel %vm1070, %v1604, 0.0
        %1609 = vadd.xlane.f32.xlu0 %v1608
        %v1610 = vpop.xlane.xlu0 %1609
        %v1611 = vmul.f32 %v1607, %v1074
        %v1612 = vmul.f32 %v1610, %v1074
        %v1613 = vadd.f32 %v1611, 1e-05
        %v1614 = vadd.f32 %v1612, 1e-05
        %v1615 = vrsqrt.pop %v1613
        %v1616 = vrsqrt.pop %v1614
        %v1617 = vmul.f32 %v1601, %v1615
        %v1618 = vmul.f32 %v1602, %v1616
        %v1619 = vlaneseq
        %v1620 = vshrl.u32 %v1619, 7
        %v1621 = vsub.s32 6, %v1620
        %v1622 = vrot.slane %v441, %v1621
        %v1623 = vmul.f32 %v1617, %v1622
        %v1624 = vmul.f32 %v1618, %v1622
        %v1625 = vlaneseq
        %v1626 = vshrl.u32 %v1625, 7
        %v1627 = vsub.s32 7, %v1626
        %v1628 = vrot.slane %v441, %v1627
        %v1629 = vadd.f32 %v1623, %v1628
        %v1630 = vadd.f32 %v1624, %v1628
        %v1631 = vlaneseq
        %v1632 = vshrl.u32 %v1631, 7
        %v1633 = vsub.s32 0, %v1632
        %v1634 = vrot.slane %v442, %v1633
        %v1635 = vmul.f32 %v1629, %v1634
        %v1636 = vmul.f32 %v1630, %v1634
        %v1637 = vlaneseq
        %v1638 = vshrl.u32 %v1637, 7
        %v1639 = vsub.s32 1, %v1638
        %v1640 = vrot.slane %v442, %v1639
        %v1641 = vadd.f32 %v1635, %v1640
        %v1642 = vadd.f32 %v1636, %v1640
        %v1643 = vmax.f32 %v1641, 0.0
        %v1644 = vmax.f32 %v1642, 0.0
        %v1647 = vrot.slane %v1643, 6
        %v1648 = vrot.slane %v1644, 6
        %v1649 = vsel %vm467, %v1647, %v1648
        %v1652 = vsel %vm467, 0.0, %v1647
        %vm1653 = vcmask 1043456
        %v1654 = vsel %vm1653, %v1649, 0.0
        %v1656 = vrot.slane %v1652, 1
        %1657 = vrot.lane.b32.xlu0 %v1656, 16
        %v1658 = vpop.permute.xlu0 %1657
        %v1660 = vrot.slane %v1652, 2
        %1661 = vrot.lane.b32.xlu0 %v1660, 32
        %v1662 = vpop.permute.xlu0 %1661
        %v1664 = vrot.slane %v1652, 3
        %1665 = vrot.lane.b32.xlu0 %v1664, 48
        %v1666 = vpop.permute.xlu0 %1665
        %v1668 = vrot.slane %v1652, 4
        %1669 = vrot.lane.b32.xlu0 %v1668, 64
        %v1670 = vpop.permute.xlu0 %1669
        %v1672 = vsel %vm535, %v1652, %v1658
        %vm1673 = vcmask 261120
        %v1674 = vsel %vm1673, %v1672, %v1662
        %vm1675 = vcmask 392192
        %v1676 = vsel %vm1675, %v1674, %v1666
        %vm1677 = vcmask 523264
        %v1678 = vsel %vm1677, %v1676, %v1670
        %v1680 = vrot.slane %v1654, 3
        %1681 = vrot.lane.b32.xlu0 %v1680, 48
        %v1682 = vpop.permute.xlu0 %1681
        %v1684 = vrot.slane %v1654, 4
        %1685 = vrot.lane.b32.xlu0 %v1684, 64
        %v1686 = vpop.permute.xlu0 %1685
        %v1688 = vsel %vm1675, %v1674, %v1682
        %v1689 = vsel %vm1677, %v1688, %v1686
        %v1691 = vrot.slane %v1689, 4
        %vm1693 = vcmask 1040384
        %v1694 = vsel %vm1693, %v1678, %v1691
        %v1695 = vpack.c.bf16 %v1694, %v1694
        %v1696 = vld [vmem:[%s10] sm:$0xff]
        %v1697 = vld [vmem:[%s10 + $0x20] sm:$0x7]
        %v1698 = vld [vmem:[%s10 + $0x28] sm:$0x7]
        %v1699 = vld [vmem:[%s10 + $0x30] sm:$0x7]
        %v1700 = vld [vmem:[%s10 + $0x38] sm:$0x7]
        %v1701 = vld [vmem:[%s6] sm:$0xf]
        %v1702 = vld [vmem:[%s6 + $0x4] sm:$0xf]
        %v1703 = vld [vmem:[%s6 + $0x8] sm:$0xf]
        %v1704 = vld [vmem:[%s6 + $0xc] sm:$0xf]
        %v1705 = vld [vmem:[%s6 + $0x10] sm:$0xf]
        %v1706 = vld [vmem:[%s6 + $0x14] sm:$0xf]
        %v1707 = vld [vmem:[%s6 + $0x18] sm:$0xf]
        %v1708 = vld [vmem:[%s6 + $0x1c] sm:$0xf]
        %v1709 = vld [vmem:[%s6 + $0x20] sm:$0xf]
        %v1710 = vld [vmem:[%s6 + $0x24] sm:$0xf]
        %v1721 = vunpack.c.l.b16 %v1701
        %v1722 = vunpack.c.l.b16 %v1702
        %v1723 = vunpack.c.l.b16 %v1703
        %v1724 = vunpack.c.l.b16 %v1704
        %v1725 = vunpack.c.l.b16 %v1705
        %v1726 = vunpack.c.l.b16 %v1706
        %v1727 = vunpack.c.l.b16 %v1707
        %v1728 = vunpack.c.l.b16 %v1708
        %v1729 = vunpack.c.l.b16 %v1709
        %v1730 = vunpack.c.l.b16 %v1710
        %v1731 = vpack.c.b16 %v1722, %v1721
        %v1732 = vpack.c.b16 %v1724, %v1723
        %v1733 = vpack.c.b16 %v1726, %v1725
        %v1734 = vpack.c.b16 %v1728, %v1727
        %v1735 = vpack.c.b16 %v1730, %v1729
        %vm1741 = vcmask 654336
        %v1743 = vsel %vm1741, %v1695, 0
        %1745 = vmatprep.subr.bf16.mxu0 0
        %1746 = vmatpush1.bf16.msra.mxu0 %v1731
        %1747 = vmatprep.subr.bf16.mxu0 0
        %1748 = vmatpush1.bf16.msra.mxu0 %v1732
        %1749 = vmatprep.subr.bf16.mxu0 0
        %1750 = vmatpush1.bf16.msra.mxu0 %v1733
        %1751 = vmatprep.subr.bf16.mxu0 0
        %1752 = vmatpush1.bf16.msra.mxu0 %v1734
        %1753 = vmatprep.subr.bf16.mxu0 0
        %1754 = vmatpush1.bf16.msra.mxu0 %v1735
        %1755 = vmatprep.subr.bf16.mxu0 0
        %1756 = vmatpush1.bf16.msra.mxu0 0
        %1757 = vmatprep.subr.bf16.mxu0 0
        %1758 = vmatpush1.bf16.msra.mxu0 0
        %1759 = vmatprep.subr.bf16.mxu0 0
        %1760 = vmatpush1.bf16.msra.mxu0 0
        %1761 = vmatprep.subr.bf16.mxu0 0
        %1762 = vmatpush1.bf16.msra.mxu0 0
        %1763 = vmatprep.subr.bf16.mxu0 0
        %1764 = vmatpush1.bf16.msra.mxu0 0
        %1765 = vmatprep.subr.bf16.mxu0 0
        %1766 = vmatpush1.bf16.msra.mxu0 0
        %1767 = vmatprep.subr.bf16.mxu0 0
        %1768 = vmatpush1.bf16.msra.mxu0 0
        %1769 = vmatprep.subr.bf16.mxu0 0
        %1770 = vmatpush1.bf16.msra.mxu0 0
        %1771 = vmatprep.subr.bf16.mxu0 0
        %1772 = vmatpush1.bf16.msra.mxu0 0
        %1773 = vmatprep.subr.bf16.mxu0 0
        %1774 = vmatpush1.bf16.msra.mxu0 0
        %1775 = vmatprep.subr.bf16.mxu0 0
        %1776 = vmatpush1.bf16.msra.mxu0 0
        %1777 = vmatprep.mubr.bf16.mxu0 0
        %1778 = vmatmul.mubr.bf16.gmra.mrb[0].mxu0 %v1743
        %v1779 = vpop.f32.mrb[0].mxu0
        %v1780 = vadd.f32 0.0, %v1779
        %v1781 = vpop.f32.mrb[0].mxu0
        %v1782 = vpop.f32.mrb[0].mxu0
        %v1783 = vpop.f32.mrb[0].mxu0
        %1784 = vdwg.mxu0
        %v1785 = vlaneseq
        %v1786 = vshrl.u32 %v1785, 7
        %v1787 = vsub.s32 0, %v1786
        %v1788 = vrot.slane %v1696, %v1787
        %v1789 = vmul.f32 %v1780, %v1788
        %v1790 = vlaneseq
        %v1791 = vshrl.u32 %v1790, 7
        %v1792 = vsub.s32 1, %v1791
        %v1793 = vrot.slane %v1696, %v1792
        %v1794 = vadd.f32 %v1789, %v1793
        %v1795 = vmax.f32 %v1794, 0.0
        %v1796 = vpack.c.bf16 %v1795, %v1795
        %v1797 = vld [vmem:[%s7] sm:$0xff]
        %v1798 = vld [vmem:[%s7 + $0x8] sm:$0xff]
        %v1799 = vld [vmem:[%s7 + $0x10] sm:$0xff]
        %v1800 = vld [vmem:[%s7 + $0x18] sm:$0xff]
        %v1805 = vunpack.c.l.b16 %v1797
        %v1806 = vunpack.c.h.b16 %v1797
        %v1807 = vunpack.c.l.b16 %v1798
        %v1808 = vunpack.c.h.b16 %v1798
        %v1809 = vunpack.c.l.b16 %v1799
        %v1810 = vunpack.c.h.b16 %v1799
        %v1811 = vunpack.c.l.b16 %v1800
        %v1812 = vunpack.c.h.b16 %v1800
        %v1813 = vpack.c.b16 %v1807, %v1805
        %v1814 = vpack.c.b16 %v1808, %v1806
        %v1815 = vpack.c.b16 %v1811, %v1809
        %v1816 = vpack.c.b16 %v1812, %v1810
        %v1822 = vsel %vm1673, %v1796, 0
        %1824 = vmatprep.subr.bf16.mxu0 %v1814
        %1825 = vmatpush1.bf16.msra.mxu0 %v1813
        %1826 = vmatprep.subr.bf16.mxu0 %v1816
        %1827 = vmatpush1.bf16.msra.mxu0 %v1815
        %1828 = vmatprep.subr.bf16.mxu0 0
        %1829 = vmatpush1.bf16.msra.mxu0 0
        %1830 = vmatprep.subr.bf16.mxu0 0
        %1831 = vmatpush1.bf16.msra.mxu0 0
        %1832 = vmatprep.subr.bf16.mxu0 0
        %1833 = vmatpush1.bf16.msra.mxu0 0
        %1834 = vmatprep.subr.bf16.mxu0 0
        %1835 = vmatpush1.bf16.msra.mxu0 0
        %1836 = vmatprep.subr.bf16.mxu0 0
        %1837 = vmatpush1.bf16.msra.mxu0 0
        %1838 = vmatprep.subr.bf16.mxu0 0
        %1839 = vmatpush1.bf16.msra.mxu0 0
        %1840 = vmatprep.subr.bf16.mxu0 0
        %1841 = vmatpush1.bf16.msra.mxu0 0
        %1842 = vmatprep.subr.bf16.mxu0 0
        %1843 = vmatpush1.bf16.msra.mxu0 0
        %1844 = vmatprep.subr.bf16.mxu0 0
        %1845 = vmatpush1.bf16.msra.mxu0 0
        %1846 = vmatprep.subr.bf16.mxu0 0
        %1847 = vmatpush1.bf16.msra.mxu0 0
        %1848 = vmatprep.subr.bf16.mxu0 0
        %1849 = vmatpush1.bf16.msra.mxu0 0
        %1850 = vmatprep.subr.bf16.mxu0 0
        %1851 = vmatpush1.bf16.msra.mxu0 0
        %1852 = vmatprep.subr.bf16.mxu0 0
        %1853 = vmatpush1.bf16.msra.mxu0 0
        %1854 = vmatprep.subr.bf16.mxu0 0
        %1855 = vmatpush1.bf16.msra.mxu0 0
        %1856 = vmatprep.mubr.bf16.mxu0 0
        %1857 = vmatmul.mubr.bf16.gmra.mrb[0].mxu0 %v1822
        %v1858 = vpop.f32.mrb[0].mxu0
        %v1859 = vadd.f32 0.0, %v1858
        %v1860 = vpop.f32.mrb[0].mxu0
        %v1861 = vadd.f32 0.0, %v1860
        %v1862 = vpop.f32.mrb[0].mxu0
        %v1863 = vpop.f32.mrb[0].mxu0
        %1864 = vdwg.mxu0
        %v1865 = vpack.c.bf16 %v1859, %v1859
        %v1866 = vpack.c.bf16 %v1861, %v1861
        %v1868 = vsel %vm1673, %v1865, 0
        %1870 = vmatprep.subr.bf16.mxu0 0
        %1871 = vmatpush1.bf16.xpose.msra.mxu0 %v1822
        %1872 = vmatprep.subr.bf16.mxu0 0
        %1873 = vmatpush1.bf16.xpose.msra.mxu0 0
        %1874 = vmatprep.subr.bf16.mxu0 0
        %1875 = vmatpush1.bf16.xpose.msra.mxu0 0
        %1876 = vmatprep.subr.bf16.mxu0 0
        %1877 = vmatpush1.bf16.xpose.msra.mxu0 0
        %1878 = vmatprep.subr.bf16.mxu0 0
        %1879 = vmatpush1.bf16.xpose.msra.mxu0 0
        %1880 = vmatprep.subr.bf16.mxu0 0
        %1881 = vmatpush1.bf16.xpose.msra.mxu0 0
        %1882 = vmatprep.subr.bf16.mxu0 0
        %1883 = vmatpush1.bf16.xpose.msra.mxu0 0
        %1884 = vmatprep.subr.bf16.mxu0 0
        %1885 = vmatpush1.bf16.xpose.msra.mxu0 0
        %1886 = vmatprep.subr.bf16.mxu0 0
        %1887 = vmatpush1.bf16.xpose.msra.mxu0 0
        %1888 = vmatprep.subr.bf16.mxu0 0
        %1889 = vmatpush1.bf16.xpose.msra.mxu0 0
        %1890 = vmatprep.subr.bf16.mxu0 0
        %1891 = vmatpush1.bf16.xpose.msra.mxu0 0
        %1892 = vmatprep.subr.bf16.mxu0 0
        %1893 = vmatpush1.bf16.xpose.msra.mxu0 0
        %1894 = vmatprep.subr.bf16.mxu0 0
        %1895 = vmatpush1.bf16.xpose.msra.mxu0 0
        %1896 = vmatprep.subr.bf16.mxu0 0
        %1897 = vmatpush1.bf16.xpose.msra.mxu0 0
        %1898 = vmatprep.subr.bf16.mxu0 0
        %1899 = vmatpush1.bf16.xpose.msra.mxu0 0
        %1900 = vmatprep.subr.bf16.mxu0 0
        %1901 = vmatpush1.bf16.xpose.msra.mxu0 0
        %1902 = vmatprep.mubr.bf16.mxu0 0
        %1903 = vmatmul.mubr.bf16.gmra.mrb[0].mxu0 %v1868
        %v1904 = vpop.f32.mrb[0].mxu0
        %v1905 = vadd.f32 0.0, %v1904
        %v1906 = vpop.f32.mrb[0].mxu0
        %v1907 = vpop.f32.mrb[0].mxu0
        %v1908 = vpop.f32.mrb[0].mxu0
        %1909 = vdwg.mxu0
        %vm1910 = vcmask 9216
        %v1911 = vsel %vm1910, %v1905, -inf
        %1912 = vmax.xlane.f32.xlu0 %v1911
        %v1913 = vpop.xlane.xlu0 %1912
        %v1914 = vsub.f32 %v1905, %v1913
        %v1915 = vmul.f32 %v1914, 1.442695
        %v1916 = vpow.pop %v1915
        %v1917 = vsel %vm1910, %v1916, 0.0
        %1918 = vadd.xlane.f32.xlu0 %v1917
        %v1919 = vpop.xlane.xlu0 %1918
        %v1920 = vrcp.pop %v1919
        %v1921 = vmul.f32 %v1916, %v1920
        %v1922 = vpack.c.bf16 %v1921, %v1921
        %1924 = vrot.lane.b32.xlu0 %v1865, 96
        %v1925 = vpop.permute.xlu0 %1924
        %v1927 = vsel %vm1673, %v1925, 0
        %1929 = vmatprep.subr.bf16.mxu0 0
        %1930 = vmatpush1.bf16.xpose.msra.mxu0 %v1822
        %1931 = vmatprep.subr.bf16.mxu0 0
        %1932 = vmatpush1.bf16.xpose.msra.mxu0 0
        %1933 = vmatprep.subr.bf16.mxu0 0
        %1934 = vmatpush1.bf16.xpose.msra.mxu0 0
        %1935 = vmatprep.subr.bf16.mxu0 0
        %1936 = vmatpush1.bf16.xpose.msra.mxu0 0
        %1937 = vmatprep.subr.bf16.mxu0 0
        %1938 = vmatpush1.bf16.xpose.msra.mxu0 0
        %1939 = vmatprep.subr.bf16.mxu0 0
        %1940 = vmatpush1.bf16.xpose.msra.mxu0 0
        %1941 = vmatprep.subr.bf16.mxu0 0
        %1942 = vmatpush1.bf16.xpose.msra.mxu0 0
        %1943 = vmatprep.subr.bf16.mxu0 0
        %1944 = vmatpush1.bf16.xpose.msra.mxu0 0
        %1945 = vmatprep.subr.bf16.mxu0 0
        %1946 = vmatpush1.bf16.xpose.msra.mxu0 0
        %1947 = vmatprep.subr.bf16.mxu0 0
        %1948 = vmatpush1.bf16.xpose.msra.mxu0 0
        %1949 = vmatprep.subr.bf16.mxu0 0
        %1950 = vmatpush1.bf16.xpose.msra.mxu0 0
        %1951 = vmatprep.subr.bf16.mxu0 0
        %1952 = vmatpush1.bf16.xpose.msra.mxu0 0
        %1953 = vmatprep.subr.bf16.mxu0 0
        %1954 = vmatpush1.bf16.xpose.msra.mxu0 0
        %1955 = vmatprep.subr.bf16.mxu0 0
        %1956 = vmatpush1.bf16.xpose.msra.mxu0 0
        %1957 = vmatprep.subr.bf16.mxu0 0
        %1958 = vmatpush1.bf16.xpose.msra.mxu0 0
        %1959 = vmatprep.subr.bf16.mxu0 0
        %1960 = vmatpush1.bf16.xpose.msra.mxu0 0
        %1961 = vmatprep.mubr.bf16.mxu0 0
        %1962 = vmatmul.mubr.bf16.gmra.mrb[0].mxu0 %v1927
        %v1963 = vpop.f32.mrb[0].mxu0
        %v1964 = vadd.f32 0.0, %v1963
        %v1965 = vpop.f32.mrb[0].mxu0
        %v1966 = vpop.f32.mrb[0].mxu0
        %v1967 = vpop.f32.mrb[0].mxu0
        %1968 = vdwg.mxu0
        %v1969 = vsel %vm1910, %v1964, -inf
        %1970 = vmax.xlane.f32.xlu0 %v1969
        %v1971 = vpop.xlane.xlu0 %1970
        %v1972 = vsub.f32 %v1964, %v1971
        %v1973 = vmul.f32 %v1972, 1.442695
        %v1974 = vpow.pop %v1973
        %v1975 = vsel %vm1910, %v1974, 0.0
        %1976 = vadd.xlane.f32.xlu0 %v1975
        %v1977 = vpop.xlane.xlu0 %1976
        %v1978 = vrcp.pop %v1977
        %v1979 = vmul.f32 %v1974, %v1978
        %v1980 = vpack.c.bf16 %v1979, %v1979
        %1982 = vrot.lane.b32.xlu0 %v1866, 96
        %v1983 = vpop.permute.xlu0 %1982
        %vm1984 = vcmask 15360
        %v1986 = vsel %vm1984, %v1980, 0
        %v1989 = vsel %vm1693, %v1983, 0
        %1991 = vmatprep.subr.bf16.mxu0 0
        %1992 = vmatpush1.bf16.msra.mxu0 %v1989
        %1993 = vmatprep.subr.bf16.mxu0 0
        %1994 = vmatpush1.bf16.msra.mxu0 0
        %1995 = vmatprep.subr.bf16.mxu0 0
        %1996 = vmatpush1.bf16.msra.mxu0 0
        %1997 = vmatprep.subr.bf16.mxu0 0
        %1998 = vmatpush1.bf16.msra.mxu0 0
        %1999 = vmatprep.subr.bf16.mxu0 0
        %2000 = vmatpush1.bf16.msra.mxu0 0
        %2001 = vmatprep.subr.bf16.mxu0 0
        %2002 = vmatpush1.bf16.msra.mxu0 0
        %2003 = vmatprep.subr.bf16.mxu0 0
        %2004 = vmatpush1.bf16.msra.mxu0 0
        %2005 = vmatprep.subr.bf16.mxu0 0
        %2006 = vmatpush1.bf16.msra.mxu0 0
        %2007 = vmatprep.subr.bf16.mxu0 0
        %2008 = vmatpush1.bf16.msra.mxu0 0
        %2009 = vmatprep.subr.bf16.mxu0 0
        %2010 = vmatpush1.bf16.msra.mxu0 0
        %2011 = vmatprep.subr.bf16.mxu0 0
        %2012 = vmatpush1.bf16.msra.mxu0 0
        %2013 = vmatprep.subr.bf16.mxu0 0
        %2014 = vmatpush1.bf16.msra.mxu0 0
        %2015 = vmatprep.subr.bf16.mxu0 0
        %2016 = vmatpush1.bf16.msra.mxu0 0
        %2017 = vmatprep.subr.bf16.mxu0 0
        %2018 = vmatpush1.bf16.msra.mxu0 0
        %2019 = vmatprep.subr.bf16.mxu0 0
        %2020 = vmatpush1.bf16.msra.mxu0 0
        %2021 = vmatprep.subr.bf16.mxu0 0
        %2022 = vmatpush1.bf16.msra.mxu0 0
        %2023 = vmatprep.mubr.bf16.mxu0 0
        %2024 = vmatmul.mubr.bf16.gmra.mrb[0].mxu0 %v1986
        %v2025 = vpop.f32.mrb[0].mxu0
        %v2026 = vadd.f32 0.0, %v2025
        %v2027 = vpop.f32.mrb[0].mxu0
        %v2028 = vpop.f32.mrb[0].mxu0
        %v2029 = vpop.f32.mrb[0].mxu0
        %2030 = vdwg.mxu0
        %v2032 = vsel %vm1984, %v1922, 0
        %v2035 = vsel %vm1693, %v1866, 0
        %2037 = vmatprep.subr.bf16.mxu0 0
        %2038 = vmatpush1.bf16.msra.mxu0 %v2035
        %2039 = vmatprep.subr.bf16.mxu0 0
        %2040 = vmatpush1.bf16.msra.mxu0 0
        %2041 = vmatprep.subr.bf16.mxu0 0
        %2042 = vmatpush1.bf16.msra.mxu0 0
        %2043 = vmatprep.subr.bf16.mxu0 0
        %2044 = vmatpush1.bf16.msra.mxu0 0
        %2045 = vmatprep.subr.bf16.mxu0 0
        %2046 = vmatpush1.bf16.msra.mxu0 0
        %2047 = vmatprep.subr.bf16.mxu0 0
        %2048 = vmatpush1.bf16.msra.mxu0 0
        %2049 = vmatprep.subr.bf16.mxu0 0
        %2050 = vmatpush1.bf16.msra.mxu0 0
        %2051 = vmatprep.subr.bf16.mxu0 0
        %2052 = vmatpush1.bf16.msra.mxu0 0
        %2053 = vmatprep.subr.bf16.mxu0 0
        %2054 = vmatpush1.bf16.msra.mxu0 0
        %2055 = vmatprep.subr.bf16.mxu0 0
        %2056 = vmatpush1.bf16.msra.mxu0 0
        %2057 = vmatprep.subr.bf16.mxu0 0
        %2058 = vmatpush1.bf16.msra.mxu0 0
        %2059 = vmatprep.subr.bf16.mxu0 0
        %2060 = vmatpush1.bf16.msra.mxu0 0
        %2061 = vmatprep.subr.bf16.mxu0 0
        %2062 = vmatpush1.bf16.msra.mxu0 0
        %2063 = vmatprep.subr.bf16.mxu0 0
        %2064 = vmatpush1.bf16.msra.mxu0 0
        %2065 = vmatprep.subr.bf16.mxu0 0
        %2066 = vmatpush1.bf16.msra.mxu0 0
        %2067 = vmatprep.subr.bf16.mxu0 0
        %2068 = vmatpush1.bf16.msra.mxu0 0
        %2069 = vmatprep.mubr.bf16.mxu0 0
        %2070 = vmatmul.mubr.bf16.gmra.mrb[0].mxu0 %v2032
        %v2071 = vpop.f32.mrb[0].mxu0
        %v2072 = vadd.f32 %v2026, %v2071
        %v2073 = vpop.f32.mrb[0].mxu0
        %v2074 = vpop.f32.mrb[0].mxu0
        %v2075 = vpop.f32.mrb[0].mxu0
        %2076 = vdwg.mxu0
        %2077 = vrot.lane.b32.xlu0 %v1865, 64
        %v2078 = vpop.permute.xlu0 %2077
        %v2080 = vsel %vm1673, %v2078, 0
        %2082 = vmatprep.subr.bf16.mxu0 0
        %2083 = vmatpush1.bf16.xpose.msra.mxu0 %v1822
        %2084 = vmatprep.subr.bf16.mxu0 0
        %2085 = vmatpush1.bf16.xpose.msra.mxu0 0
        %2086 = vmatprep.subr.bf16.mxu0 0
        %2087 = vmatpush1.bf16.xpose.msra.mxu0 0
        %2088 = vmatprep.subr.bf16.mxu0 0
        %2089 = vmatpush1.bf16.xpose.msra.mxu0 0
        %2090 = vmatprep.subr.bf16.mxu0 0
        %2091 = vmatpush1.bf16.xpose.msra.mxu0 0
        %2092 = vmatprep.subr.bf16.mxu0 0
        %2093 = vmatpush1.bf16.xpose.msra.mxu0 0
        %2094 = vmatprep.subr.bf16.mxu0 0
        %2095 = vmatpush1.bf16.xpose.msra.mxu0 0
        %2096 = vmatprep.subr.bf16.mxu0 0
        %2097 = vmatpush1.bf16.xpose.msra.mxu0 0
        %2098 = vmatprep.subr.bf16.mxu0 0
        %2099 = vmatpush1.bf16.xpose.msra.mxu0 0
        %2100 = vmatprep.subr.bf16.mxu0 0
        %2101 = vmatpush1.bf16.xpose.msra.mxu0 0
        %2102 = vmatprep.subr.bf16.mxu0 0
        %2103 = vmatpush1.bf16.xpose.msra.mxu0 0
        %2104 = vmatprep.subr.bf16.mxu0 0
        %2105 = vmatpush1.bf16.xpose.msra.mxu0 0
        %2106 = vmatprep.subr.bf16.mxu0 0
        %2107 = vmatpush1.bf16.xpose.msra.mxu0 0
        %2108 = vmatprep.subr.bf16.mxu0 0
        %2109 = vmatpush1.bf16.xpose.msra.mxu0 0
        %2110 = vmatprep.subr.bf16.mxu0 0
        %2111 = vmatpush1.bf16.xpose.msra.mxu0 0
        %2112 = vmatprep.subr.bf16.mxu0 0
        %2113 = vmatpush1.bf16.xpose.msra.mxu0 0
        %2114 = vmatprep.mubr.bf16.mxu0 0
        %2115 = vmatmul.mubr.bf16.gmra.mrb[0].mxu0 %v2080
        %v2116 = vpop.f32.mrb[0].mxu0
        %v2117 = vadd.f32 0.0, %v2116
        %v2118 = vpop.f32.mrb[0].mxu0
        %v2119 = vpop.f32.mrb[0].mxu0
        %v2120 = vpop.f32.mrb[0].mxu0
        %2121 = vdwg.mxu0
        %v2122 = vsel %vm1910, %v2117, -inf
        %2123 = vmax.xlane.f32.xlu0 %v2122
        %v2124 = vpop.xlane.xlu0 %2123
        %v2125 = vsub.f32 %v2117, %v2124
        %v2126 = vmul.f32 %v2125, 1.442695
        %v2127 = vpow.pop %v2126
        %v2128 = vsel %vm1910, %v2127, 0.0
        %2129 = vadd.xlane.f32.xlu0 %v2128
        %v2130 = vpop.xlane.xlu0 %2129
        %v2131 = vrcp.pop %v2130
        %v2132 = vmul.f32 %v2127, %v2131
        %v2133 = vpack.c.bf16 %v2132, %v2132
        %2134 = vrot.lane.b32.xlu0 %v1866, 64
        %v2135 = vpop.permute.xlu0 %2134
        %v2137 = vsel %vm1984, %v2133, 0
        %v2140 = vsel %vm1693, %v2135, 0
        %2142 = vmatprep.subr.bf16.mxu0 0
        %2143 = vmatpush1.bf16.msra.mxu0 %v2140
        %2144 = vmatprep.subr.bf16.mxu0 0
        %2145 = vmatpush1.bf16.msra.mxu0 0
        %2146 = vmatprep.subr.bf16.mxu0 0
        %2147 = vmatpush1.bf16.msra.mxu0 0
        %2148 = vmatprep.subr.bf16.mxu0 0
        %2149 = vmatpush1.bf16.msra.mxu0 0
        %2150 = vmatprep.subr.bf16.mxu0 0
        %2151 = vmatpush1.bf16.msra.mxu0 0
        %2152 = vmatprep.subr.bf16.mxu0 0
        %2153 = vmatpush1.bf16.msra.mxu0 0
        %2154 = vmatprep.subr.bf16.mxu0 0
        %2155 = vmatpush1.bf16.msra.mxu0 0
        %2156 = vmatprep.subr.bf16.mxu0 0
        %2157 = vmatpush1.bf16.msra.mxu0 0
        %2158 = vmatprep.subr.bf16.mxu0 0
        %2159 = vmatpush1.bf16.msra.mxu0 0
        %2160 = vmatprep.subr.bf16.mxu0 0
        %2161 = vmatpush1.bf16.msra.mxu0 0
        %2162 = vmatprep.subr.bf16.mxu0 0
        %2163 = vmatpush1.bf16.msra.mxu0 0
        %2164 = vmatprep.subr.bf16.mxu0 0
        %2165 = vmatpush1.bf16.msra.mxu0 0
        %2166 = vmatprep.subr.bf16.mxu0 0
        %2167 = vmatpush1.bf16.msra.mxu0 0
        %2168 = vmatprep.subr.bf16.mxu0 0
        %2169 = vmatpush1.bf16.msra.mxu0 0
        %2170 = vmatprep.subr.bf16.mxu0 0
        %2171 = vmatpush1.bf16.msra.mxu0 0
        %2172 = vmatprep.subr.bf16.mxu0 0
        %2173 = vmatpush1.bf16.msra.mxu0 0
        %2174 = vmatprep.mubr.bf16.mxu0 0
        %2175 = vmatmul.mubr.bf16.gmra.mrb[0].mxu0 %v2137
        %v2176 = vpop.f32.mrb[0].mxu0
        %v2177 = vadd.f32 0.0, %v2176
        %v2178 = vpop.f32.mrb[0].mxu0
        %v2179 = vpop.f32.mrb[0].mxu0
        %v2180 = vpop.f32.mrb[0].mxu0
        %2181 = vdwg.mxu0
        %v2182 = vadd.f32 %v2072, %v2177
        %2183 = vrot.lane.b32.xlu0 %v1865, 32
        %v2184 = vpop.permute.xlu0 %2183
        %v2186 = vsel %vm1673, %v2184, 0
        %2188 = vmatprep.subr.bf16.mxu0 0
        %2189 = vmatpush1.bf16.xpose.msra.mxu0 %v1822
        %2190 = vmatprep.subr.bf16.mxu0 0
        %2191 = vmatpush1.bf16.xpose.msra.mxu0 0
        %2192 = vmatprep.subr.bf16.mxu0 0
        %2193 = vmatpush1.bf16.xpose.msra.mxu0 0
        %2194 = vmatprep.subr.bf16.mxu0 0
        %2195 = vmatpush1.bf16.xpose.msra.mxu0 0
        %2196 = vmatprep.subr.bf16.mxu0 0
        %2197 = vmatpush1.bf16.xpose.msra.mxu0 0
        %2198 = vmatprep.subr.bf16.mxu0 0
        %2199 = vmatpush1.bf16.xpose.msra.mxu0 0
        %2200 = vmatprep.subr.bf16.mxu0 0
        %2201 = vmatpush1.bf16.xpose.msra.mxu0 0
        %2202 = vmatprep.subr.bf16.mxu0 0
        %2203 = vmatpush1.bf16.xpose.msra.mxu0 0
        %2204 = vmatprep.subr.bf16.mxu0 0
        %2205 = vmatpush1.bf16.xpose.msra.mxu0 0
        %2206 = vmatprep.subr.bf16.mxu0 0
        %2207 = vmatpush1.bf16.xpose.msra.mxu0 0
        %2208 = vmatprep.subr.bf16.mxu0 0
        %2209 = vmatpush1.bf16.xpose.msra.mxu0 0
        %2210 = vmatprep.subr.bf16.mxu0 0
        %2211 = vmatpush1.bf16.xpose.msra.mxu0 0
        %2212 = vmatprep.subr.bf16.mxu0 0
        %2213 = vmatpush1.bf16.xpose.msra.mxu0 0
        %2214 = vmatprep.subr.bf16.mxu0 0
        %2215 = vmatpush1.bf16.xpose.msra.mxu0 0
        %2216 = vmatprep.subr.bf16.mxu0 0
        %2217 = vmatpush1.bf16.xpose.msra.mxu0 0
        %2218 = vmatprep.subr.bf16.mxu0 0
        %2219 = vmatpush1.bf16.xpose.msra.mxu0 0
        %2220 = vmatprep.mubr.bf16.mxu0 0
        %2221 = vmatmul.mubr.bf16.gmra.mrb[0].mxu0 %v2186
        %v2222 = vpop.f32.mrb[0].mxu0
        %v2223 = vadd.f32 0.0, %v2222
        %v2224 = vpop.f32.mrb[0].mxu0
        %v2225 = vpop.f32.mrb[0].mxu0
        %v2226 = vpop.f32.mrb[0].mxu0
        %2227 = vdwg.mxu0
        %v2228 = vsel %vm1910, %v2223, -inf
        %2229 = vmax.xlane.f32.xlu0 %v2228
        %v2230 = vpop.xlane.xlu0 %2229
        %v2231 = vsub.f32 %v2223, %v2230
        %v2232 = vmul.f32 %v2231, 1.442695
        %v2233 = vpow.pop %v2232
        %v2234 = vsel %vm1910, %v2233, 0.0
        %2235 = vadd.xlane.f32.xlu0 %v2234
        %v2236 = vpop.xlane.xlu0 %2235
        %v2237 = vrcp.pop %v2236
        %v2238 = vmul.f32 %v2233, %v2237
        %v2239 = vpack.c.bf16 %v2238, %v2238
        %2240 = vrot.lane.b32.xlu0 %v1866, 32
        %v2241 = vpop.permute.xlu0 %2240
        %v2243 = vsel %vm1984, %v2239, 0
        %v2246 = vsel %vm1693, %v2241, 0
        %2248 = vmatprep.subr.bf16.mxu0 0
        %2249 = vmatpush1.bf16.msra.mxu0 %v2246
        %2250 = vmatprep.subr.bf16.mxu0 0
        %2251 = vmatpush1.bf16.msra.mxu0 0
        %2252 = vmatprep.subr.bf16.mxu0 0
        %2253 = vmatpush1.bf16.msra.mxu0 0
        %2254 = vmatprep.subr.bf16.mxu0 0
        %2255 = vmatpush1.bf16.msra.mxu0 0
        %2256 = vmatprep.subr.bf16.mxu0 0
        %2257 = vmatpush1.bf16.msra.mxu0 0
        %2258 = vmatprep.subr.bf16.mxu0 0
        %2259 = vmatpush1.bf16.msra.mxu0 0
        %2260 = vmatprep.subr.bf16.mxu0 0
        %2261 = vmatpush1.bf16.msra.mxu0 0
        %2262 = vmatprep.subr.bf16.mxu0 0
        %2263 = vmatpush1.bf16.msra.mxu0 0
        %2264 = vmatprep.subr.bf16.mxu0 0
        %2265 = vmatpush1.bf16.msra.mxu0 0
        %2266 = vmatprep.subr.bf16.mxu0 0
        %2267 = vmatpush1.bf16.msra.mxu0 0
        %2268 = vmatprep.subr.bf16.mxu0 0
        %2269 = vmatpush1.bf16.msra.mxu0 0
        %2270 = vmatprep.subr.bf16.mxu0 0
        %2271 = vmatpush1.bf16.msra.mxu0 0
        %2272 = vmatprep.subr.bf16.mxu0 0
        %2273 = vmatpush1.bf16.msra.mxu0 0
        %2274 = vmatprep.subr.bf16.mxu0 0
        %2275 = vmatpush1.bf16.msra.mxu0 0
        %2276 = vmatprep.subr.bf16.mxu0 0
        %2277 = vmatpush1.bf16.msra.mxu0 0
        %2278 = vmatprep.subr.bf16.mxu0 0
        %2279 = vmatpush1.bf16.msra.mxu0 0
        %2280 = vmatprep.mubr.bf16.mxu0 0
        %2281 = vmatmul.mubr.bf16.gmra.mrb[0].mxu0 %v2243
        %v2282 = vpop.f32.mrb[0].mxu0
        %v2283 = vadd.f32 0.0, %v2282
        %v2284 = vpop.f32.mrb[0].mxu0
        %v2285 = vpop.f32.mrb[0].mxu0
        %v2286 = vpop.f32.mrb[0].mxu0
        %2287 = vdwg.mxu0
        %v2288 = vadd.f32 %v2182, %v2283
        %v2289 = vlaneseq
        %v2290 = vshrl.u32 %v2289, 7
        %v2291 = vsub.s32 2, %v2290
        %v2292 = vrot.slane %v1696, %v2291
        %v2293 = vadd.f32 %v2288, %v2292
        %v2294 = vadd.f32 %v2293, %v1795
        %vm2295 = vcmask 254976
        %v2296 = vsel %vm2295, %v2294, 0.0
        %2297 = vadd.xlane.f32.xlu0 %v2296
        %v2298 = vpop.xlane.xlu0 %2297
        %v2299 = vrcp.pop 32.0
        %v2300 = vmul.f32 %v2298, %v2299
        %v2301 = vsub.f32 %v2294, %v2300
        %v2302 = vmul.f32 %v2301, %v2301
        %v2303 = vsel %vm2295, %v2302, 0.0
        %2304 = vadd.xlane.f32.xlu0 %v2303
        %v2305 = vpop.xlane.xlu0 %2304
        %v2306 = vmul.f32 %v2305, %v2299
        %v2307 = vadd.f32 %v2306, 1e-05
        %v2308 = vrsqrt.pop %v2307
        %v2309 = vmul.f32 %v2301, %v2308
        %v2310 = vlaneseq
        %v2311 = vshrl.u32 %v2310, 7
        %v2312 = vsub.s32 3, %v2311
        %v2313 = vrot.slane %v1696, %v2312
        %v2314 = vmul.f32 %v2309, %v2313
        %v2315 = vlaneseq
        %v2316 = vshrl.u32 %v2315, 7
        %v2317 = vsub.s32 4, %v2316
        %v2318 = vrot.slane %v1696, %v2317
        %v2319 = vadd.f32 %v2314, %v2318
        %v2320 = vpack.c.bf16 %v2319, %v2319
        %v2321 = vld [vmem:[%s8] sm:$0xff]
        %v2322 = vld [vmem:[%s8 + $0x8] sm:$0xff]
        %v2323 = vld [vmem:[%s8 + $0x10] sm:$0xff]
        %v2324 = vld [vmem:[%s8 + $0x18] sm:$0xff]
        %v2325 = vld [vmem:[%s8 + $0x20] sm:$0xff]
        %v2326 = vld [vmem:[%s8 + $0x28] sm:$0xff]
        %v2327 = vld [vmem:[%s8 + $0x30] sm:$0xff]
        %v2328 = vld [vmem:[%s8 + $0x38] sm:$0xff]
        %v2329 = vlaneseq
        %v2330 = vshrl.u32 %v2329, 7
        %v2331 = vsub.s32 2, %v2330
        %v2332 = vrot.slane %v1697, %v2331
        %v2333 = vlaneseq
        %v2334 = vshrl.u32 %v2333, 7
        %v2335 = vsub.s32 2, %v2334
        %v2336 = vrot.slane %v1698, %v2335
        %v2337 = vlaneseq
        %v2338 = vshrl.u32 %v2337, 7
        %v2339 = vsub.s32 2, %v2338
        %v2340 = vrot.slane %v1699, %v2339
        %v2341 = vlaneseq
        %v2342 = vshrl.u32 %v2341, 7
        %v2343 = vsub.s32 2, %v2342
        %v2344 = vrot.slane %v1700, %v2343
        %v2353 = vunpack.c.l.b16 %v2321
        %v2354 = vunpack.c.h.b16 %v2321
        %v2355 = vunpack.c.l.b16 %v2322
        %v2356 = vunpack.c.h.b16 %v2322
        %v2357 = vunpack.c.l.b16 %v2323
        %v2358 = vunpack.c.h.b16 %v2323
        %v2359 = vunpack.c.l.b16 %v2324
        %v2360 = vunpack.c.h.b16 %v2324
        %v2361 = vunpack.c.l.b16 %v2325
        %v2362 = vunpack.c.h.b16 %v2325
        %v2363 = vunpack.c.l.b16 %v2326
        %v2364 = vunpack.c.h.b16 %v2326
        %v2365 = vunpack.c.l.b16 %v2327
        %v2366 = vunpack.c.h.b16 %v2327
        %v2367 = vunpack.c.l.b16 %v2328
        %v2368 = vunpack.c.h.b16 %v2328
        %v2369 = vpack.c.b16 %v2357, %v2353
        %v2370 = vpack.c.b16 %v2358, %v2354
        %v2371 = vpack.c.b16 %v2359, %v2355
        %v2372 = vpack.c.b16 %v2360, %v2356
        %v2373 = vpack.c.b16 %v2365, %v2361
        %v2374 = vpack.c.b16 %v2366, %v2362
        %v2375 = vpack.c.b16 %v2367, %v2363
        %v2376 = vpack.c.b16 %v2368, %v2364
        %v2386 = vsel %vm1673, %v2320, 0
        %2388 = vmatprep.subr.bf16.mxu0 %v2370
        %2389 = vmatpush1.bf16.msra.mxu0 %v2369
        %2390 = vmatprep.subr.bf16.mxu0 %v2374
        %2391 = vmatpush1.bf16.msra.mxu0 %v2373
        %2392 = vmatprep.subr.bf16.mxu0 0
        %2393 = vmatpush1.bf16.msra.mxu0 0
        %2394 = vmatprep.subr.bf16.mxu0 0
        %2395 = vmatpush1.bf16.msra.mxu0 0
        %2396 = vmatprep.subr.bf16.mxu0 0
        %2397 = vmatpush1.bf16.msra.mxu0 0
        %2398 = vmatprep.subr.bf16.mxu0 0
        %2399 = vmatpush1.bf16.msra.mxu0 0
        %2400 = vmatprep.subr.bf16.mxu0 0
        %2401 = vmatpush1.bf16.msra.mxu0 0
        %2402 = vmatprep.subr.bf16.mxu0 0
        %2403 = vmatpush1.bf16.msra.mxu0 0
        %2404 = vmatprep.subr.bf16.mxu0 0
        %2405 = vmatpush1.bf16.msra.mxu0 0
        %2406 = vmatprep.subr.bf16.mxu0 0
        %2407 = vmatpush1.bf16.msra.mxu0 0
        %2408 = vmatprep.subr.bf16.mxu0 0
        %2409 = vmatpush1.bf16.msra.mxu0 0
        %2410 = vmatprep.subr.bf16.mxu0 0
        %2411 = vmatpush1.bf16.msra.mxu0 0
        %2412 = vmatprep.subr.bf16.mxu0 0
        %2413 = vmatpush1.bf16.msra.mxu0 0
        %2414 = vmatprep.subr.bf16.mxu0 0
        %2415 = vmatpush1.bf16.msra.mxu0 0
        %2416 = vmatprep.subr.bf16.mxu0 0
        %2417 = vmatpush1.bf16.msra.mxu0 0
        %2418 = vmatprep.subr.bf16.mxu0 0
        %2419 = vmatpush1.bf16.msra.mxu0 0
        %2420 = vmatprep.mubr.bf16.mxu0 0
        %2421 = vmatmul.mubr.bf16.gmra.mrb[0].mxu0 %v2386
        %v2422 = vpop.f32.mrb[0].mxu0
        %v2423 = vadd.f32 %v2332, %v2422
        %v2424 = vpop.f32.mrb[0].mxu0
        %v2425 = vadd.f32 %v2336, %v2424
        %v2426 = vpop.f32.mrb[0].mxu0
        %v2427 = vpop.f32.mrb[0].mxu0
        %2428 = vdwg.mxu0
        %2429 = vmatprep.subr.bf16.mxu0 %v2372
        %2430 = vmatpush1.bf16.msra.mxu0 %v2371
        %2431 = vmatprep.subr.bf16.mxu0 %v2376
        %2432 = vmatpush1.bf16.msra.mxu0 %v2375
        %2433 = vmatprep.subr.bf16.mxu0 0
        %2434 = vmatpush1.bf16.msra.mxu0 0
        %2435 = vmatprep.subr.bf16.mxu0 0
        %2436 = vmatpush1.bf16.msra.mxu0 0
        %2437 = vmatprep.subr.bf16.mxu0 0
        %2438 = vmatpush1.bf16.msra.mxu0 0
        %2439 = vmatprep.subr.bf16.mxu0 0
        %2440 = vmatpush1.bf16.msra.mxu0 0
        %2441 = vmatprep.subr.bf16.mxu0 0
        %2442 = vmatpush1.bf16.msra.mxu0 0
        %2443 = vmatprep.subr.bf16.mxu0 0
        %2444 = vmatpush1.bf16.msra.mxu0 0
        %2445 = vmatprep.subr.bf16.mxu0 0
        %2446 = vmatpush1.bf16.msra.mxu0 0
        %2447 = vmatprep.subr.bf16.mxu0 0
        %2448 = vmatpush1.bf16.msra.mxu0 0
        %2449 = vmatprep.subr.bf16.mxu0 0
        %2450 = vmatpush1.bf16.msra.mxu0 0
        %2451 = vmatprep.subr.bf16.mxu0 0
        %2452 = vmatpush1.bf16.msra.mxu0 0
        %2453 = vmatprep.subr.bf16.mxu0 0
        %2454 = vmatpush1.bf16.msra.mxu0 0
        %2455 = vmatprep.subr.bf16.mxu0 0
        %2456 = vmatpush1.bf16.msra.mxu0 0
        %2457 = vmatprep.subr.bf16.mxu0 0
        %2458 = vmatpush1.bf16.msra.mxu0 0
        %2459 = vmatprep.subr.bf16.mxu0 0
        %2460 = vmatpush1.bf16.msra.mxu0 0
        %2461 = vmatprep.mubr.bf16.mxu0 0
        %2462 = vmatmul.mubr.bf16.gmra.mrb[0].mxu0 %v2386
        %v2463 = vpop.f32.mrb[0].mxu0
        %v2464 = vadd.f32 %v2340, %v2463
        %v2465 = vpop.f32.mrb[0].mxu0
        %v2466 = vadd.f32 %v2344, %v2465
        %v2467 = vpop.f32.mrb[0].mxu0
        %v2468 = vpop.f32.mrb[0].mxu0
        %2469 = vdwg.mxu0
        %v2470 = vmax.f32 %v2423, 0.0
        %v2471 = vmax.f32 %v2425, 0.0
        %v2472 = vmax.f32 %v2464, 0.0
        %v2473 = vmax.f32 %v2466, 0.0
        %v2474 = vpack.c.bf16 %v2470, %v2470
        %v2475 = vpack.c.bf16 %v2471, %v2471
        %v2476 = vpack.c.bf16 %v2472, %v2472
        %v2477 = vpack.c.bf16 %v2473, %v2473
        %v2478 = vld [vmem:[%s9] sm:$0xf]
        %v2479 = vld [vmem:[%s9 + $0x4] sm:$0xf]
        %v2480 = vld [vmem:[%s9 + $0x8] sm:$0xf]
        %v2481 = vld [vmem:[%s9 + $0xc] sm:$0xf]
        %v2482 = vld [vmem:[%s9 + $0x10] sm:$0xf]
        %v2483 = vld [vmem:[%s9 + $0x14] sm:$0xf]
        %v2484 = vld [vmem:[%s9 + $0x18] sm:$0xf]
        %v2485 = vld [vmem:[%s9 + $0x1c] sm:$0xf]
        %v2486 = vld [vmem:[%s9 + $0x20] sm:$0xf]
        %v2487 = vld [vmem:[%s9 + $0x24] sm:$0xf]
        %v2488 = vld [vmem:[%s9 + $0x28] sm:$0xf]
        %v2489 = vld [vmem:[%s9 + $0x2c] sm:$0xf]
        %v2490 = vld [vmem:[%s9 + $0x30] sm:$0xf]
        %v2491 = vld [vmem:[%s9 + $0x34] sm:$0xf]
        %v2492 = vld [vmem:[%s9 + $0x38] sm:$0xf]
        %v2493 = vld [vmem:[%s9 + $0x3c] sm:$0xf]
        %v2494 = vld [vmem:[%s9 + $0x40] sm:$0xf]
        %v2495 = vld [vmem:[%s9 + $0x44] sm:$0xf]
        %v2496 = vld [vmem:[%s9 + $0x48] sm:$0xf]
        %v2497 = vld [vmem:[%s9 + $0x4c] sm:$0xf]
        %v2498 = vld [vmem:[%s9 + $0x50] sm:$0xf]
        %v2499 = vld [vmem:[%s9 + $0x54] sm:$0xf]
        %v2500 = vld [vmem:[%s9 + $0x58] sm:$0xf]
        %v2501 = vld [vmem:[%s9 + $0x5c] sm:$0xf]
        %v2502 = vld [vmem:[%s9 + $0x60] sm:$0xf]
        %v2503 = vld [vmem:[%s9 + $0x64] sm:$0xf]
        %v2504 = vld [vmem:[%s9 + $0x68] sm:$0xf]
        %v2505 = vld [vmem:[%s9 + $0x6c] sm:$0xf]
        %v2506 = vld [vmem:[%s9 + $0x70] sm:$0xf]
        %v2507 = vld [vmem:[%s9 + $0x74] sm:$0xf]
        %v2508 = vld [vmem:[%s9 + $0x78] sm:$0xf]
        %v2509 = vld [vmem:[%s9 + $0x7c] sm:$0xf]
        %v2510 = vld [vmem:[%s9 + $0x80] sm:$0xf]
        %v2511 = vld [vmem:[%s9 + $0x84] sm:$0xf]
        %v2512 = vld [vmem:[%s9 + $0x88] sm:$0xf]
        %v2513 = vld [vmem:[%s9 + $0x8c] sm:$0xf]
        %v2514 = vld [vmem:[%s9 + $0x90] sm:$0xf]
        %v2515 = vld [vmem:[%s9 + $0x94] sm:$0xf]
        %v2516 = vld [vmem:[%s9 + $0x98] sm:$0xf]
        %v2517 = vld [vmem:[%s9 + $0x9c] sm:$0xf]
        %v2518 = vld [vmem:[%s9 + $0xa0] sm:$0xf]
        %v2519 = vld [vmem:[%s9 + $0xa4] sm:$0xf]
        %v2520 = vld [vmem:[%s9 + $0xa8] sm:$0xf]
        %v2521 = vld [vmem:[%s9 + $0xac] sm:$0xf]
        %v2522 = vld [vmem:[%s9 + $0xb0] sm:$0xf]
        %v2523 = vld [vmem:[%s9 + $0xb4] sm:$0xf]
        %v2524 = vld [vmem:[%s9 + $0xb8] sm:$0xf]
        %v2525 = vld [vmem:[%s9 + $0xbc] sm:$0xf]
        %v2526 = vld [vmem:[%s9 + $0xc0] sm:$0xf]
        %v2527 = vld [vmem:[%s9 + $0xc4] sm:$0xf]
        %v2528 = vld [vmem:[%s9 + $0xc8] sm:$0xf]
        %v2529 = vld [vmem:[%s9 + $0xcc] sm:$0xf]
        %v2530 = vld [vmem:[%s9 + $0xd0] sm:$0xf]
        %v2531 = vld [vmem:[%s9 + $0xd4] sm:$0xf]
        %v2532 = vld [vmem:[%s9 + $0xd8] sm:$0xf]
        %v2533 = vld [vmem:[%s9 + $0xdc] sm:$0xf]
        %v2534 = vld [vmem:[%s9 + $0xe0] sm:$0xf]
        %v2535 = vld [vmem:[%s9 + $0xe4] sm:$0xf]
        %v2536 = vld [vmem:[%s9 + $0xe8] sm:$0xf]
        %v2537 = vld [vmem:[%s9 + $0xec] sm:$0xf]
        %v2538 = vld [vmem:[%s9 + $0xf0] sm:$0xf]
        %v2539 = vld [vmem:[%s9 + $0xf4] sm:$0xf]
        %v2540 = vld [vmem:[%s9 + $0xf8] sm:$0xf]
        %v2541 = vld [vmem:[%s9 + $0xfc] sm:$0xf]
        %v2542 = vlaneseq
        %v2543 = vshrl.u32 %v2542, 7
        %v2544 = vsub.s32 5, %v2543
        %v2545 = vrot.slane %v1696, %v2544
        %v2610 = vunpack.c.l.b16 %v2478
        %v2611 = vunpack.c.l.b16 %v2479
        %v2612 = vunpack.c.l.b16 %v2480
        %v2613 = vunpack.c.l.b16 %v2481
        %v2614 = vunpack.c.l.b16 %v2482
        %v2615 = vunpack.c.l.b16 %v2483
        %v2616 = vunpack.c.l.b16 %v2484
        %v2617 = vunpack.c.l.b16 %v2485
        %v2618 = vunpack.c.l.b16 %v2486
        %v2619 = vunpack.c.l.b16 %v2487
        %v2620 = vunpack.c.l.b16 %v2488
        %v2621 = vunpack.c.l.b16 %v2489
        %v2622 = vunpack.c.l.b16 %v2490
        %v2623 = vunpack.c.l.b16 %v2491
        %v2624 = vunpack.c.l.b16 %v2492
        %v2625 = vunpack.c.l.b16 %v2493
        %v2626 = vunpack.c.l.b16 %v2494
        %v2627 = vunpack.c.l.b16 %v2495
        %v2628 = vunpack.c.l.b16 %v2496
        %v2629 = vunpack.c.l.b16 %v2497
        %v2630 = vunpack.c.l.b16 %v2498
        %v2631 = vunpack.c.l.b16 %v2499
        %v2632 = vunpack.c.l.b16 %v2500
        %v2633 = vunpack.c.l.b16 %v2501
        %v2634 = vunpack.c.l.b16 %v2502
        %v2635 = vunpack.c.l.b16 %v2503
        %v2636 = vunpack.c.l.b16 %v2504
        %v2637 = vunpack.c.l.b16 %v2505
        %v2638 = vunpack.c.l.b16 %v2506
        %v2639 = vunpack.c.l.b16 %v2507
        %v2640 = vunpack.c.l.b16 %v2508
        %v2641 = vunpack.c.l.b16 %v2509
        %v2642 = vunpack.c.l.b16 %v2510
        %v2643 = vunpack.c.l.b16 %v2511
        %v2644 = vunpack.c.l.b16 %v2512
        %v2645 = vunpack.c.l.b16 %v2513
        %v2646 = vunpack.c.l.b16 %v2514
        %v2647 = vunpack.c.l.b16 %v2515
        %v2648 = vunpack.c.l.b16 %v2516
        %v2649 = vunpack.c.l.b16 %v2517
        %v2650 = vunpack.c.l.b16 %v2518
        %v2651 = vunpack.c.l.b16 %v2519
        %v2652 = vunpack.c.l.b16 %v2520
        %v2653 = vunpack.c.l.b16 %v2521
        %v2654 = vunpack.c.l.b16 %v2522
        %v2655 = vunpack.c.l.b16 %v2523
        %v2656 = vunpack.c.l.b16 %v2524
        %v2657 = vunpack.c.l.b16 %v2525
        %v2658 = vunpack.c.l.b16 %v2526
        %v2659 = vunpack.c.l.b16 %v2527
        %v2660 = vunpack.c.l.b16 %v2528
        %v2661 = vunpack.c.l.b16 %v2529
        %v2662 = vunpack.c.l.b16 %v2530
        %v2663 = vunpack.c.l.b16 %v2531
        %v2664 = vunpack.c.l.b16 %v2532
        %v2665 = vunpack.c.l.b16 %v2533
        %v2666 = vunpack.c.l.b16 %v2534
        %v2667 = vunpack.c.l.b16 %v2535
        %v2668 = vunpack.c.l.b16 %v2536
        %v2669 = vunpack.c.l.b16 %v2537
        %v2670 = vunpack.c.l.b16 %v2538
        %v2671 = vunpack.c.l.b16 %v2539
        %v2672 = vunpack.c.l.b16 %v2540
        %v2673 = vunpack.c.l.b16 %v2541
        %v2674 = vpack.c.b16 %v2611, %v2610
        %v2675 = vpack.c.b16 %v2613, %v2612
        %v2676 = vpack.c.b16 %v2615, %v2614
        %v2677 = vpack.c.b16 %v2617, %v2616
        %v2678 = vpack.c.b16 %v2619, %v2618
        %v2679 = vpack.c.b16 %v2621, %v2620
        %v2680 = vpack.c.b16 %v2623, %v2622
        %v2681 = vpack.c.b16 %v2625, %v2624
        %v2682 = vpack.c.b16 %v2627, %v2626
        %v2683 = vpack.c.b16 %v2629, %v2628
        %v2684 = vpack.c.b16 %v2631, %v2630
        %v2685 = vpack.c.b16 %v2633, %v2632
        %v2686 = vpack.c.b16 %v2635, %v2634
        %v2687 = vpack.c.b16 %v2637, %v2636
        %v2688 = vpack.c.b16 %v2639, %v2638
        %v2689 = vpack.c.b16 %v2641, %v2640
        %v2690 = vpack.c.b16 %v2643, %v2642
        %v2691 = vpack.c.b16 %v2645, %v2644
        %v2692 = vpack.c.b16 %v2647, %v2646
        %v2693 = vpack.c.b16 %v2649, %v2648
        %v2694 = vpack.c.b16 %v2651, %v2650
        %v2695 = vpack.c.b16 %v2653, %v2652
        %v2696 = vpack.c.b16 %v2655, %v2654
        %v2697 = vpack.c.b16 %v2657, %v2656
        %v2698 = vpack.c.b16 %v2659, %v2658
        %v2699 = vpack.c.b16 %v2661, %v2660
        %v2700 = vpack.c.b16 %v2663, %v2662
        %v2701 = vpack.c.b16 %v2665, %v2664
        %v2702 = vpack.c.b16 %v2667, %v2666
        %v2703 = vpack.c.b16 %v2669, %v2668
        %v2704 = vpack.c.b16 %v2671, %v2670
        %v2705 = vpack.c.b16 %v2673, %v2672
        %2738 = vmatprep.subr.bf16.mxu0 0
        %2739 = vmatpush1.bf16.msra.mxu0 %v2674
        %2740 = vmatprep.subr.bf16.mxu0 0
        %2741 = vmatpush1.bf16.msra.mxu0 %v2675
        %2742 = vmatprep.subr.bf16.mxu0 0
        %2743 = vmatpush1.bf16.msra.mxu0 %v2676
        %2744 = vmatprep.subr.bf16.mxu0 0
        %2745 = vmatpush1.bf16.msra.mxu0 %v2677
        %2746 = vmatprep.subr.bf16.mxu0 0
        %2747 = vmatpush1.bf16.msra.mxu0 %v2678
        %2748 = vmatprep.subr.bf16.mxu0 0
        %2749 = vmatpush1.bf16.msra.mxu0 %v2679
        %2750 = vmatprep.subr.bf16.mxu0 0
        %2751 = vmatpush1.bf16.msra.mxu0 %v2680
        %2752 = vmatprep.subr.bf16.mxu0 0
        %2753 = vmatpush1.bf16.msra.mxu0 %v2681
        %2754 = vmatprep.subr.bf16.mxu0 0
        %2755 = vmatpush1.bf16.msra.mxu0 %v2682
        %2756 = vmatprep.subr.bf16.mxu0 0
        %2757 = vmatpush1.bf16.msra.mxu0 %v2683
        %2758 = vmatprep.subr.bf16.mxu0 0
        %2759 = vmatpush1.bf16.msra.mxu0 %v2684
        %2760 = vmatprep.subr.bf16.mxu0 0
        %2761 = vmatpush1.bf16.msra.mxu0 %v2685
        %2762 = vmatprep.subr.bf16.mxu0 0
        %2763 = vmatpush1.bf16.msra.mxu0 %v2686
        %2764 = vmatprep.subr.bf16.mxu0 0
        %2765 = vmatpush1.bf16.msra.mxu0 %v2687
        %2766 = vmatprep.subr.bf16.mxu0 0
        %2767 = vmatpush1.bf16.msra.mxu0 %v2688
        %2768 = vmatprep.subr.bf16.mxu0 0
        %2769 = vmatpush1.bf16.msra.mxu0 %v2689
        %2770 = vmatprep.mubr.bf16.mxu0 %v2475
        %2771 = vmatmul.mubr.bf16.gmra.mrb[0].mxu0 %v2474
        %v2772 = vpop.f32.mrb[0].mxu0
        %v2773 = vadd.f32 %v2545, %v2772
        %v2774 = vpop.f32.mrb[0].mxu0
        %v2775 = vpop.f32.mrb[0].mxu0
        %v2776 = vpop.f32.mrb[0].mxu0
        %2777 = vdwg.mxu0
        %2778 = vmatprep.subr.bf16.mxu0 0
        %2779 = vmatpush1.bf16.msra.mxu0 %v2690
        %2780 = vmatprep.subr.bf16.mxu0 0
        %2781 = vmatpush1.bf16.msra.mxu0 %v2691
        %2782 = vmatprep.subr.bf16.mxu0 0
        %2783 = vmatpush1.bf16.msra.mxu0 %v2692
        %2784 = vmatprep.subr.bf16.mxu0 0
        %2785 = vmatpush1.bf16.msra.mxu0 %v2693
        %2786 = vmatprep.subr.bf16.mxu0 0
        %2787 = vmatpush1.bf16.msra.mxu0 %v2694
        %2788 = vmatprep.subr.bf16.mxu0 0
        %2789 = vmatpush1.bf16.msra.mxu0 %v2695
        %2790 = vmatprep.subr.bf16.mxu0 0
        %2791 = vmatpush1.bf16.msra.mxu0 %v2696
        %2792 = vmatprep.subr.bf16.mxu0 0
        %2793 = vmatpush1.bf16.msra.mxu0 %v2697
        %2794 = vmatprep.subr.bf16.mxu0 0
        %2795 = vmatpush1.bf16.msra.mxu0 %v2698
        %2796 = vmatprep.subr.bf16.mxu0 0
        %2797 = vmatpush1.bf16.msra.mxu0 %v2699
        %2798 = vmatprep.subr.bf16.mxu0 0
        %2799 = vmatpush1.bf16.msra.mxu0 %v2700
        %2800 = vmatprep.subr.bf16.mxu0 0
        %2801 = vmatpush1.bf16.msra.mxu0 %v2701
        %2802 = vmatprep.subr.bf16.mxu0 0
        %2803 = vmatpush1.bf16.msra.mxu0 %v2702
        %2804 = vmatprep.subr.bf16.mxu0 0
        %2805 = vmatpush1.bf16.msra.mxu0 %v2703
        %2806 = vmatprep.subr.bf16.mxu0 0
        %2807 = vmatpush1.bf16.msra.mxu0 %v2704
        %2808 = vmatprep.subr.bf16.mxu0 0
        %2809 = vmatpush1.bf16.msra.mxu0 %v2705
        %2810 = vmatprep.mubr.bf16.mxu0 %v2477
        %2811 = vmatmul.mubr.bf16.gmra.mrb[0].mxu0 %v2476
        %v2812 = vpop.f32.mrb[0].mxu0
        %v2813 = vadd.f32 %v2773, %v2812
        %v2814 = vpop.f32.mrb[0].mxu0
        %v2815 = vpop.f32.mrb[0].mxu0
        %v2816 = vpop.f32.mrb[0].mxu0
        %2817 = vdwg.mxu0
        %v2818 = vadd.f32 %v2813, %v2319
        %v2819 = vsel %vm2295, %v2818, 0.0
        %2820 = vadd.xlane.f32.xlu0 %v2819
        %v2821 = vpop.xlane.xlu0 %2820
        %v2822 = vmul.f32 %v2821, %v2299
        %v2823 = vsub.f32 %v2818, %v2822
        %v2824 = vmul.f32 %v2823, %v2823
        %v2825 = vsel %vm2295, %v2824, 0.0
        %2826 = vadd.xlane.f32.xlu0 %v2825
        %v2827 = vpop.xlane.xlu0 %2826
        %v2828 = vmul.f32 %v2827, %v2299
        %v2829 = vadd.f32 %v2828, 1e-05
        %v2830 = vrsqrt.pop %v2829
        %v2831 = vmul.f32 %v2823, %v2830
        %v2832 = vlaneseq
        %v2833 = vshrl.u32 %v2832, 7
        %v2834 = vsub.s32 6, %v2833
        %v2835 = vrot.slane %v1696, %v2834
        %v2836 = vmul.f32 %v2831, %v2835
        %v2837 = vlaneseq
        %v2838 = vshrl.u32 %v2837, 7
        %v2839 = vsub.s32 7, %v2838
        %v2840 = vrot.slane %v1696, %v2839
        %v2841 = vadd.f32 %v2836, %v2840
        %v2842 = vlaneseq
        %v2843 = vshrl.u32 %v2842, 7
        %v2844 = vsub.s32 0, %v2843
        %v2845 = vrot.slane %v1697, %v2844
        %v2846 = vmul.f32 %v2841, %v2845
        %v2847 = vlaneseq
        %v2848 = vshrl.u32 %v2847, 7
        %v2849 = vsub.s32 1, %v2848
        %v2850 = vrot.slane %v1697, %v2849
        %v2851 = vadd.f32 %v2846, %v2850
        %v2852 = vmax.f32 %v2851, 0.0
        %v2853 = vsel %vm2295, %v2852, 0.0
        %v2854 = vrot.slane %v2853, 4
        %v2855 = vadd.f32 %v2853, %v2854
        %v2856 = vrot.slane %v2855, 2
        %v2857 = vadd.f32 %v2855, %v2856
        %v2858 = vrot.slane %v2857, 1
        %v2859 = vadd.f32 %v2857, %v2858
        %v2860 = vrcp.pop 2.0
        %v2861 = vmul.f32 %v2859, %v2860
        %v2862 = vpack.c.bf16 %v2861, %v2861
        %v2863 = vld [vmem:[%s11] sm:$0xf]
        %v2864 = vld [vmem:[%s11 + $0x4] sm:$0xf]
        %v2865 = vld [vmem:[%s11 + $0x8] sm:$0xf]
        %v2866 = vld [vmem:[%s11 + $0xc] sm:$0xf]
        %v2867 = vld [vmem:[%s12] sm:$0x1]
        %v2872 = vunpack.c.l.b16 %v2863
        %v2873 = vunpack.c.l.b16 %v2864
        %v2874 = vunpack.c.l.b16 %v2865
        %v2875 = vunpack.c.l.b16 %v2866
        %v2876 = vpack.c.b16 %v2873, %v2872
        %v2877 = vpack.c.b16 %v2875, %v2874
        %v2881 = vsel %vm1673, %v2862, 0
        %2883 = vmatprep.subr.bf16.mxu0 0
        %2884 = vmatpush1.bf16.msra.mxu0 %v2876
        %2885 = vmatprep.subr.bf16.mxu0 0
        %2886 = vmatpush1.bf16.msra.mxu0 %v2877
        %2887 = vmatprep.subr.bf16.mxu0 0
        %2888 = vmatpush1.bf16.msra.mxu0 0
        %2889 = vmatprep.subr.bf16.mxu0 0
        %2890 = vmatpush1.bf16.msra.mxu0 0
        %2891 = vmatprep.subr.bf16.mxu0 0
        %2892 = vmatpush1.bf16.msra.mxu0 0
        %2893 = vmatprep.subr.bf16.mxu0 0
        %2894 = vmatpush1.bf16.msra.mxu0 0
        %2895 = vmatprep.subr.bf16.mxu0 0
        %2896 = vmatpush1.bf16.msra.mxu0 0
        %2897 = vmatprep.subr.bf16.mxu0 0
        %2898 = vmatpush1.bf16.msra.mxu0 0
        %2899 = vmatprep.subr.bf16.mxu0 0
        %2900 = vmatpush1.bf16.msra.mxu0 0
        %2901 = vmatprep.subr.bf16.mxu0 0
        %2902 = vmatpush1.bf16.msra.mxu0 0
        %2903 = vmatprep.subr.bf16.mxu0 0
        %2904 = vmatpush1.bf16.msra.mxu0 0
        %2905 = vmatprep.subr.bf16.mxu0 0
        %2906 = vmatpush1.bf16.msra.mxu0 0
        %2907 = vmatprep.subr.bf16.mxu0 0
        %2908 = vmatpush1.bf16.msra.mxu0 0
        %2909 = vmatprep.subr.bf16.mxu0 0
        %2910 = vmatpush1.bf16.msra.mxu0 0
        %2911 = vmatprep.subr.bf16.mxu0 0
        %2912 = vmatpush1.bf16.msra.mxu0 0
        %2913 = vmatprep.subr.bf16.mxu0 0
        %2914 = vmatpush1.bf16.msra.mxu0 0
        %2915 = vmatprep.mubr.bf16.mxu0 0
        %2916 = vmatmul.mubr.bf16.gmra.mrb[0].mxu0 %v2881
        %v2917 = vpop.f32.mrb[0].mxu0
        %v2918 = vadd.f32 %v2867, %v2917
        %v2919 = vpop.f32.mrb[0].mxu0
        %v2920 = vpop.f32.mrb[0].mxu0
        %v2921 = vpop.f32.mrb[0].mxu0
        %2922 = vdwg.mxu0
        %vm2923 = vcmask 73728
        %2924 = vst.msk [vmem:[%s432] sm:$0x1] %vm2923, %v2918
        %s2925 = sand.u32 %s313, 1
        %s2926 = scalar_lea.sflag [#allocation3], %s2925
        %s2927 = sand.u32 %s313, 1
        %s2928 = scalar_lea.vmem [#allocation2], %s2927
        // Predicated region
        $region73: #{transformer_classifier_forward.1} parent=71 // pred_check
          %p2929 = pneg %p323
        $region74: #{transformer_classifier_forward.1} parent=71 // pred_check_branch
          %2931 = sbr.rel (%p2929) target = $region76
        $region75: #{transformer_classifier_forward.1} parent=71 // pred_region
          %s2933 = ssub.s32 16, 16
          %2934 = vsyncadd %s2926, %s2933
          %s2935 = smul.addr %s27, 16
          %s2936 = scalar_lea.hbm %s13, %s2935
          %s2938 = sshll.u32 %s2928, 4
          %s2939 = int_to_ptr.vmem [resolvable:$true] %s2938
          %2941 = dma.vmem_to_hbm [thread:$0]  %s2939, 16, %s2936, %s2926
        $region76: #{transformer_classifier_forward.1} parent=71 // pred_fallthru
          _
      $region72: #{transformer_classifier_forward.1} parent=5 // pred_fallthru
        _
      %p2942 = scmp.le.s32.totalorder 2, %s22
      // Predicated region
      $region77: #{transformer_classifier_forward.1} parent=5 // pred_check
        %p2943 = pneg %p2942
      $region78: #{transformer_classifier_forward.1} parent=5 // pred_check_branch
        %2945 = sbr.rel (%p2943) target = $region80
      $region79: #{transformer_classifier_forward.1} parent=5 // pred_region
        %s2946 = ssub.s32 %s22, 2
        // Predicated region
        $region81: #{transformer_classifier_forward.1} parent=79 // pred_check
          %p2947 = pneg %p329
        $region82: #{transformer_classifier_forward.1} parent=79 // pred_check_branch
          %2949 = sbr.rel (%p2947) target = $region84
        $region83: #{transformer_classifier_forward.1} parent=79 // pred_region
          %s2950 = sand.u32 %s314, 1
          %s2951 = scalar_lea.sflag [#allocation3], %s2950
          %s2952 = sand.u32 %s314, 1
          %s2953 = scalar_lea.vmem [#allocation2], %s2952
          %2954 = dma.done %s2951, 16
        $region84: #{transformer_classifier_forward.1} parent=79 // pred_fallthru
          _
      $region80: #{transformer_classifier_forward.1} parent=5 // pred_fallthru
        _
    $region6: #{transformer_classifier_forward.1} parent=1 // loop_footer
      %s26 = sadd.s32 1, %s22
    $region7: #{transformer_classifier_forward.1} parent=1 // loop_footer_branch
      %21 = sbr.rel target = $region3
    $region8: #{transformer_classifier_forward.1} parent=1 // loop_exit
      _
    %2955 = vsyncpa [#allocation3], 1
    %s2956 = scalar_lea.sflag [#allocation3], 1
    %2957 = vsyncpa %s2956, 1

</llo_original>
